<compile_context>
chip_gen: v5e
topology: v5e:2x2
jax: 0.10.0
libtpu: 0.0.40
codegen_flags: <defaults>
</compile_context>

<pallas_src>
import jax
import jax.numpy as jnp
from jax.experimental import pallas as pl
from jax.experimental.pallas import tpu as pltpu

H = W = 7              # spatial size
CIN = 192              # conv input channels
COUT = 48              # conv output channels
KH = KW = 3            # kernel size
K_DIM = KH * KW * CIN  # 1728 contraction dim
M_PAD = 64             # 49 output pixels -> 64 (16-aligned: valid for bf16 and f32 tiles)

# bf16 operands + f32 accumulation: halves operand HBM bytes and uses the MXU's
# native bf16 path.  Output error vs. the f32 PyTorch conv is O(1e-3); switch to
# jnp.float32 if strict f32 fidelity is required.
COMPUTE_DTYPE = jnp.bfloat16


def conv_matmul_kernel(p_ref, w_ref, o_ref):
    """Single MXU matmul: [M_PAD, K_DIM] x [K_DIM, COUT] -> [M_PAD, COUT], f32 acc."""
    o_ref[...] = jnp.dot(p_ref[...], w_ref[...],
                         preferred_element_type=jnp.float32)


def pack_conv_weight(w_oihw):
    """PyTorch OIHW [48,192,3,3] -> kernel layout [1728, 48] in COMPUTE_DTYPE.

    Call ONCE at model load and cache (hoists the relayout + cast out of the
    per-call path).  K ordering is (kh, kw, cin), matching the im2col below.
    No lane padding to 128: that padding was 62.5% zero DMA bytes.
    """
    w = jnp.transpose(w_oihw, (2, 3, 1, 0)).reshape(K_DIM, COUT)   # [1728, 48]
    return w.astype(COMPUTE_DTYPE)


def conv3x3_pallas(x_nchw, w_packed):
    """x_nchw: [1, CIN, 7, 7] f32; w_packed: [1728, 48] from pack_conv_weight."""
    # --- glue: layout conversion + zero padding + im2col (tiny; producer is
    #     fused into the pallas_call operand via allow_input_fusion) ---
    x_nhwc = jnp.transpose(x_nchw[0], (1, 2, 0))               # [7, 7, 192]
    x_pad = jnp.pad(x_nhwc, ((1, 1), (1, 1), (0, 0)))          # [9, 9, 192]
    # im2col slab [49, 1728]; column order (kh, kw, cin) matches pack_conv_weight
    patches = jnp.concatenate(
        [x_pad[kh:kh + H, kw:kw + W, :].reshape(H * W, CIN)
         for kh in range(KH) for kw in range(KW)], axis=1)
    patches = jnp.pad(patches, ((0, M_PAD - H * W), (0, 0)))   # [64, 1728]
    patches = patches.astype(COMPUTE_DTYPE)

    in_bytes = jnp.dtype(COMPUTE_DTYPE).itemsize
    out_pad = pl.pallas_call(
        conv_matmul_kernel,
        out_shape=jax.ShapeDtypeStruct((M_PAD, COUT), jnp.float32),
        in_specs=[
            pl.BlockSpec((M_PAD, K_DIM), lambda: (0, 0)),
            pl.BlockSpec((K_DIM, COUT), lambda: (0, 0)),
        ],
        out_specs=pl.BlockSpec((M_PAD, COUT), lambda: (0, 0)),
        compiler_params=pltpu.CompilerParams(
            # Fuse the im2col producer chain into operand 0; weight stays cached.
            allow_input_fusion=[True, False]),
        cost_estimate=pl.CostEstimate(
            flops=2 * M_PAD * K_DIM * COUT,
            transcendentals=0,
            bytes_accessed=(in_bytes * M_PAD * K_DIM
                            + in_bytes * K_DIM * COUT
                            + 4 * M_PAD * COUT)),
    )(patches, w_packed)

    out = out_pad[:H * W, :COUT]                               # [49, 48] f32
    # back to NCHW: [1, COUT, 7, 7]
    return jnp.transpose(out.reshape(H, W, COUT), (2, 0, 1))[None]


@jax.jit
def forward(x431, x397, x404, x411, x418, x425, x439, w_packed):
    x432 = conv3x3_pallas(x431, w_packed)
    # TODO(synk): across a full dense block, write x432 directly into its channel
    # slice of one preallocated [1,1344,7,7] buffer (input_output_aliases) instead
    # of a fresh concat per layer; per-op win here is small so plain concat is kept.
    x440 = jnp.concatenate([x397, x404, x411, x418, x425, x432, x439], axis=1)
    return x440


if __name__ == "__main__":
    key = jax.random.PRNGKey(0)
    ks = jax.random.split(key, 8)

    # deterministic synthetic inputs (shapes fixed by the module)
    x397 = jax.random.normal(ks[0], (1, 1056, 7, 7), jnp.float32)
    x404 = jax.random.normal(ks[1], (1, 48, 7, 7), jnp.float32)
    x411 = jax.random.normal(ks[2], (1, 48, 7, 7), jnp.float32)
    x418 = jax.random.normal(ks[3], (1, 48, 7, 7), jnp.float32)
    x425 = jax.random.normal(ks[4], (1, 48, 7, 7), jnp.float32)
    x431 = jax.random.normal(ks[5], (1, 192, 7, 7), jnp.float32)
    x439 = jax.random.normal(ks[6], (1, 48, 7, 7), jnp.float32)

    # deterministic conv weight, PyTorch layout [O, I, kH, kW], bias=False
    fan_in = CIN * KH * KW
    conv_w = jax.random.normal(ks[7], (COUT, CIN, KH, KW), jnp.float32) * (2.0 / fan_in) ** 0.5

    # hoisted / cached weight relayout + bf16 cast (once per model load)
    w_packed = jax.block_until_ready(pack_conv_weight(conv_w))

    out = forward(x431, x397, x404, x411, x418, x425, x439, w_packed)
    out = jax.block_until_ready(out)

    # shape must match PyTorch result: [1, 1056 + 5*48 + 48, 7, 7] = [1, 1344, 7, 7]
    assert out.shape == (1, 1344, 7, 7), out.shape
    got_conv = out[:, 1056 + 4 * 48: 1056 + 5 * 48]

    # 1) tight kernel-correctness check: true-f32 conv on the same COMPUTE_DTYPE-rounded
    #    operands (products exact in f32 on both paths; only accumulation order differs)
    x431_r = x431.astype(COMPUTE_DTYPE).astype(jnp.float32)
    w_r = conv_w.astype(COMPUTE_DTYPE).astype(jnp.float32)
    ref_rounded = jax.lax.conv_general_dilated(
        x431_r, w_r, window_strides=(1, 1), padding=((1, 1), (1, 1)),
        dimension_numbers=("NCHW", "OIHW", "NCHW"),
        precision=jax.lax.Precision.HIGHEST)
    assert jnp.allclose(got_conv, ref_rounded, atol=1e-4, rtol=1e-4)

    # 2) fidelity check against the original full-f32 conv (bf16 storage => O(1e-3) error)
    ref_f32 = jax.lax.conv_general_dilated(
        x431, conv_w, window_strides=(1, 1), padding=((1, 1), (1, 1)),
        dimension_numbers=("NCHW", "OIHW", "NCHW"),
        precision=jax.lax.Precision.HIGHEST)
    assert jnp.allclose(got_conv, ref_f32, atol=3e-2, rtol=3e-2)

    # concat passthrough spot-checks
    assert jnp.array_equal(out[:, :1056], x397)
    assert jnp.array_equal(out[:, 1296:], x439)

    print("KERNEL_OK")
</pallas_src>

<mosaic_0001>
module attributes {stable_mosaic.version = 11 : i64} {
  func.func @conv_matmul_kernel(%arg0: memref<64x1728xbf16, #tpu.memory_space<vmem>>, %arg1: memref<1728x48xbf16, #tpu.memory_space<vmem>>, %arg2: memref<64x48xf32, #tpu.memory_space<vmem>>) attributes {dimension_semantics = [], scalar_prefetch = 0 : i64, scratch_operands = 0 : i64, tpu.core_type = #tpu.core_type<tc>} {
    %c0 = arith.constant 0 : index
    %c0_0 = arith.constant 0 : index
    %0 = vector.load %arg0[%c0, %c0_0] : memref<64x1728xbf16, #tpu.memory_space<vmem>>, vector<64x1728xbf16>
    %c0_1 = arith.constant 0 : index
    %c0_2 = arith.constant 0 : index
    %1 = vector.load %arg1[%c0_1, %c0_2] : memref<1728x48xbf16, #tpu.memory_space<vmem>>, vector<1728x48xbf16>
    %cst = arith.constant dense<0.000000e+00> : vector<64x48xf32>
    %2 = tpu.matmul %0, %1, %cst {dimension_numbers = #tpu.dot_dimension_numbers<[1], [0], [0], [1], [0, 0, 1, 1], [], []>} : vector<64x1728xbf16>, vector<1728x48xbf16>, vector<64x48xf32> -> vector<64x48xf32>
    %c0_3 = arith.constant 0 : index
    %c0_4 = arith.constant 0 : index
    %3 = vector.load %arg2[%c0_3, %c0_4] : memref<64x48xf32, #tpu.memory_space<vmem>>, vector<64x48xf32>
    tpu.vector_store %arg2[%c0_3, %c0_4], %2 {strides = array<i32>} : memref<64x48xf32, #tpu.memory_space<vmem>>, vector<64x48xf32>,
    return
  }
}

</mosaic_0001>

<llo_original>
// kernel: forward.2
$region0: #{forward.2}
  #allocation0 [shape = 'u32[]', space=smem, size = 0x4, offset = 0x4, fixed_abs, tag = 'smem constant byte address 0x4 - core index']
  #allocation1 [shape = 'u32[72,128]{1,0:T(1,128)}', space=vmem, size = 0x9000, scoped, tag = 'internal scratch']
  #allocation2 [shape = 'u32[2048]{0}', space=vmem, size = 0x2000, scoped, tag = 'scoped memory for forward.2']
  #allocation3 [shape = 'u32[2048]{0}', space=vmem, size = 0x2000, scoped, tag = 'scoped memory for forward.2']
  #allocation4 [shape = 'u32[2048]{0}', space=vmem, size = 0x2000, scoped, tag = 'scoped memory for forward.2']
  #allocation5 [shape = 'u32[2048]{0}', space=vmem, size = 0x2000, scoped, tag = 'scoped memory for forward.2']
  #allocation6 [shape = 'u32[2048]{0}', space=vmem, size = 0x2000, scoped, tag = 'scoped memory for forward.2']
  %s0 = inlined_call_operand.vmem [shape: bf16[1728,48], index: 0, kind: input, shape index: {}]
  %s1 = inlined_call_operand.vmem [shape: bf16[49,1728], index: 1, kind: input, shape index: {}]
  %s2 = inlined_call_operand.<no memory space> [shape: bf16[], index: 2, kind: input, shape index: {}]
  %s3 = inlined_call_operand.vmem [shape: f32[64,48], index: 3, kind: output, shape index: {}]
  %s4 = sld [smem:[#allocation0]]
  $region18: #{forward.2} parent=0
    _
  %s6 = ssub.s32 1, %s4
  %s7 = scalar_select 0, %s6, %s4
  %v8 = vstv %s2
  %v9 = vunpack.i.l.bf16 %v8
  %v11 = vunpack.i.h.bf16 %v8
  $region1: #{forward.2} parent=0
    #allocation7 [shape = 'u8[229376]{0}', space=vmem, size = 0x38000, dematerialized = true, scoped, tag = 'FusionAdapter Buffer %fusion.1 = bf16[64,1728]{1,0:T(8,128)(2,1)} fusion(%param_1.1, %param_2), kind=kLoop, calls=%fused_computation.1.clone, metadata={op_name="jit(forward)/jit(_pad)/pad" stack_frame_id=14}']
    // Predicated region
    $region2: #{forward.2} parent=1 // pred_check
      _
    $region3: #{forward.2} parent=1 // pred_check_branch
      %14 = sbr.rel (0) target = $region5
    $region4: #{forward.2} parent=1 // pred_region
      _
    $region5: #{forward.2} parent=1 // pred_fallthru
      _
    // Predicated region
    $region6: #{forward.2} parent=1 // pred_check
      _
    $region7: #{forward.2} parent=1 // pred_check_branch
      %16 = sbr.rel (0) target = $region9
    $region8: #{forward.2} parent=1 // pred_region
      _
    $region9: #{forward.2} parent=1 // pred_fallthru
      _
    %v17 = vld [vmem:[%s1] sm:$0xf]
    %v18 = vunpack.c.l.bf16 %v17
    %v19 = vunpack.c.h.bf16 %v17
    %v20 = vlaneseq
    %v21 = vshrl.u32 %v20, 7
    %vm23 = vcmp.lt.s32.totalorder %v21, 49
    %v24 = vsel %vm23, %v18, %v9
    %v25 = vlaneseq
    %v26 = vand.u32 %v25, 127
    %vm28 = vcmp.lt.s32.totalorder %v26, 1728
    %v29 = vsel %vm28, %v24, %v9
    %v30 = vpack.c.bf16 0.0, %v29
    %s32 = ssub.s32 16, 1
    %33 = vst [vmem:[#allocation7] sm:%s32] %v30
    %s34 = scalar_lea.vmem %s1, 4
    %v35 = vld [vmem:[%s34] sm:$0xf]
    %v36 = vunpack.c.l.bf16 %v35
    %v37 = vunpack.c.h.bf16 %v35
    %v38 = vlaneseq
    %v39 = vshrl.u32 %v38, 7
    %vm41 = vcmp.lt.s32.totalorder %v39, 49
    %v42 = vsel %vm41, %v36, %v9
    %v43 = vlaneseq
    %v44 = vand.u32 %v43, 127
    %v45 = vadd.s32 %v44, 128
    %vm46 = vcmp.lt.s32.totalorder %v45, 1728
    %v47 = vsel %vm46, %v42, %v9
    %s48 = scalar_lea.vmem [#allocation7], 4
    %v49 = vpack.c.bf16 0.0, %v47
    %s51 = ssub.s32 16, 1
    %52 = vst [vmem:[%s48] sm:%s51] %v49
    %s53 = scalar_lea.vmem %s1, 8
    %v54 = vld [vmem:[%s53] sm:$0xf]
    %v55 = vunpack.c.l.bf16 %v54
    %v56 = vunpack.c.h.bf16 %v54
    %v57 = vlaneseq
    %v58 = vshrl.u32 %v57, 7
    %vm60 = vcmp.lt.s32.totalorder %v58, 49
    %v61 = vsel %vm60, %v55, %v9
    %v62 = vlaneseq
    %v63 = vand.u32 %v62, 127
    %v64 = vadd.s32 %v63, 256
    %vm65 = vcmp.lt.s32.totalorder %v64, 1728
    %v66 = vsel %vm65, %v61, %v9
    %s67 = scalar_lea.vmem [#allocation7], 8
    %v68 = vpack.c.bf16 0.0, %v66
    %s70 = ssub.s32 16, 1
    %71 = vst [vmem:[%s67] sm:%s70] %v68
    %s72 = scalar_lea.vmem %s1, 12
    %v73 = vld [vmem:[%s72] sm:$0xf]
    %v74 = vunpack.c.l.bf16 %v73
    %v75 = vunpack.c.h.bf16 %v73
    %v76 = vlaneseq
    %v77 = vshrl.u32 %v76, 7
    %vm79 = vcmp.lt.s32.totalorder %v77, 49
    %v80 = vsel %vm79, %v74, %v9
    %v81 = vlaneseq
    %v82 = vand.u32 %v81, 127
    %v83 = vadd.s32 %v82, 384
    %vm84 = vcmp.lt.s32.totalorder %v83, 1728
    %v85 = vsel %vm84, %v80, %v9
    %s86 = scalar_lea.vmem [#allocation7], 12
    %v87 = vpack.c.bf16 0.0, %v85
    %s89 = ssub.s32 16, 1
    %90 = vst [vmem:[%s86] sm:%s89] %v87
    %s91 = scalar_lea.vmem %s1, 16
    %v92 = vld [vmem:[%s91] sm:$0xf]
    %v93 = vunpack.c.l.bf16 %v92
    %v94 = vunpack.c.h.bf16 %v92
    %v95 = vlaneseq
    %v96 = vshrl.u32 %v95, 7
    %vm98 = vcmp.lt.s32.totalorder %v96, 49
    %v99 = vsel %vm98, %v93, %v9
    %v100 = vlaneseq
    %v101 = vand.u32 %v100, 127
    %v102 = vadd.s32 %v101, 512
    %vm103 = vcmp.lt.s32.totalorder %v102, 1728
    %v104 = vsel %vm103, %v99, %v9
    %s105 = scalar_lea.vmem [#allocation7], 16
    %v106 = vpack.c.bf16 0.0, %v104
    %s108 = ssub.s32 16, 1
    %109 = vst [vmem:[%s105] sm:%s108] %v106
    %s110 = scalar_lea.vmem %s1, 20
    %v111 = vld [vmem:[%s110] sm:$0xf]
    %v112 = vunpack.c.l.bf16 %v111
    %v113 = vunpack.c.h.bf16 %v111
    %v114 = vlaneseq
    %v115 = vshrl.u32 %v114, 7
    %vm117 = vcmp.lt.s32.totalorder %v115, 49
    %v118 = vsel %vm117, %v112, %v9
    %v119 = vlaneseq
    %v120 = vand.u32 %v119, 127
    %v121 = vadd.s32 %v120, 640
    %vm122 = vcmp.lt.s32.totalorder %v121, 1728
    %v123 = vsel %vm122, %v118, %v9
    %s124 = scalar_lea.vmem [#allocation7], 20
    %v125 = vpack.c.bf16 0.0, %v123
    %s127 = ssub.s32 16, 1
    %128 = vst [vmem:[%s124] sm:%s127] %v125
    %s129 = scalar_lea.vmem %s1, 24
    %v130 = vld [vmem:[%s129] sm:$0xf]
    %v131 = vunpack.c.l.bf16 %v130
    %v132 = vunpack.c.h.bf16 %v130
    %v133 = vlaneseq
    %v134 = vshrl.u32 %v133, 7
    %vm136 = vcmp.lt.s32.totalorder %v134, 49
    %v137 = vsel %vm136, %v131, %v9
    %v138 = vlaneseq
    %v139 = vand.u32 %v138, 127
    %v140 = vadd.s32 %v139, 768
    %vm141 = vcmp.lt.s32.totalorder %v140, 1728
    %v142 = vsel %vm141, %v137, %v9
    %s143 = scalar_lea.vmem [#allocation7], 24
    %v144 = vpack.c.bf16 0.0, %v142
    %s146 = ssub.s32 16, 1
    %147 = vst [vmem:[%s143] sm:%s146] %v144
    %s148 = scalar_lea.vmem %s1, 28
    %v149 = vld [vmem:[%s148] sm:$0xf]
    %v150 = vunpack.c.l.bf16 %v149
    %v151 = vunpack.c.h.bf16 %v149
    %v152 = vlaneseq
    %v153 = vshrl.u32 %v152, 7
    %vm155 = vcmp.lt.s32.totalorder %v153, 49
    %v156 = vsel %vm155, %v150, %v9
    %v157 = vlaneseq
    %v158 = vand.u32 %v157, 127
    %v159 = vadd.s32 %v158, 896
    %vm160 = vcmp.lt.s32.totalorder %v159, 1728
    %v161 = vsel %vm160, %v156, %v9
    %s162 = scalar_lea.vmem [#allocation7], 28
    %v163 = vpack.c.bf16 0.0, %v161
    %s165 = ssub.s32 16, 1
    %166 = vst [vmem:[%s162] sm:%s165] %v163
    %s167 = scalar_lea.vmem %s1, 32
    %v168 = vld [vmem:[%s167] sm:$0xf]
    %v169 = vunpack.c.l.bf16 %v168
    %v170 = vunpack.c.h.bf16 %v168
    %v171 = vlaneseq
    %v172 = vshrl.u32 %v171, 7
    %vm174 = vcmp.lt.s32.totalorder %v172, 49
    %v175 = vsel %vm174, %v169, %v9
    %v176 = vlaneseq
    %v177 = vand.u32 %v176, 127
    %v178 = vadd.s32 %v177, 1024
    %vm179 = vcmp.lt.s32.totalorder %v178, 1728
    %v180 = vsel %vm179, %v175, %v9
    %s181 = scalar_lea.vmem [#allocation7], 32
    %v182 = vpack.c.bf16 0.0, %v180
    %s184 = ssub.s32 16, 1
    %185 = vst [vmem:[%s181] sm:%s184] %v182
    %s186 = scalar_lea.vmem %s1, 36
    %v187 = vld [vmem:[%s186] sm:$0xf]
    %v188 = vunpack.c.l.bf16 %v187
    %v189 = vunpack.c.h.bf16 %v187
    %v190 = vlaneseq
    %v191 = vshrl.u32 %v190, 7
    %vm193 = vcmp.lt.s32.totalorder %v191, 49
    %v194 = vsel %vm193, %v188, %v9
    %v195 = vlaneseq
    %v196 = vand.u32 %v195, 127
    %v197 = vadd.s32 %v196, 1152
    %vm198 = vcmp.lt.s32.totalorder %v197, 1728
    %v199 = vsel %vm198, %v194, %v9
    %s200 = scalar_lea.vmem [#allocation7], 36
    %v201 = vpack.c.bf16 0.0, %v199
    %s203 = ssub.s32 16, 1
    %204 = vst [vmem:[%s200] sm:%s203] %v201
    %s205 = scalar_lea.vmem %s1, 40
    %v206 = vld [vmem:[%s205] sm:$0xf]
    %v207 = vunpack.c.l.bf16 %v206
    %v208 = vunpack.c.h.bf16 %v206
    %v209 = vlaneseq
    %v210 = vshrl.u32 %v209, 7
    %vm212 = vcmp.lt.s32.totalorder %v210, 49
    %v213 = vsel %vm212, %v207, %v9
    %v214 = vlaneseq
    %v215 = vand.u32 %v214, 127
    %v216 = vadd.s32 %v215, 1280
    %vm217 = vcmp.lt.s32.totalorder %v216, 1728
    %v218 = vsel %vm217, %v213, %v9
    %s219 = scalar_lea.vmem [#allocation7], 40
    %v220 = vpack.c.bf16 0.0, %v218
    %s222 = ssub.s32 16, 1
    %223 = vst [vmem:[%s219] sm:%s222] %v220
    %s224 = scalar_lea.vmem %s1, 44
    %v225 = vld [vmem:[%s224] sm:$0xf]
    %v226 = vunpack.c.l.bf16 %v225
    %v227 = vunpack.c.h.bf16 %v225
    %v228 = vlaneseq
    %v229 = vshrl.u32 %v228, 7
    %vm231 = vcmp.lt.s32.totalorder %v229, 49
    %v232 = vsel %vm231, %v226, %v9
    %v233 = vlaneseq
    %v234 = vand.u32 %v233, 127
    %v235 = vadd.s32 %v234, 1408
    %vm236 = vcmp.lt.s32.totalorder %v235, 1728
    %v237 = vsel %vm236, %v232, %v9
    %s238 = scalar_lea.vmem [#allocation7], 44
    %v239 = vpack.c.bf16 0.0, %v237
    %s241 = ssub.s32 16, 1
    %242 = vst [vmem:[%s238] sm:%s241] %v239
    %s243 = scalar_lea.vmem %s1, 48
    %v244 = vld [vmem:[%s243] sm:$0xf]
    %v245 = vunpack.c.l.bf16 %v244
    %v246 = vunpack.c.h.bf16 %v244
    %v247 = vlaneseq
    %v248 = vshrl.u32 %v247, 7
    %vm250 = vcmp.lt.s32.totalorder %v248, 49
    %v251 = vsel %vm250, %v245, %v9
    %v252 = vlaneseq
    %v253 = vand.u32 %v252, 127
    %v254 = vadd.s32 %v253, 1536
    %vm255 = vcmp.lt.s32.totalorder %v254, 1728
    %v256 = vsel %vm255, %v251, %v9
    %s257 = scalar_lea.vmem [#allocation7], 48
    %v258 = vpack.c.bf16 0.0, %v256
    %s260 = ssub.s32 16, 1
    %261 = vst [vmem:[%s257] sm:%s260] %v258
    %s262 = scalar_lea.vmem %s1, 52
    %v263 = vld [vmem:[%s262] sm:$0xf]
    %v264 = vunpack.c.l.bf16 %v263
    %v265 = vunpack.c.h.bf16 %v263
    %v266 = vlaneseq
    %v267 = vshrl.u32 %v266, 7
    %vm269 = vcmp.lt.s32.totalorder %v267, 49
    %v270 = vsel %vm269, %v264, %v9
    %v271 = vlaneseq
    %v272 = vand.u32 %v271, 127
    %v273 = vadd.s32 %v272, 1664
    %vm274 = vcmp.lt.s32.totalorder %v273, 1728
    %v275 = vsel %vm274, %v270, %v9
    %s276 = scalar_lea.vmem [#allocation7], 52
    %v277 = vpack.c.bf16 0.0, %v275
    %s279 = ssub.s32 16, 1
    %280 = vst [vmem:[%s276] sm:%s279] %v277
    %s281 = scalar_lea.vmem %s1, 56
    %v282 = vld [vmem:[%s281] sm:$0xf]
    %v283 = vunpack.c.l.bf16 %v282
    %v284 = vunpack.c.h.bf16 %v282
    %v285 = vlaneseq
    %v286 = vshrl.u32 %v285, 7
    %v287 = vadd.s32 %v286, 8
    %vm288 = vcmp.lt.s32.totalorder %v287, 49
    %v289 = vsel %vm288, %v283, %v9
    %v290 = vlaneseq
    %v291 = vand.u32 %v290, 127
    %vm293 = vcmp.lt.s32.totalorder %v291, 1728
    %v294 = vsel %vm293, %v289, %v9
    %s295 = scalar_lea.vmem [#allocation7], 56
    %v296 = vpack.c.bf16 0.0, %v294
    %s298 = ssub.s32 16, 1
    %299 = vst [vmem:[%s295] sm:%s298] %v296
    %s300 = scalar_lea.vmem %s1, 60
    %v301 = vld [vmem:[%s300] sm:$0xf]
    %v302 = vunpack.c.l.bf16 %v301
    %v303 = vunpack.c.h.bf16 %v301
    %v304 = vlaneseq
    %v305 = vshrl.u32 %v304, 7
    %v306 = vadd.s32 %v305, 8
    %vm307 = vcmp.lt.s32.totalorder %v306, 49
    %v308 = vsel %vm307, %v302, %v9
    %v309 = vlaneseq
    %v310 = vand.u32 %v309, 127
    %v311 = vadd.s32 %v310, 128
    %vm312 = vcmp.lt.s32.totalorder %v311, 1728
    %v313 = vsel %vm312, %v308, %v9
    %s314 = scalar_lea.vmem [#allocation7], 60
    %v315 = vpack.c.bf16 0.0, %v313
    %s317 = ssub.s32 16, 1
    %318 = vst [vmem:[%s314] sm:%s317] %v315
    %s319 = scalar_lea.vmem %s1, 64
    %v320 = vld [vmem:[%s319] sm:$0xf]
    %v321 = vunpack.c.l.bf16 %v320
    %v322 = vunpack.c.h.bf16 %v320
    %v323 = vlaneseq
    %v324 = vshrl.u32 %v323, 7
    %v325 = vadd.s32 %v324, 8
    %vm326 = vcmp.lt.s32.totalorder %v325, 49
    %v327 = vsel %vm326, %v321, %v9
    %v328 = vlaneseq
    %v329 = vand.u32 %v328, 127
    %v330 = vadd.s32 %v329, 256
    %vm331 = vcmp.lt.s32.totalorder %v330, 1728
    %v332 = vsel %vm331, %v327, %v9
    %s333 = scalar_lea.vmem [#allocation7], 64
    %v334 = vpack.c.bf16 0.0, %v332
    %s336 = ssub.s32 16, 1
    %337 = vst [vmem:[%s333] sm:%s336] %v334
    %s338 = scalar_lea.vmem %s1, 68
    %v339 = vld [vmem:[%s338] sm:$0xf]
    %v340 = vunpack.c.l.bf16 %v339
    %v341 = vunpack.c.h.bf16 %v339
    %v342 = vlaneseq
    %v343 = vshrl.u32 %v342, 7
    %v344 = vadd.s32 %v343, 8
    %vm345 = vcmp.lt.s32.totalorder %v344, 49
    %v346 = vsel %vm345, %v340, %v9
    %v347 = vlaneseq
    %v348 = vand.u32 %v347, 127
    %v349 = vadd.s32 %v348, 384
    %vm350 = vcmp.lt.s32.totalorder %v349, 1728
    %v351 = vsel %vm350, %v346, %v9
    %s352 = scalar_lea.vmem [#allocation7], 68
    %v353 = vpack.c.bf16 0.0, %v351
    %s355 = ssub.s32 16, 1
    %356 = vst [vmem:[%s352] sm:%s355] %v353
    %s357 = scalar_lea.vmem %s1, 72
    %v358 = vld [vmem:[%s357] sm:$0xf]
    %v359 = vunpack.c.l.bf16 %v358
    %v360 = vunpack.c.h.bf16 %v358
    %v361 = vlaneseq
    %v362 = vshrl.u32 %v361, 7
    %v363 = vadd.s32 %v362, 8
    %vm364 = vcmp.lt.s32.totalorder %v363, 49
    %v365 = vsel %vm364, %v359, %v9
    %v366 = vlaneseq
    %v367 = vand.u32 %v366, 127
    %v368 = vadd.s32 %v367, 512
    %vm369 = vcmp.lt.s32.totalorder %v368, 1728
    %v370 = vsel %vm369, %v365, %v9
    %s371 = scalar_lea.vmem [#allocation7], 72
    %v372 = vpack.c.bf16 0.0, %v370
    %s374 = ssub.s32 16, 1
    %375 = vst [vmem:[%s371] sm:%s374] %v372
    %s376 = scalar_lea.vmem %s1, 76
    %v377 = vld [vmem:[%s376] sm:$0xf]
    %v378 = vunpack.c.l.bf16 %v377
    %v379 = vunpack.c.h.bf16 %v377
    %v380 = vlaneseq
    %v381 = vshrl.u32 %v380, 7
    %v382 = vadd.s32 %v381, 8
    %vm383 = vcmp.lt.s32.totalorder %v382, 49
    %v384 = vsel %vm383, %v378, %v9
    %v385 = vlaneseq
    %v386 = vand.u32 %v385, 127
    %v387 = vadd.s32 %v386, 640
    %vm388 = vcmp.lt.s32.totalorder %v387, 1728
    %v389 = vsel %vm388, %v384, %v9
    %s390 = scalar_lea.vmem [#allocation7], 76
    %v391 = vpack.c.bf16 0.0, %v389
    %s393 = ssub.s32 16, 1
    %394 = vst [vmem:[%s390] sm:%s393] %v391
    %s395 = scalar_lea.vmem %s1, 80
    %v396 = vld [vmem:[%s395] sm:$0xf]
    %v397 = vunpack.c.l.bf16 %v396
    %v398 = vunpack.c.h.bf16 %v396
    %v399 = vlaneseq
    %v400 = vshrl.u32 %v399, 7
    %v401 = vadd.s32 %v400, 8
    %vm402 = vcmp.lt.s32.totalorder %v401, 49
    %v403 = vsel %vm402, %v397, %v9
    %v404 = vlaneseq
    %v405 = vand.u32 %v404, 127
    %v406 = vadd.s32 %v405, 768
    %vm407 = vcmp.lt.s32.totalorder %v406, 1728
    %v408 = vsel %vm407, %v403, %v9
    %s409 = scalar_lea.vmem [#allocation7], 80
    %v410 = vpack.c.bf16 0.0, %v408
    %s412 = ssub.s32 16, 1
    %413 = vst [vmem:[%s409] sm:%s412] %v410
    %s414 = scalar_lea.vmem %s1, 84
    %v415 = vld [vmem:[%s414] sm:$0xf]
    %v416 = vunpack.c.l.bf16 %v415
    %v417 = vunpack.c.h.bf16 %v415
    %v418 = vlaneseq
    %v419 = vshrl.u32 %v418, 7
    %v420 = vadd.s32 %v419, 8
    %vm421 = vcmp.lt.s32.totalorder %v420, 49
    %v422 = vsel %vm421, %v416, %v9
    %v423 = vlaneseq
    %v424 = vand.u32 %v423, 127
    %v425 = vadd.s32 %v424, 896
    %vm426 = vcmp.lt.s32.totalorder %v425, 1728
    %v427 = vsel %vm426, %v422, %v9
    %s428 = scalar_lea.vmem [#allocation7], 84
    %v429 = vpack.c.bf16 0.0, %v427
    %s431 = ssub.s32 16, 1
    %432 = vst [vmem:[%s428] sm:%s431] %v429
    %s433 = scalar_lea.vmem %s1, 88
    %v434 = vld [vmem:[%s433] sm:$0xf]
    %v435 = vunpack.c.l.bf16 %v434
    %v436 = vunpack.c.h.bf16 %v434
    %v437 = vlaneseq
    %v438 = vshrl.u32 %v437, 7
    %v439 = vadd.s32 %v438, 8
    %vm440 = vcmp.lt.s32.totalorder %v439, 49
    %v441 = vsel %vm440, %v435, %v9
    %v442 = vlaneseq
    %v443 = vand.u32 %v442, 127
    %v444 = vadd.s32 %v443, 1024
    %vm445 = vcmp.lt.s32.totalorder %v444, 1728
    %v446 = vsel %vm445, %v441, %v9
    %s447 = scalar_lea.vmem [#allocation7], 88
    %v448 = vpack.c.bf16 0.0, %v446
    %s450 = ssub.s32 16, 1
    %451 = vst [vmem:[%s447] sm:%s450] %v448
    %s452 = scalar_lea.vmem %s1, 92
    %v453 = vld [vmem:[%s452] sm:$0xf]
    %v454 = vunpack.c.l.bf16 %v453
    %v455 = vunpack.c.h.bf16 %v453
    %v456 = vlaneseq
    %v457 = vshrl.u32 %v456, 7
    %v458 = vadd.s32 %v457, 8
    %vm459 = vcmp.lt.s32.totalorder %v458, 49
    %v460 = vsel %vm459, %v454, %v9
    %v461 = vlaneseq
    %v462 = vand.u32 %v461, 127
    %v463 = vadd.s32 %v462, 1152
    %vm464 = vcmp.lt.s32.totalorder %v463, 1728
    %v465 = vsel %vm464, %v460, %v9
    %s466 = scalar_lea.vmem [#allocation7], 92
    %v467 = vpack.c.bf16 0.0, %v465
    %s469 = ssub.s32 16, 1
    %470 = vst [vmem:[%s466] sm:%s469] %v467
    %s471 = scalar_lea.vmem %s1, 96
    %v472 = vld [vmem:[%s471] sm:$0xf]
    %v473 = vunpack.c.l.bf16 %v472
    %v474 = vunpack.c.h.bf16 %v472
    %v475 = vlaneseq
    %v476 = vshrl.u32 %v475, 7
    %v477 = vadd.s32 %v476, 8
    %vm478 = vcmp.lt.s32.totalorder %v477, 49
    %v479 = vsel %vm478, %v473, %v9
    %v480 = vlaneseq
    %v481 = vand.u32 %v480, 127
    %v482 = vadd.s32 %v481, 1280
    %vm483 = vcmp.lt.s32.totalorder %v482, 1728
    %v484 = vsel %vm483, %v479, %v9
    %s485 = scalar_lea.vmem [#allocation7], 96
    %v486 = vpack.c.bf16 0.0, %v484
    %s488 = ssub.s32 16, 1
    %489 = vst [vmem:[%s485] sm:%s488] %v486
    %s490 = scalar_lea.vmem %s1, 100
    %v491 = vld [vmem:[%s490] sm:$0xf]
    %v492 = vunpack.c.l.bf16 %v491
    %v493 = vunpack.c.h.bf16 %v491
    %v494 = vlaneseq
    %v495 = vshrl.u32 %v494, 7
    %v496 = vadd.s32 %v495, 8
    %vm497 = vcmp.lt.s32.totalorder %v496, 49
    %v498 = vsel %vm497, %v492, %v9
    %v499 = vlaneseq
    %v500 = vand.u32 %v499, 127
    %v501 = vadd.s32 %v500, 1408
    %vm502 = vcmp.lt.s32.totalorder %v501, 1728
    %v503 = vsel %vm502, %v498, %v9
    %s504 = scalar_lea.vmem [#allocation7], 100
    %v505 = vpack.c.bf16 0.0, %v503
    %s507 = ssub.s32 16, 1
    %508 = vst [vmem:[%s504] sm:%s507] %v505
    %s509 = scalar_lea.vmem %s1, 104
    %v510 = vld [vmem:[%s509] sm:$0xf]
    %v511 = vunpack.c.l.bf16 %v510
    %v512 = vunpack.c.h.bf16 %v510
    %v513 = vlaneseq
    %v514 = vshrl.u32 %v513, 7
    %v515 = vadd.s32 %v514, 8
    %vm516 = vcmp.lt.s32.totalorder %v515, 49
    %v517 = vsel %vm516, %v511, %v9
    %v518 = vlaneseq
    %v519 = vand.u32 %v518, 127
    %v520 = vadd.s32 %v519, 1536
    %vm521 = vcmp.lt.s32.totalorder %v520, 1728
    %v522 = vsel %vm521, %v517, %v9
    %s523 = scalar_lea.vmem [#allocation7], 104
    %v524 = vpack.c.bf16 0.0, %v522
    %s526 = ssub.s32 16, 1
    %527 = vst [vmem:[%s523] sm:%s526] %v524
    %s528 = scalar_lea.vmem %s1, 108
    %v529 = vld [vmem:[%s528] sm:$0xf]
    %v530 = vunpack.c.l.bf16 %v529
    %v531 = vunpack.c.h.bf16 %v529
    %v532 = vlaneseq
    %v533 = vshrl.u32 %v532, 7
    %v534 = vadd.s32 %v533, 8
    %vm535 = vcmp.lt.s32.totalorder %v534, 49
    %v536 = vsel %vm535, %v530, %v9
    %v537 = vlaneseq
    %v538 = vand.u32 %v537, 127
    %v539 = vadd.s32 %v538, 1664
    %vm540 = vcmp.lt.s32.totalorder %v539, 1728
    %v541 = vsel %vm540, %v536, %v9
    %s542 = scalar_lea.vmem [#allocation7], 108
    %v543 = vpack.c.bf16 0.0, %v541
    %s545 = ssub.s32 16, 1
    %546 = vst [vmem:[%s542] sm:%s545] %v543
    %s547 = scalar_lea.vmem %s1, 112
    %v548 = vld [vmem:[%s547] sm:$0xf]
    %v549 = vunpack.c.l.bf16 %v548
    %v550 = vunpack.c.h.bf16 %v548
    %v551 = vlaneseq
    %v552 = vshrl.u32 %v551, 7
    %v553 = vadd.s32 %v552, 16
    %vm554 = vcmp.lt.s32.totalorder %v553, 49
    %v555 = vsel %vm554, %v549, %v9
    %v556 = vlaneseq
    %v557 = vand.u32 %v556, 127
    %vm559 = vcmp.lt.s32.totalorder %v557, 1728
    %v560 = vsel %vm559, %v555, %v9
    %s561 = scalar_lea.vmem [#allocation7], 112
    %v562 = vpack.c.bf16 0.0, %v560
    %s564 = ssub.s32 16, 1
    %565 = vst [vmem:[%s561] sm:%s564] %v562
    %s566 = scalar_lea.vmem %s1, 116
    %v567 = vld [vmem:[%s566] sm:$0xf]
    %v568 = vunpack.c.l.bf16 %v567
    %v569 = vunpack.c.h.bf16 %v567
    %v570 = vlaneseq
    %v571 = vshrl.u32 %v570, 7
    %v572 = vadd.s32 %v571, 16
    %vm573 = vcmp.lt.s32.totalorder %v572, 49
    %v574 = vsel %vm573, %v568, %v9
    %v575 = vlaneseq
    %v576 = vand.u32 %v575, 127
    %v577 = vadd.s32 %v576, 128
    %vm578 = vcmp.lt.s32.totalorder %v577, 1728
    %v579 = vsel %vm578, %v574, %v9
    %s580 = scalar_lea.vmem [#allocation7], 116
    %v581 = vpack.c.bf16 0.0, %v579
    %s583 = ssub.s32 16, 1
    %584 = vst [vmem:[%s580] sm:%s583] %v581
    %s585 = scalar_lea.vmem %s1, 120
    %v586 = vld [vmem:[%s585] sm:$0xf]
    %v587 = vunpack.c.l.bf16 %v586
    %v588 = vunpack.c.h.bf16 %v586
    %v589 = vlaneseq
    %v590 = vshrl.u32 %v589, 7
    %v591 = vadd.s32 %v590, 16
    %vm592 = vcmp.lt.s32.totalorder %v591, 49
    %v593 = vsel %vm592, %v587, %v9
    %v594 = vlaneseq
    %v595 = vand.u32 %v594, 127
    %v596 = vadd.s32 %v595, 256
    %vm597 = vcmp.lt.s32.totalorder %v596, 1728
    %v598 = vsel %vm597, %v593, %v9
    %s599 = scalar_lea.vmem [#allocation7], 120
    %v600 = vpack.c.bf16 0.0, %v598
    %s602 = ssub.s32 16, 1
    %603 = vst [vmem:[%s599] sm:%s602] %v600
    %s604 = scalar_lea.vmem %s1, 124
    %v605 = vld [vmem:[%s604] sm:$0xf]
    %v606 = vunpack.c.l.bf16 %v605
    %v607 = vunpack.c.h.bf16 %v605
    %v608 = vlaneseq
    %v609 = vshrl.u32 %v608, 7
    %v610 = vadd.s32 %v609, 16
    %vm611 = vcmp.lt.s32.totalorder %v610, 49
    %v612 = vsel %vm611, %v606, %v9
    %v613 = vlaneseq
    %v614 = vand.u32 %v613, 127
    %v615 = vadd.s32 %v614, 384
    %vm616 = vcmp.lt.s32.totalorder %v615, 1728
    %v617 = vsel %vm616, %v612, %v9
    %s618 = scalar_lea.vmem [#allocation7], 124
    %v619 = vpack.c.bf16 0.0, %v617
    %s621 = ssub.s32 16, 1
    %622 = vst [vmem:[%s618] sm:%s621] %v619
    %s623 = scalar_lea.vmem %s1, 128
    %v624 = vld [vmem:[%s623] sm:$0xf]
    %v625 = vunpack.c.l.bf16 %v624
    %v626 = vunpack.c.h.bf16 %v624
    %v627 = vlaneseq
    %v628 = vshrl.u32 %v627, 7
    %v629 = vadd.s32 %v628, 16
    %vm630 = vcmp.lt.s32.totalorder %v629, 49
    %v631 = vsel %vm630, %v625, %v9
    %v632 = vlaneseq
    %v633 = vand.u32 %v632, 127
    %v634 = vadd.s32 %v633, 512
    %vm635 = vcmp.lt.s32.totalorder %v634, 1728
    %v636 = vsel %vm635, %v631, %v9
    %s637 = scalar_lea.vmem [#allocation7], 128
    %v638 = vpack.c.bf16 0.0, %v636
    %s640 = ssub.s32 16, 1
    %641 = vst [vmem:[%s637] sm:%s640] %v638
    %s642 = scalar_lea.vmem %s1, 132
    %v643 = vld [vmem:[%s642] sm:$0xf]
    %v644 = vunpack.c.l.bf16 %v643
    %v645 = vunpack.c.h.bf16 %v643
    %v646 = vlaneseq
    %v647 = vshrl.u32 %v646, 7
    %v648 = vadd.s32 %v647, 16
    %vm649 = vcmp.lt.s32.totalorder %v648, 49
    %v650 = vsel %vm649, %v644, %v9
    %v651 = vlaneseq
    %v652 = vand.u32 %v651, 127
    %v653 = vadd.s32 %v652, 640
    %vm654 = vcmp.lt.s32.totalorder %v653, 1728
    %v655 = vsel %vm654, %v650, %v9
    %s656 = scalar_lea.vmem [#allocation7], 132
    %v657 = vpack.c.bf16 0.0, %v655
    %s659 = ssub.s32 16, 1
    %660 = vst [vmem:[%s656] sm:%s659] %v657
    %s661 = scalar_lea.vmem %s1, 136
    %v662 = vld [vmem:[%s661] sm:$0xf]
    %v663 = vunpack.c.l.bf16 %v662
    %v664 = vunpack.c.h.bf16 %v662
    %v665 = vlaneseq
    %v666 = vshrl.u32 %v665, 7
    %v667 = vadd.s32 %v666, 16
    %vm668 = vcmp.lt.s32.totalorder %v667, 49
    %v669 = vsel %vm668, %v663, %v9
    %v670 = vlaneseq
    %v671 = vand.u32 %v670, 127
    %v672 = vadd.s32 %v671, 768
    %vm673 = vcmp.lt.s32.totalorder %v672, 1728
    %v674 = vsel %vm673, %v669, %v9
    %s675 = scalar_lea.vmem [#allocation7], 136
    %v676 = vpack.c.bf16 0.0, %v674
    %s678 = ssub.s32 16, 1
    %679 = vst [vmem:[%s675] sm:%s678] %v676
    %s680 = scalar_lea.vmem %s1, 140
    %v681 = vld [vmem:[%s680] sm:$0xf]
    %v682 = vunpack.c.l.bf16 %v681
    %v683 = vunpack.c.h.bf16 %v681
    %v684 = vlaneseq
    %v685 = vshrl.u32 %v684, 7
    %v686 = vadd.s32 %v685, 16
    %vm687 = vcmp.lt.s32.totalorder %v686, 49
    %v688 = vsel %vm687, %v682, %v9
    %v689 = vlaneseq
    %v690 = vand.u32 %v689, 127
    %v691 = vadd.s32 %v690, 896
    %vm692 = vcmp.lt.s32.totalorder %v691, 1728
    %v693 = vsel %vm692, %v688, %v9
    %s694 = scalar_lea.vmem [#allocation7], 140
    %v695 = vpack.c.bf16 0.0, %v693
    %s697 = ssub.s32 16, 1
    %698 = vst [vmem:[%s694] sm:%s697] %v695
    %s699 = scalar_lea.vmem %s1, 144
    %v700 = vld [vmem:[%s699] sm:$0xf]
    %v701 = vunpack.c.l.bf16 %v700
    %v702 = vunpack.c.h.bf16 %v700
    %v703 = vlaneseq
    %v704 = vshrl.u32 %v703, 7
    %v705 = vadd.s32 %v704, 16
    %vm706 = vcmp.lt.s32.totalorder %v705, 49
    %v707 = vsel %vm706, %v701, %v9
    %v708 = vlaneseq
    %v709 = vand.u32 %v708, 127
    %v710 = vadd.s32 %v709, 1024
    %vm711 = vcmp.lt.s32.totalorder %v710, 1728
    %v712 = vsel %vm711, %v707, %v9
    %s713 = scalar_lea.vmem [#allocation7], 144
    %v714 = vpack.c.bf16 0.0, %v712
    %s716 = ssub.s32 16, 1
    %717 = vst [vmem:[%s713] sm:%s716] %v714
    %s718 = scalar_lea.vmem %s1, 148
    %v719 = vld [vmem:[%s718] sm:$0xf]
    %v720 = vunpack.c.l.bf16 %v719
    %v721 = vunpack.c.h.bf16 %v719
    %v722 = vlaneseq
    %v723 = vshrl.u32 %v722, 7
    %v724 = vadd.s32 %v723, 16
    %vm725 = vcmp.lt.s32.totalorder %v724, 49
    %v726 = vsel %vm725, %v720, %v9
    %v727 = vlaneseq
    %v728 = vand.u32 %v727, 127
    %v729 = vadd.s32 %v728, 1152
    %vm730 = vcmp.lt.s32.totalorder %v729, 1728
    %v731 = vsel %vm730, %v726, %v9
    %s732 = scalar_lea.vmem [#allocation7], 148
    %v733 = vpack.c.bf16 0.0, %v731
    %s735 = ssub.s32 16, 1
    %736 = vst [vmem:[%s732] sm:%s735] %v733
    %s737 = scalar_lea.vmem %s1, 152
    %v738 = vld [vmem:[%s737] sm:$0xf]
    %v739 = vunpack.c.l.bf16 %v738
    %v740 = vunpack.c.h.bf16 %v738
    %v741 = vlaneseq
    %v742 = vshrl.u32 %v741, 7
    %v743 = vadd.s32 %v742, 16
    %vm744 = vcmp.lt.s32.totalorder %v743, 49
    %v745 = vsel %vm744, %v739, %v9
    %v746 = vlaneseq
    %v747 = vand.u32 %v746, 127
    %v748 = vadd.s32 %v747, 1280
    %vm749 = vcmp.lt.s32.totalorder %v748, 1728
    %v750 = vsel %vm749, %v745, %v9
    %s751 = scalar_lea.vmem [#allocation7], 152
    %v752 = vpack.c.bf16 0.0, %v750
    %s754 = ssub.s32 16, 1
    %755 = vst [vmem:[%s751] sm:%s754] %v752
    %s756 = scalar_lea.vmem %s1, 156
    %v757 = vld [vmem:[%s756] sm:$0xf]
    %v758 = vunpack.c.l.bf16 %v757
    %v759 = vunpack.c.h.bf16 %v757
    %v760 = vlaneseq
    %v761 = vshrl.u32 %v760, 7
    %v762 = vadd.s32 %v761, 16
    %vm763 = vcmp.lt.s32.totalorder %v762, 49
    %v764 = vsel %vm763, %v758, %v9
    %v765 = vlaneseq
    %v766 = vand.u32 %v765, 127
    %v767 = vadd.s32 %v766, 1408
    %vm768 = vcmp.lt.s32.totalorder %v767, 1728
    %v769 = vsel %vm768, %v764, %v9
    %s770 = scalar_lea.vmem [#allocation7], 156
    %v771 = vpack.c.bf16 0.0, %v769
    %s773 = ssub.s32 16, 1
    %774 = vst [vmem:[%s770] sm:%s773] %v771
    %s775 = scalar_lea.vmem %s1, 160
    %v776 = vld [vmem:[%s775] sm:$0xf]
    %v777 = vunpack.c.l.bf16 %v776
    %v778 = vunpack.c.h.bf16 %v776
    %v779 = vlaneseq
    %v780 = vshrl.u32 %v779, 7
    %v781 = vadd.s32 %v780, 16
    %vm782 = vcmp.lt.s32.totalorder %v781, 49
    %v783 = vsel %vm782, %v777, %v9
    %v784 = vlaneseq
    %v785 = vand.u32 %v784, 127
    %v786 = vadd.s32 %v785, 1536
    %vm787 = vcmp.lt.s32.totalorder %v786, 1728
    %v788 = vsel %vm787, %v783, %v9
    %s789 = scalar_lea.vmem [#allocation7], 160
    %v790 = vpack.c.bf16 0.0, %v788
    %s792 = ssub.s32 16, 1
    %793 = vst [vmem:[%s789] sm:%s792] %v790
    %s794 = scalar_lea.vmem %s1, 164
    %v795 = vld [vmem:[%s794] sm:$0xf]
    %v796 = vunpack.c.l.bf16 %v795
    %v797 = vunpack.c.h.bf16 %v795
    %v798 = vlaneseq
    %v799 = vshrl.u32 %v798, 7
    %v800 = vadd.s32 %v799, 16
    %vm801 = vcmp.lt.s32.totalorder %v800, 49
    %v802 = vsel %vm801, %v796, %v9
    %v803 = vlaneseq
    %v804 = vand.u32 %v803, 127
    %v805 = vadd.s32 %v804, 1664
    %vm806 = vcmp.lt.s32.totalorder %v805, 1728
    %v807 = vsel %vm806, %v802, %v9
    %s808 = scalar_lea.vmem [#allocation7], 164
    %v809 = vpack.c.bf16 0.0, %v807
    %s811 = ssub.s32 16, 1
    %812 = vst [vmem:[%s808] sm:%s811] %v809
    %s813 = scalar_lea.vmem %s1, 168
    %v814 = vld [vmem:[%s813] sm:$0xf]
    %v815 = vunpack.c.l.bf16 %v814
    %v816 = vunpack.c.h.bf16 %v814
    %v817 = vlaneseq
    %v818 = vshrl.u32 %v817, 7
    %v819 = vadd.s32 %v818, 24
    %vm820 = vcmp.lt.s32.totalorder %v819, 49
    %v821 = vsel %vm820, %v815, %v9
    %v822 = vlaneseq
    %v823 = vand.u32 %v822, 127
    %vm825 = vcmp.lt.s32.totalorder %v823, 1728
    %v826 = vsel %vm825, %v821, %v9
    %s827 = scalar_lea.vmem [#allocation7], 168
    %v828 = vpack.c.bf16 0.0, %v826
    %s830 = ssub.s32 16, 1
    %831 = vst [vmem:[%s827] sm:%s830] %v828
    %s832 = scalar_lea.vmem %s1, 172
    %v833 = vld [vmem:[%s832] sm:$0xf]
    %v834 = vunpack.c.l.bf16 %v833
    %v835 = vunpack.c.h.bf16 %v833
    %v836 = vlaneseq
    %v837 = vshrl.u32 %v836, 7
    %v838 = vadd.s32 %v837, 24
    %vm839 = vcmp.lt.s32.totalorder %v838, 49
    %v840 = vsel %vm839, %v834, %v9
    %v841 = vlaneseq
    %v842 = vand.u32 %v841, 127
    %v843 = vadd.s32 %v842, 128
    %vm844 = vcmp.lt.s32.totalorder %v843, 1728
    %v845 = vsel %vm844, %v840, %v9
    %s846 = scalar_lea.vmem [#allocation7], 172
    %v847 = vpack.c.bf16 0.0, %v845
    %s849 = ssub.s32 16, 1
    %850 = vst [vmem:[%s846] sm:%s849] %v847
    %s851 = scalar_lea.vmem %s1, 176
    %v852 = vld [vmem:[%s851] sm:$0xf]
    %v853 = vunpack.c.l.bf16 %v852
    %v854 = vunpack.c.h.bf16 %v852
    %v855 = vlaneseq
    %v856 = vshrl.u32 %v855, 7
    %v857 = vadd.s32 %v856, 24
    %vm858 = vcmp.lt.s32.totalorder %v857, 49
    %v859 = vsel %vm858, %v853, %v9
    %v860 = vlaneseq
    %v861 = vand.u32 %v860, 127
    %v862 = vadd.s32 %v861, 256
    %vm863 = vcmp.lt.s32.totalorder %v862, 1728
    %v864 = vsel %vm863, %v859, %v9
    %s865 = scalar_lea.vmem [#allocation7], 176
    %v866 = vpack.c.bf16 0.0, %v864
    %s868 = ssub.s32 16, 1
    %869 = vst [vmem:[%s865] sm:%s868] %v866
    %s870 = scalar_lea.vmem %s1, 180
    %v871 = vld [vmem:[%s870] sm:$0xf]
    %v872 = vunpack.c.l.bf16 %v871
    %v873 = vunpack.c.h.bf16 %v871
    %v874 = vlaneseq
    %v875 = vshrl.u32 %v874, 7
    %v876 = vadd.s32 %v875, 24
    %vm877 = vcmp.lt.s32.totalorder %v876, 49
    %v878 = vsel %vm877, %v872, %v9
    %v879 = vlaneseq
    %v880 = vand.u32 %v879, 127
    %v881 = vadd.s32 %v880, 384
    %vm882 = vcmp.lt.s32.totalorder %v881, 1728
    %v883 = vsel %vm882, %v878, %v9
    %s884 = scalar_lea.vmem [#allocation7], 180
    %v885 = vpack.c.bf16 0.0, %v883
    %s887 = ssub.s32 16, 1
    %888 = vst [vmem:[%s884] sm:%s887] %v885
    %s889 = scalar_lea.vmem %s1, 184
    %v890 = vld [vmem:[%s889] sm:$0xf]
    %v891 = vunpack.c.l.bf16 %v890
    %v892 = vunpack.c.h.bf16 %v890
    %v893 = vlaneseq
    %v894 = vshrl.u32 %v893, 7
    %v895 = vadd.s32 %v894, 24
    %vm896 = vcmp.lt.s32.totalorder %v895, 49
    %v897 = vsel %vm896, %v891, %v9
    %v898 = vlaneseq
    %v899 = vand.u32 %v898, 127
    %v900 = vadd.s32 %v899, 512
    %vm901 = vcmp.lt.s32.totalorder %v900, 1728
    %v902 = vsel %vm901, %v897, %v9
    %s903 = scalar_lea.vmem [#allocation7], 184
    %v904 = vpack.c.bf16 0.0, %v902
    %s906 = ssub.s32 16, 1
    %907 = vst [vmem:[%s903] sm:%s906] %v904
    %s908 = scalar_lea.vmem %s1, 188
    %v909 = vld [vmem:[%s908] sm:$0xf]
    %v910 = vunpack.c.l.bf16 %v909
    %v911 = vunpack.c.h.bf16 %v909
    %v912 = vlaneseq
    %v913 = vshrl.u32 %v912, 7
    %v914 = vadd.s32 %v913, 24
    %vm915 = vcmp.lt.s32.totalorder %v914, 49
    %v916 = vsel %vm915, %v910, %v9
    %v917 = vlaneseq
    %v918 = vand.u32 %v917, 127
    %v919 = vadd.s32 %v918, 640
    %vm920 = vcmp.lt.s32.totalorder %v919, 1728
    %v921 = vsel %vm920, %v916, %v9
    %s922 = scalar_lea.vmem [#allocation7], 188
    %v923 = vpack.c.bf16 0.0, %v921
    %s925 = ssub.s32 16, 1
    %926 = vst [vmem:[%s922] sm:%s925] %v923
    %s927 = scalar_lea.vmem %s1, 192
    %v928 = vld [vmem:[%s927] sm:$0xf]
    %v929 = vunpack.c.l.bf16 %v928
    %v930 = vunpack.c.h.bf16 %v928
    %v931 = vlaneseq
    %v932 = vshrl.u32 %v931, 7
    %v933 = vadd.s32 %v932, 24
    %vm934 = vcmp.lt.s32.totalorder %v933, 49
    %v935 = vsel %vm934, %v929, %v9
    %v936 = vlaneseq
    %v937 = vand.u32 %v936, 127
    %v938 = vadd.s32 %v937, 768
    %vm939 = vcmp.lt.s32.totalorder %v938, 1728
    %v940 = vsel %vm939, %v935, %v9
    %s941 = scalar_lea.vmem [#allocation7], 192
    %v942 = vpack.c.bf16 0.0, %v940
    %s944 = ssub.s32 16, 1
    %945 = vst [vmem:[%s941] sm:%s944] %v942
    %s946 = scalar_lea.vmem %s1, 196
    %v947 = vld [vmem:[%s946] sm:$0xf]
    %v948 = vunpack.c.l.bf16 %v947
    %v949 = vunpack.c.h.bf16 %v947
    %v950 = vlaneseq
    %v951 = vshrl.u32 %v950, 7
    %v952 = vadd.s32 %v951, 24
    %vm953 = vcmp.lt.s32.totalorder %v952, 49
    %v954 = vsel %vm953, %v948, %v9
    %v955 = vlaneseq
    %v956 = vand.u32 %v955, 127
    %v957 = vadd.s32 %v956, 896
    %vm958 = vcmp.lt.s32.totalorder %v957, 1728
    %v959 = vsel %vm958, %v954, %v9
    %s960 = scalar_lea.vmem [#allocation7], 196
    %v961 = vpack.c.bf16 0.0, %v959
    %s963 = ssub.s32 16, 1
    %964 = vst [vmem:[%s960] sm:%s963] %v961
    %s965 = scalar_lea.vmem %s1, 200
    %v966 = vld [vmem:[%s965] sm:$0xf]
    %v967 = vunpack.c.l.bf16 %v966
    %v968 = vunpack.c.h.bf16 %v966
    %v969 = vlaneseq
    %v970 = vshrl.u32 %v969, 7
    %v971 = vadd.s32 %v970, 24
    %vm972 = vcmp.lt.s32.totalorder %v971, 49
    %v973 = vsel %vm972, %v967, %v9
    %v974 = vlaneseq
    %v975 = vand.u32 %v974, 127
    %v976 = vadd.s32 %v975, 1024
    %vm977 = vcmp.lt.s32.totalorder %v976, 1728
    %v978 = vsel %vm977, %v973, %v9
    %s979 = scalar_lea.vmem [#allocation7], 200
    %v980 = vpack.c.bf16 0.0, %v978
    %s982 = ssub.s32 16, 1
    %983 = vst [vmem:[%s979] sm:%s982] %v980
    %s984 = scalar_lea.vmem %s1, 204
    %v985 = vld [vmem:[%s984] sm:$0xf]
    %v986 = vunpack.c.l.bf16 %v985
    %v987 = vunpack.c.h.bf16 %v985
    %v988 = vlaneseq
    %v989 = vshrl.u32 %v988, 7
    %v990 = vadd.s32 %v989, 24
    %vm991 = vcmp.lt.s32.totalorder %v990, 49
    %v992 = vsel %vm991, %v986, %v9
    %v993 = vlaneseq
    %v994 = vand.u32 %v993, 127
    %v995 = vadd.s32 %v994, 1152
    %vm996 = vcmp.lt.s32.totalorder %v995, 1728
    %v997 = vsel %vm996, %v992, %v9
    %s998 = scalar_lea.vmem [#allocation7], 204
    %v999 = vpack.c.bf16 0.0, %v997
    %s1001 = ssub.s32 16, 1
    %1002 = vst [vmem:[%s998] sm:%s1001] %v999
    %s1003 = scalar_lea.vmem %s1, 208
    %v1004 = vld [vmem:[%s1003] sm:$0xf]
    %v1005 = vunpack.c.l.bf16 %v1004
    %v1006 = vunpack.c.h.bf16 %v1004
    %v1007 = vlaneseq
    %v1008 = vshrl.u32 %v1007, 7
    %v1009 = vadd.s32 %v1008, 24
    %vm1010 = vcmp.lt.s32.totalorder %v1009, 49
    %v1011 = vsel %vm1010, %v1005, %v9
    %v1012 = vlaneseq
    %v1013 = vand.u32 %v1012, 127
    %v1014 = vadd.s32 %v1013, 1280
    %vm1015 = vcmp.lt.s32.totalorder %v1014, 1728
    %v1016 = vsel %vm1015, %v1011, %v9
    %s1017 = scalar_lea.vmem [#allocation7], 208
    %v1018 = vpack.c.bf16 0.0, %v1016
    %s1020 = ssub.s32 16, 1
    %1021 = vst [vmem:[%s1017] sm:%s1020] %v1018
    %s1022 = scalar_lea.vmem %s1, 212
    %v1023 = vld [vmem:[%s1022] sm:$0xf]
    %v1024 = vunpack.c.l.bf16 %v1023
    %v1025 = vunpack.c.h.bf16 %v1023
    %v1026 = vlaneseq
    %v1027 = vshrl.u32 %v1026, 7
    %v1028 = vadd.s32 %v1027, 24
    %vm1029 = vcmp.lt.s32.totalorder %v1028, 49
    %v1030 = vsel %vm1029, %v1024, %v9
    %v1031 = vlaneseq
    %v1032 = vand.u32 %v1031, 127
    %v1033 = vadd.s32 %v1032, 1408
    %vm1034 = vcmp.lt.s32.totalorder %v1033, 1728
    %v1035 = vsel %vm1034, %v1030, %v9
    %s1036 = scalar_lea.vmem [#allocation7], 212
    %v1037 = vpack.c.bf16 0.0, %v1035
    %s1039 = ssub.s32 16, 1
    %1040 = vst [vmem:[%s1036] sm:%s1039] %v1037
    %s1041 = scalar_lea.vmem %s1, 216
    %v1042 = vld [vmem:[%s1041] sm:$0xf]
    %v1043 = vunpack.c.l.bf16 %v1042
    %v1044 = vunpack.c.h.bf16 %v1042
    %v1045 = vlaneseq
    %v1046 = vshrl.u32 %v1045, 7
    %v1047 = vadd.s32 %v1046, 24
    %vm1048 = vcmp.lt.s32.totalorder %v1047, 49
    %v1049 = vsel %vm1048, %v1043, %v9
    %v1050 = vlaneseq
    %v1051 = vand.u32 %v1050, 127
    %v1052 = vadd.s32 %v1051, 1536
    %vm1053 = vcmp.lt.s32.totalorder %v1052, 1728
    %v1054 = vsel %vm1053, %v1049, %v9
    %s1055 = scalar_lea.vmem [#allocation7], 216
    %v1056 = vpack.c.bf16 0.0, %v1054
    %s1058 = ssub.s32 16, 1
    %1059 = vst [vmem:[%s1055] sm:%s1058] %v1056
    %s1060 = scalar_lea.vmem %s1, 220
    %v1061 = vld [vmem:[%s1060] sm:$0xf]
    %v1062 = vunpack.c.l.bf16 %v1061
    %v1063 = vunpack.c.h.bf16 %v1061
    %v1064 = vlaneseq
    %v1065 = vshrl.u32 %v1064, 7
    %v1066 = vadd.s32 %v1065, 24
    %vm1067 = vcmp.lt.s32.totalorder %v1066, 49
    %v1068 = vsel %vm1067, %v1062, %v9
    %v1069 = vlaneseq
    %v1070 = vand.u32 %v1069, 127
    %v1071 = vadd.s32 %v1070, 1664
    %vm1072 = vcmp.lt.s32.totalorder %v1071, 1728
    %v1073 = vsel %vm1072, %v1068, %v9
    %s1074 = scalar_lea.vmem [#allocation7], 220
    %v1075 = vpack.c.bf16 0.0, %v1073
    %s1077 = ssub.s32 16, 1
    %1078 = vst [vmem:[%s1074] sm:%s1077] %v1075
    %s1079 = scalar_lea.vmem %s1, 224
    %v1080 = vld [vmem:[%s1079] sm:$0xf]
    %v1081 = vunpack.c.l.bf16 %v1080
    %v1082 = vunpack.c.h.bf16 %v1080
    %v1083 = vlaneseq
    %v1084 = vshrl.u32 %v1083, 7
    %v1085 = vadd.s32 %v1084, 32
    %vm1086 = vcmp.lt.s32.totalorder %v1085, 49
    %v1087 = vsel %vm1086, %v1081, %v9
    %v1088 = vlaneseq
    %v1089 = vand.u32 %v1088, 127
    %vm1091 = vcmp.lt.s32.totalorder %v1089, 1728
    %v1092 = vsel %vm1091, %v1087, %v9
    %s1093 = scalar_lea.vmem [#allocation7], 224
    %v1094 = vpack.c.bf16 0.0, %v1092
    %s1096 = ssub.s32 16, 1
    %1097 = vst [vmem:[%s1093] sm:%s1096] %v1094
    %s1098 = scalar_lea.vmem %s1, 228
    %v1099 = vld [vmem:[%s1098] sm:$0xf]
    %v1100 = vunpack.c.l.bf16 %v1099
    %v1101 = vunpack.c.h.bf16 %v1099
    %v1102 = vlaneseq
    %v1103 = vshrl.u32 %v1102, 7
    %v1104 = vadd.s32 %v1103, 32
    %vm1105 = vcmp.lt.s32.totalorder %v1104, 49
    %v1106 = vsel %vm1105, %v1100, %v9
    %v1107 = vlaneseq
    %v1108 = vand.u32 %v1107, 127
    %v1109 = vadd.s32 %v1108, 128
    %vm1110 = vcmp.lt.s32.totalorder %v1109, 1728
    %v1111 = vsel %vm1110, %v1106, %v9
    %s1112 = scalar_lea.vmem [#allocation7], 228
    %v1113 = vpack.c.bf16 0.0, %v1111
    %s1115 = ssub.s32 16, 1
    %1116 = vst [vmem:[%s1112] sm:%s1115] %v1113
    %s1117 = scalar_lea.vmem %s1, 232
    %v1118 = vld [vmem:[%s1117] sm:$0xf]
    %v1119 = vunpack.c.l.bf16 %v1118
    %v1120 = vunpack.c.h.bf16 %v1118
    %v1121 = vlaneseq
    %v1122 = vshrl.u32 %v1121, 7
    %v1123 = vadd.s32 %v1122, 32
    %vm1124 = vcmp.lt.s32.totalorder %v1123, 49
    %v1125 = vsel %vm1124, %v1119, %v9
    %v1126 = vlaneseq
    %v1127 = vand.u32 %v1126, 127
    %v1128 = vadd.s32 %v1127, 256
    %vm1129 = vcmp.lt.s32.totalorder %v1128, 1728
    %v1130 = vsel %vm1129, %v1125, %v9
    %s1131 = scalar_lea.vmem [#allocation7], 232
    %v1132 = vpack.c.bf16 0.0, %v1130
    %s1134 = ssub.s32 16, 1
    %1135 = vst [vmem:[%s1131] sm:%s1134] %v1132
    %s1136 = scalar_lea.vmem %s1, 236
    %v1137 = vld [vmem:[%s1136] sm:$0xf]
    %v1138 = vunpack.c.l.bf16 %v1137
    %v1139 = vunpack.c.h.bf16 %v1137
    %v1140 = vlaneseq
    %v1141 = vshrl.u32 %v1140, 7
    %v1142 = vadd.s32 %v1141, 32
    %vm1143 = vcmp.lt.s32.totalorder %v1142, 49
    %v1144 = vsel %vm1143, %v1138, %v9
    %v1145 = vlaneseq
    %v1146 = vand.u32 %v1145, 127
    %v1147 = vadd.s32 %v1146, 384
    %vm1148 = vcmp.lt.s32.totalorder %v1147, 1728
    %v1149 = vsel %vm1148, %v1144, %v9
    %s1150 = scalar_lea.vmem [#allocation7], 236
    %v1151 = vpack.c.bf16 0.0, %v1149
    %s1153 = ssub.s32 16, 1
    %1154 = vst [vmem:[%s1150] sm:%s1153] %v1151
    %s1155 = scalar_lea.vmem %s1, 240
    %v1156 = vld [vmem:[%s1155] sm:$0xf]
    %v1157 = vunpack.c.l.bf16 %v1156
    %v1158 = vunpack.c.h.bf16 %v1156
    %v1159 = vlaneseq
    %v1160 = vshrl.u32 %v1159, 7
    %v1161 = vadd.s32 %v1160, 32
    %vm1162 = vcmp.lt.s32.totalorder %v1161, 49
    %v1163 = vsel %vm1162, %v1157, %v9
    %v1164 = vlaneseq
    %v1165 = vand.u32 %v1164, 127
    %v1166 = vadd.s32 %v1165, 512
    %vm1167 = vcmp.lt.s32.totalorder %v1166, 1728
    %v1168 = vsel %vm1167, %v1163, %v9
    %s1169 = scalar_lea.vmem [#allocation7], 240
    %v1170 = vpack.c.bf16 0.0, %v1168
    %s1172 = ssub.s32 16, 1
    %1173 = vst [vmem:[%s1169] sm:%s1172] %v1170
    %s1174 = scalar_lea.vmem %s1, 244
    %v1175 = vld [vmem:[%s1174] sm:$0xf]
    %v1176 = vunpack.c.l.bf16 %v1175
    %v1177 = vunpack.c.h.bf16 %v1175
    %v1178 = vlaneseq
    %v1179 = vshrl.u32 %v1178, 7
    %v1180 = vadd.s32 %v1179, 32
    %vm1181 = vcmp.lt.s32.totalorder %v1180, 49
    %v1182 = vsel %vm1181, %v1176, %v9
    %v1183 = vlaneseq
    %v1184 = vand.u32 %v1183, 127
    %v1185 = vadd.s32 %v1184, 640
    %vm1186 = vcmp.lt.s32.totalorder %v1185, 1728
    %v1187 = vsel %vm1186, %v1182, %v9
    %s1188 = scalar_lea.vmem [#allocation7], 244
    %v1189 = vpack.c.bf16 0.0, %v1187
    %s1191 = ssub.s32 16, 1
    %1192 = vst [vmem:[%s1188] sm:%s1191] %v1189
    %s1193 = scalar_lea.vmem %s1, 248
    %v1194 = vld [vmem:[%s1193] sm:$0xf]
    %v1195 = vunpack.c.l.bf16 %v1194
    %v1196 = vunpack.c.h.bf16 %v1194
    %v1197 = vlaneseq
    %v1198 = vshrl.u32 %v1197, 7
    %v1199 = vadd.s32 %v1198, 32
    %vm1200 = vcmp.lt.s32.totalorder %v1199, 49
    %v1201 = vsel %vm1200, %v1195, %v9
    %v1202 = vlaneseq
    %v1203 = vand.u32 %v1202, 127
    %v1204 = vadd.s32 %v1203, 768
    %vm1205 = vcmp.lt.s32.totalorder %v1204, 1728
    %v1206 = vsel %vm1205, %v1201, %v9
    %s1207 = scalar_lea.vmem [#allocation7], 248
    %v1208 = vpack.c.bf16 0.0, %v1206
    %s1210 = ssub.s32 16, 1
    %1211 = vst [vmem:[%s1207] sm:%s1210] %v1208
    %s1212 = scalar_lea.vmem %s1, 252
    %v1213 = vld [vmem:[%s1212] sm:$0xf]
    %v1214 = vunpack.c.l.bf16 %v1213
    %v1215 = vunpack.c.h.bf16 %v1213
    %v1216 = vlaneseq
    %v1217 = vshrl.u32 %v1216, 7
    %v1218 = vadd.s32 %v1217, 32
    %vm1219 = vcmp.lt.s32.totalorder %v1218, 49
    %v1220 = vsel %vm1219, %v1214, %v9
    %v1221 = vlaneseq
    %v1222 = vand.u32 %v1221, 127
    %v1223 = vadd.s32 %v1222, 896
    %vm1224 = vcmp.lt.s32.totalorder %v1223, 1728
    %v1225 = vsel %vm1224, %v1220, %v9
    %s1226 = scalar_lea.vmem [#allocation7], 252
    %v1227 = vpack.c.bf16 0.0, %v1225
    %s1229 = ssub.s32 16, 1
    %1230 = vst [vmem:[%s1226] sm:%s1229] %v1227
    %s1231 = scalar_lea.vmem %s1, 256
    %v1232 = vld [vmem:[%s1231] sm:$0xf]
    %v1233 = vunpack.c.l.bf16 %v1232
    %v1234 = vunpack.c.h.bf16 %v1232
    %v1235 = vlaneseq
    %v1236 = vshrl.u32 %v1235, 7
    %v1237 = vadd.s32 %v1236, 32
    %vm1238 = vcmp.lt.s32.totalorder %v1237, 49
    %v1239 = vsel %vm1238, %v1233, %v9
    %v1240 = vlaneseq
    %v1241 = vand.u32 %v1240, 127
    %v1242 = vadd.s32 %v1241, 1024
    %vm1243 = vcmp.lt.s32.totalorder %v1242, 1728
    %v1244 = vsel %vm1243, %v1239, %v9
    %s1245 = scalar_lea.vmem [#allocation7], 256
    %v1246 = vpack.c.bf16 0.0, %v1244
    %s1248 = ssub.s32 16, 1
    %1249 = vst [vmem:[%s1245] sm:%s1248] %v1246
    %s1250 = scalar_lea.vmem %s1, 260
    %v1251 = vld [vmem:[%s1250] sm:$0xf]
    %v1252 = vunpack.c.l.bf16 %v1251
    %v1253 = vunpack.c.h.bf16 %v1251
    %v1254 = vlaneseq
    %v1255 = vshrl.u32 %v1254, 7
    %v1256 = vadd.s32 %v1255, 32
    %vm1257 = vcmp.lt.s32.totalorder %v1256, 49
    %v1258 = vsel %vm1257, %v1252, %v9
    %v1259 = vlaneseq
    %v1260 = vand.u32 %v1259, 127
    %v1261 = vadd.s32 %v1260, 1152
    %vm1262 = vcmp.lt.s32.totalorder %v1261, 1728
    %v1263 = vsel %vm1262, %v1258, %v9
    %s1264 = scalar_lea.vmem [#allocation7], 260
    %v1265 = vpack.c.bf16 0.0, %v1263
    %s1267 = ssub.s32 16, 1
    %1268 = vst [vmem:[%s1264] sm:%s1267] %v1265
    %s1269 = scalar_lea.vmem %s1, 264
    %v1270 = vld [vmem:[%s1269] sm:$0xf]
    %v1271 = vunpack.c.l.bf16 %v1270
    %v1272 = vunpack.c.h.bf16 %v1270
    %v1273 = vlaneseq
    %v1274 = vshrl.u32 %v1273, 7
    %v1275 = vadd.s32 %v1274, 32
    %vm1276 = vcmp.lt.s32.totalorder %v1275, 49
    %v1277 = vsel %vm1276, %v1271, %v9
    %v1278 = vlaneseq
    %v1279 = vand.u32 %v1278, 127
    %v1280 = vadd.s32 %v1279, 1280
    %vm1281 = vcmp.lt.s32.totalorder %v1280, 1728
    %v1282 = vsel %vm1281, %v1277, %v9
    %s1283 = scalar_lea.vmem [#allocation7], 264
    %v1284 = vpack.c.bf16 0.0, %v1282
    %s1286 = ssub.s32 16, 1
    %1287 = vst [vmem:[%s1283] sm:%s1286] %v1284
    %s1288 = scalar_lea.vmem %s1, 268
    %v1289 = vld [vmem:[%s1288] sm:$0xf]
    %v1290 = vunpack.c.l.bf16 %v1289
    %v1291 = vunpack.c.h.bf16 %v1289
    %v1292 = vlaneseq
    %v1293 = vshrl.u32 %v1292, 7
    %v1294 = vadd.s32 %v1293, 32
    %vm1295 = vcmp.lt.s32.totalorder %v1294, 49
    %v1296 = vsel %vm1295, %v1290, %v9
    %v1297 = vlaneseq
    %v1298 = vand.u32 %v1297, 127
    %v1299 = vadd.s32 %v1298, 1408
    %vm1300 = vcmp.lt.s32.totalorder %v1299, 1728
    %v1301 = vsel %vm1300, %v1296, %v9
    %s1302 = scalar_lea.vmem [#allocation7], 268
    %v1303 = vpack.c.bf16 0.0, %v1301
    %s1305 = ssub.s32 16, 1
    %1306 = vst [vmem:[%s1302] sm:%s1305] %v1303
    %s1307 = scalar_lea.vmem %s1, 272
    %v1308 = vld [vmem:[%s1307] sm:$0xf]
    %v1309 = vunpack.c.l.bf16 %v1308
    %v1310 = vunpack.c.h.bf16 %v1308
    %v1311 = vlaneseq
    %v1312 = vshrl.u32 %v1311, 7
    %v1313 = vadd.s32 %v1312, 32
    %vm1314 = vcmp.lt.s32.totalorder %v1313, 49
    %v1315 = vsel %vm1314, %v1309, %v9
    %v1316 = vlaneseq
    %v1317 = vand.u32 %v1316, 127
    %v1318 = vadd.s32 %v1317, 1536
    %vm1319 = vcmp.lt.s32.totalorder %v1318, 1728
    %v1320 = vsel %vm1319, %v1315, %v9
    %s1321 = scalar_lea.vmem [#allocation7], 272
    %v1322 = vpack.c.bf16 0.0, %v1320
    %s1324 = ssub.s32 16, 1
    %1325 = vst [vmem:[%s1321] sm:%s1324] %v1322
    %s1326 = scalar_lea.vmem %s1, 276
    %v1327 = vld [vmem:[%s1326] sm:$0xf]
    %v1328 = vunpack.c.l.bf16 %v1327
    %v1329 = vunpack.c.h.bf16 %v1327
    %v1330 = vlaneseq
    %v1331 = vshrl.u32 %v1330, 7
    %v1332 = vadd.s32 %v1331, 32
    %vm1333 = vcmp.lt.s32.totalorder %v1332, 49
    %v1334 = vsel %vm1333, %v1328, %v9
    %v1335 = vlaneseq
    %v1336 = vand.u32 %v1335, 127
    %v1337 = vadd.s32 %v1336, 1664
    %vm1338 = vcmp.lt.s32.totalorder %v1337, 1728
    %v1339 = vsel %vm1338, %v1334, %v9
    %s1340 = scalar_lea.vmem [#allocation7], 276
    %v1341 = vpack.c.bf16 0.0, %v1339
    %s1343 = ssub.s32 16, 1
    %1344 = vst [vmem:[%s1340] sm:%s1343] %v1341
    %s1345 = scalar_lea.vmem %s1, 280
    %s1347 = sor.u32 255, 127
    %s1348 = sand.u32 %s1347, 85
    %s1349 = sshrl.u32 %s1348, 1
    %s1350 = sor.u32 %s1348, %s1349
    %s1351 = sand.u32 51, %s1350
    %s1352 = sshrl.u32 %s1351, 2
    %s1353 = sor.u32 %s1351, %s1352
    %s1354 = sand.u32 15, %s1353
    %v1355 = vld [vmem:[%s1345] sm:%s1354]
    %v1356 = vunpack.c.l.bf16 %v1355
    %v1357 = vunpack.c.h.bf16 %v1355
    %v1358 = vlaneseq
    %v1359 = vshrl.u32 %v1358, 7
    %v1360 = vadd.s32 %v1359, 40
    %vm1361 = vcmp.lt.s32.totalorder %v1360, 49
    %v1362 = vsel %vm1361, %v1356, %v9
    %v1363 = vlaneseq
    %v1364 = vand.u32 %v1363, 127
    %vm1366 = vcmp.lt.s32.totalorder %v1364, 1728
    %v1367 = vsel %vm1366, %v1362, %v9
    %s1368 = scalar_lea.vmem [#allocation7], 280
    %v1369 = vpack.c.bf16 0.0, %v1367
    %s1371 = ssub.s32 16, 1
    %1372 = vst [vmem:[%s1368] sm:%s1371] %v1369
    %s1373 = scalar_lea.vmem %s1, 284
    %s1375 = sor.u32 255, 127
    %s1376 = sand.u32 %s1375, 85
    %s1377 = sshrl.u32 %s1376, 1
    %s1378 = sor.u32 %s1376, %s1377
    %s1379 = sand.u32 51, %s1378
    %s1380 = sshrl.u32 %s1379, 2
    %s1381 = sor.u32 %s1379, %s1380
    %s1382 = sand.u32 15, %s1381
    %v1383 = vld [vmem:[%s1373] sm:%s1382]
    %v1384 = vunpack.c.l.bf16 %v1383
    %v1385 = vunpack.c.h.bf16 %v1383
    %v1386 = vlaneseq
    %v1387 = vshrl.u32 %v1386, 7
    %v1388 = vadd.s32 %v1387, 40
    %vm1389 = vcmp.lt.s32.totalorder %v1388, 49
    %v1390 = vsel %vm1389, %v1384, %v9
    %v1391 = vlaneseq
    %v1392 = vand.u32 %v1391, 127
    %v1393 = vadd.s32 %v1392, 128
    %vm1394 = vcmp.lt.s32.totalorder %v1393, 1728
    %v1395 = vsel %vm1394, %v1390, %v9
    %s1396 = scalar_lea.vmem [#allocation7], 284
    %v1397 = vpack.c.bf16 0.0, %v1395
    %s1399 = ssub.s32 16, 1
    %1400 = vst [vmem:[%s1396] sm:%s1399] %v1397
    %s1401 = scalar_lea.vmem %s1, 288
    %s1403 = sor.u32 255, 127
    %s1404 = sand.u32 %s1403, 85
    %s1405 = sshrl.u32 %s1404, 1
    %s1406 = sor.u32 %s1404, %s1405
    %s1407 = sand.u32 51, %s1406
    %s1408 = sshrl.u32 %s1407, 2
    %s1409 = sor.u32 %s1407, %s1408
    %s1410 = sand.u32 15, %s1409
    %v1411 = vld [vmem:[%s1401] sm:%s1410]
    %v1412 = vunpack.c.l.bf16 %v1411
    %v1413 = vunpack.c.h.bf16 %v1411
    %v1414 = vlaneseq
    %v1415 = vshrl.u32 %v1414, 7
    %v1416 = vadd.s32 %v1415, 40
    %vm1417 = vcmp.lt.s32.totalorder %v1416, 49
    %v1418 = vsel %vm1417, %v1412, %v9
    %v1419 = vlaneseq
    %v1420 = vand.u32 %v1419, 127
    %v1421 = vadd.s32 %v1420, 256
    %vm1422 = vcmp.lt.s32.totalorder %v1421, 1728
    %v1423 = vsel %vm1422, %v1418, %v9
    %s1424 = scalar_lea.vmem [#allocation7], 288
    %v1425 = vpack.c.bf16 0.0, %v1423
    %s1427 = ssub.s32 16, 1
    %1428 = vst [vmem:[%s1424] sm:%s1427] %v1425
    %s1429 = scalar_lea.vmem %s1, 292
    %s1431 = sor.u32 255, 127
    %s1432 = sand.u32 %s1431, 85
    %s1433 = sshrl.u32 %s1432, 1
    %s1434 = sor.u32 %s1432, %s1433
    %s1435 = sand.u32 51, %s1434
    %s1436 = sshrl.u32 %s1435, 2
    %s1437 = sor.u32 %s1435, %s1436
    %s1438 = sand.u32 15, %s1437
    %v1439 = vld [vmem:[%s1429] sm:%s1438]
    %v1440 = vunpack.c.l.bf16 %v1439
    %v1441 = vunpack.c.h.bf16 %v1439
    %v1442 = vlaneseq
    %v1443 = vshrl.u32 %v1442, 7
    %v1444 = vadd.s32 %v1443, 40
    %vm1445 = vcmp.lt.s32.totalorder %v1444, 49
    %v1446 = vsel %vm1445, %v1440, %v9
    %v1447 = vlaneseq
    %v1448 = vand.u32 %v1447, 127
    %v1449 = vadd.s32 %v1448, 384
    %vm1450 = vcmp.lt.s32.totalorder %v1449, 1728
    %v1451 = vsel %vm1450, %v1446, %v9
    %s1452 = scalar_lea.vmem [#allocation7], 292
    %v1453 = vpack.c.bf16 0.0, %v1451
    %s1455 = ssub.s32 16, 1
    %1456 = vst [vmem:[%s1452] sm:%s1455] %v1453
    %s1457 = scalar_lea.vmem %s1, 296
    %s1459 = sor.u32 255, 127
    %s1460 = sand.u32 %s1459, 85
    %s1461 = sshrl.u32 %s1460, 1
    %s1462 = sor.u32 %s1460, %s1461
    %s1463 = sand.u32 51, %s1462
    %s1464 = sshrl.u32 %s1463, 2
    %s1465 = sor.u32 %s1463, %s1464
    %s1466 = sand.u32 15, %s1465
    %v1467 = vld [vmem:[%s1457] sm:%s1466]
    %v1468 = vunpack.c.l.bf16 %v1467
    %v1469 = vunpack.c.h.bf16 %v1467
    %v1470 = vlaneseq
    %v1471 = vshrl.u32 %v1470, 7
    %v1472 = vadd.s32 %v1471, 40
    %vm1473 = vcmp.lt.s32.totalorder %v1472, 49
    %v1474 = vsel %vm1473, %v1468, %v9
    %v1475 = vlaneseq
    %v1476 = vand.u32 %v1475, 127
    %v1477 = vadd.s32 %v1476, 512
    %vm1478 = vcmp.lt.s32.totalorder %v1477, 1728
    %v1479 = vsel %vm1478, %v1474, %v9
    %s1480 = scalar_lea.vmem [#allocation7], 296
    %v1481 = vpack.c.bf16 0.0, %v1479
    %s1483 = ssub.s32 16, 1
    %1484 = vst [vmem:[%s1480] sm:%s1483] %v1481
    %s1485 = scalar_lea.vmem %s1, 300
    %s1487 = sor.u32 255, 127
    %s1488 = sand.u32 %s1487, 85
    %s1489 = sshrl.u32 %s1488, 1
    %s1490 = sor.u32 %s1488, %s1489
    %s1491 = sand.u32 51, %s1490
    %s1492 = sshrl.u32 %s1491, 2
    %s1493 = sor.u32 %s1491, %s1492
    %s1494 = sand.u32 15, %s1493
    %v1495 = vld [vmem:[%s1485] sm:%s1494]
    %v1496 = vunpack.c.l.bf16 %v1495
    %v1497 = vunpack.c.h.bf16 %v1495
    %v1498 = vlaneseq
    %v1499 = vshrl.u32 %v1498, 7
    %v1500 = vadd.s32 %v1499, 40
    %vm1501 = vcmp.lt.s32.totalorder %v1500, 49
    %v1502 = vsel %vm1501, %v1496, %v9
    %v1503 = vlaneseq
    %v1504 = vand.u32 %v1503, 127
    %v1505 = vadd.s32 %v1504, 640
    %vm1506 = vcmp.lt.s32.totalorder %v1505, 1728
    %v1507 = vsel %vm1506, %v1502, %v9
    %s1508 = scalar_lea.vmem [#allocation7], 300
    %v1509 = vpack.c.bf16 0.0, %v1507
    %s1511 = ssub.s32 16, 1
    %1512 = vst [vmem:[%s1508] sm:%s1511] %v1509
    %s1513 = scalar_lea.vmem %s1, 304
    %s1515 = sor.u32 255, 127
    %s1516 = sand.u32 %s1515, 85
    %s1517 = sshrl.u32 %s1516, 1
    %s1518 = sor.u32 %s1516, %s1517
    %s1519 = sand.u32 51, %s1518
    %s1520 = sshrl.u32 %s1519, 2
    %s1521 = sor.u32 %s1519, %s1520
    %s1522 = sand.u32 15, %s1521
    %v1523 = vld [vmem:[%s1513] sm:%s1522]
    %v1524 = vunpack.c.l.bf16 %v1523
    %v1525 = vunpack.c.h.bf16 %v1523
    %v1526 = vlaneseq
    %v1527 = vshrl.u32 %v1526, 7
    %v1528 = vadd.s32 %v1527, 40
    %vm1529 = vcmp.lt.s32.totalorder %v1528, 49
    %v1530 = vsel %vm1529, %v1524, %v9
    %v1531 = vlaneseq
    %v1532 = vand.u32 %v1531, 127
    %v1533 = vadd.s32 %v1532, 768
    %vm1534 = vcmp.lt.s32.totalorder %v1533, 1728
    %v1535 = vsel %vm1534, %v1530, %v9
    %s1536 = scalar_lea.vmem [#allocation7], 304
    %v1537 = vpack.c.bf16 0.0, %v1535
    %s1539 = ssub.s32 16, 1
    %1540 = vst [vmem:[%s1536] sm:%s1539] %v1537
    %s1541 = scalar_lea.vmem %s1, 308
    %s1543 = sor.u32 255, 127
    %s1544 = sand.u32 %s1543, 85
    %s1545 = sshrl.u32 %s1544, 1
    %s1546 = sor.u32 %s1544, %s1545
    %s1547 = sand.u32 51, %s1546
    %s1548 = sshrl.u32 %s1547, 2
    %s1549 = sor.u32 %s1547, %s1548
    %s1550 = sand.u32 15, %s1549
    %v1551 = vld [vmem:[%s1541] sm:%s1550]
    %v1552 = vunpack.c.l.bf16 %v1551
    %v1553 = vunpack.c.h.bf16 %v1551
    %v1554 = vlaneseq
    %v1555 = vshrl.u32 %v1554, 7
    %v1556 = vadd.s32 %v1555, 40
    %vm1557 = vcmp.lt.s32.totalorder %v1556, 49
    %v1558 = vsel %vm1557, %v1552, %v9
    %v1559 = vlaneseq
    %v1560 = vand.u32 %v1559, 127
    %v1561 = vadd.s32 %v1560, 896
    %vm1562 = vcmp.lt.s32.totalorder %v1561, 1728
    %v1563 = vsel %vm1562, %v1558, %v9
    %s1564 = scalar_lea.vmem [#allocation7], 308
    %v1565 = vpack.c.bf16 0.0, %v1563
    %s1567 = ssub.s32 16, 1
    %1568 = vst [vmem:[%s1564] sm:%s1567] %v1565
    %s1569 = scalar_lea.vmem %s1, 312
    %s1571 = sor.u32 255, 127
    %s1572 = sand.u32 %s1571, 85
    %s1573 = sshrl.u32 %s1572, 1
    %s1574 = sor.u32 %s1572, %s1573
    %s1575 = sand.u32 51, %s1574
    %s1576 = sshrl.u32 %s1575, 2
    %s1577 = sor.u32 %s1575, %s1576
    %s1578 = sand.u32 15, %s1577
    %v1579 = vld [vmem:[%s1569] sm:%s1578]
    %v1580 = vunpack.c.l.bf16 %v1579
    %v1581 = vunpack.c.h.bf16 %v1579
    %v1582 = vlaneseq
    %v1583 = vshrl.u32 %v1582, 7
    %v1584 = vadd.s32 %v1583, 40
    %vm1585 = vcmp.lt.s32.totalorder %v1584, 49
    %v1586 = vsel %vm1585, %v1580, %v9
    %v1587 = vlaneseq
    %v1588 = vand.u32 %v1587, 127
    %v1589 = vadd.s32 %v1588, 1024
    %vm1590 = vcmp.lt.s32.totalorder %v1589, 1728
    %v1591 = vsel %vm1590, %v1586, %v9
    %s1592 = scalar_lea.vmem [#allocation7], 312
    %v1593 = vpack.c.bf16 0.0, %v1591
    %s1595 = ssub.s32 16, 1
    %1596 = vst [vmem:[%s1592] sm:%s1595] %v1593
    %s1597 = scalar_lea.vmem %s1, 316
    %s1599 = sor.u32 255, 127
    %s1600 = sand.u32 %s1599, 85
    %s1601 = sshrl.u32 %s1600, 1
    %s1602 = sor.u32 %s1600, %s1601
    %s1603 = sand.u32 51, %s1602
    %s1604 = sshrl.u32 %s1603, 2
    %s1605 = sor.u32 %s1603, %s1604
    %s1606 = sand.u32 15, %s1605
    %v1607 = vld [vmem:[%s1597] sm:%s1606]
    %v1608 = vunpack.c.l.bf16 %v1607
    %v1609 = vunpack.c.h.bf16 %v1607
    %v1610 = vlaneseq
    %v1611 = vshrl.u32 %v1610, 7
    %v1612 = vadd.s32 %v1611, 40
    %vm1613 = vcmp.lt.s32.totalorder %v1612, 49
    %v1614 = vsel %vm1613, %v1608, %v9
    %v1615 = vlaneseq
    %v1616 = vand.u32 %v1615, 127
    %v1617 = vadd.s32 %v1616, 1152
    %vm1618 = vcmp.lt.s32.totalorder %v1617, 1728
    %v1619 = vsel %vm1618, %v1614, %v9
    %s1620 = scalar_lea.vmem [#allocation7], 316
    %v1621 = vpack.c.bf16 0.0, %v1619
    %s1623 = ssub.s32 16, 1
    %1624 = vst [vmem:[%s1620] sm:%s1623] %v1621
    %s1625 = scalar_lea.vmem %s1, 320
    %s1627 = sor.u32 255, 127
    %s1628 = sand.u32 %s1627, 85
    %s1629 = sshrl.u32 %s1628, 1
    %s1630 = sor.u32 %s1628, %s1629
    %s1631 = sand.u32 51, %s1630
    %s1632 = sshrl.u32 %s1631, 2
    %s1633 = sor.u32 %s1631, %s1632
    %s1634 = sand.u32 15, %s1633
    %v1635 = vld [vmem:[%s1625] sm:%s1634]
    %v1636 = vunpack.c.l.bf16 %v1635
    %v1637 = vunpack.c.h.bf16 %v1635
    %v1638 = vlaneseq
    %v1639 = vshrl.u32 %v1638, 7
    %v1640 = vadd.s32 %v1639, 40
    %vm1641 = vcmp.lt.s32.totalorder %v1640, 49
    %v1642 = vsel %vm1641, %v1636, %v9
    %v1643 = vlaneseq
    %v1644 = vand.u32 %v1643, 127
    %v1645 = vadd.s32 %v1644, 1280
    %vm1646 = vcmp.lt.s32.totalorder %v1645, 1728
    %v1647 = vsel %vm1646, %v1642, %v9
    %s1648 = scalar_lea.vmem [#allocation7], 320
    %v1649 = vpack.c.bf16 0.0, %v1647
    %s1651 = ssub.s32 16, 1
    %1652 = vst [vmem:[%s1648] sm:%s1651] %v1649
    %s1653 = scalar_lea.vmem %s1, 324
    %s1655 = sor.u32 255, 127
    %s1656 = sand.u32 %s1655, 85
    %s1657 = sshrl.u32 %s1656, 1
    %s1658 = sor.u32 %s1656, %s1657
    %s1659 = sand.u32 51, %s1658
    %s1660 = sshrl.u32 %s1659, 2
    %s1661 = sor.u32 %s1659, %s1660
    %s1662 = sand.u32 15, %s1661
    %v1663 = vld [vmem:[%s1653] sm:%s1662]
    %v1664 = vunpack.c.l.bf16 %v1663
    %v1665 = vunpack.c.h.bf16 %v1663
    %v1666 = vlaneseq
    %v1667 = vshrl.u32 %v1666, 7
    %v1668 = vadd.s32 %v1667, 40
    %vm1669 = vcmp.lt.s32.totalorder %v1668, 49
    %v1670 = vsel %vm1669, %v1664, %v9
    %v1671 = vlaneseq
    %v1672 = vand.u32 %v1671, 127
    %v1673 = vadd.s32 %v1672, 1408
    %vm1674 = vcmp.lt.s32.totalorder %v1673, 1728
    %v1675 = vsel %vm1674, %v1670, %v9
    %s1676 = scalar_lea.vmem [#allocation7], 324
    %v1677 = vpack.c.bf16 0.0, %v1675
    %s1679 = ssub.s32 16, 1
    %1680 = vst [vmem:[%s1676] sm:%s1679] %v1677
    %s1681 = scalar_lea.vmem %s1, 328
    %s1683 = sor.u32 255, 127
    %s1684 = sand.u32 %s1683, 85
    %s1685 = sshrl.u32 %s1684, 1
    %s1686 = sor.u32 %s1684, %s1685
    %s1687 = sand.u32 51, %s1686
    %s1688 = sshrl.u32 %s1687, 2
    %s1689 = sor.u32 %s1687, %s1688
    %s1690 = sand.u32 15, %s1689
    %v1691 = vld [vmem:[%s1681] sm:%s1690]
    %v1692 = vunpack.c.l.bf16 %v1691
    %v1693 = vunpack.c.h.bf16 %v1691
    %v1694 = vlaneseq
    %v1695 = vshrl.u32 %v1694, 7
    %v1696 = vadd.s32 %v1695, 40
    %vm1697 = vcmp.lt.s32.totalorder %v1696, 49
    %v1698 = vsel %vm1697, %v1692, %v9
    %v1699 = vlaneseq
    %v1700 = vand.u32 %v1699, 127
    %v1701 = vadd.s32 %v1700, 1536
    %vm1702 = vcmp.lt.s32.totalorder %v1701, 1728
    %v1703 = vsel %vm1702, %v1698, %v9
    %s1704 = scalar_lea.vmem [#allocation7], 328
    %v1705 = vpack.c.bf16 0.0, %v1703
    %s1707 = ssub.s32 16, 1
    %1708 = vst [vmem:[%s1704] sm:%s1707] %v1705
    %s1709 = scalar_lea.vmem %s1, 332
    %s1711 = sor.u32 255, 127
    %s1712 = sand.u32 %s1711, 85
    %s1713 = sshrl.u32 %s1712, 1
    %s1714 = sor.u32 %s1712, %s1713
    %s1715 = sand.u32 51, %s1714
    %s1716 = sshrl.u32 %s1715, 2
    %s1717 = sor.u32 %s1715, %s1716
    %s1718 = sand.u32 15, %s1717
    %v1719 = vld [vmem:[%s1709] sm:%s1718]
    %v1720 = vunpack.c.l.bf16 %v1719
    %v1721 = vunpack.c.h.bf16 %v1719
    %v1722 = vlaneseq
    %v1723 = vshrl.u32 %v1722, 7
    %v1724 = vadd.s32 %v1723, 40
    %vm1725 = vcmp.lt.s32.totalorder %v1724, 49
    %v1726 = vsel %vm1725, %v1720, %v9
    %v1727 = vlaneseq
    %v1728 = vand.u32 %v1727, 127
    %v1729 = vadd.s32 %v1728, 1664
    %vm1730 = vcmp.lt.s32.totalorder %v1729, 1728
    %v1731 = vsel %vm1730, %v1726, %v9
    %s1732 = scalar_lea.vmem [#allocation7], 332
    %v1733 = vpack.c.bf16 0.0, %v1731
    %s1735 = ssub.s32 16, 1
    %1736 = vst [vmem:[%s1732] sm:%s1735] %v1733
    %s1737 = scalar_lea.vmem %s1, 336
    %s1739 = sor.u32 255, 127
    %s1740 = sand.u32 %s1739, 85
    %s1741 = sshrl.u32 %s1740, 1
    %s1742 = sor.u32 %s1740, %s1741
    %s1743 = sand.u32 51, %s1742
    %s1744 = sshrl.u32 %s1743, 2
    %s1745 = sor.u32 %s1743, %s1744
    %s1746 = sand.u32 15, %s1745
    %v1747 = vld [vmem:[%s1737] sm:%s1746]
    %v1748 = vunpack.c.l.bf16 %v1747
    %v1749 = vunpack.c.h.bf16 %v1747
    %v1750 = vlaneseq
    %v1751 = vshrl.u32 %v1750, 7
    %v1752 = vadd.s32 %v1751, 48
    %vm1753 = vcmp.lt.s32.totalorder %v1752, 49
    %v1754 = vsel %vm1753, %v1748, %v9
    %v1755 = vlaneseq
    %v1756 = vand.u32 %v1755, 127
    %vm1758 = vcmp.lt.s32.totalorder %v1756, 1728
    %v1759 = vsel %vm1758, %v1754, %v9
    %s1760 = scalar_lea.vmem [#allocation7], 336
    %v1761 = vpack.c.bf16 0.0, %v1759
    %s1763 = ssub.s32 16, 1
    %1764 = vst [vmem:[%s1760] sm:%s1763] %v1761
    %s1765 = scalar_lea.vmem %s1, 340
    %s1767 = sor.u32 255, 127
    %s1768 = sand.u32 %s1767, 85
    %s1769 = sshrl.u32 %s1768, 1
    %s1770 = sor.u32 %s1768, %s1769
    %s1771 = sand.u32 51, %s1770
    %s1772 = sshrl.u32 %s1771, 2
    %s1773 = sor.u32 %s1771, %s1772
    %s1774 = sand.u32 15, %s1773
    %v1775 = vld [vmem:[%s1765] sm:%s1774]
    %v1776 = vunpack.c.l.bf16 %v1775
    %v1777 = vunpack.c.h.bf16 %v1775
    %v1778 = vlaneseq
    %v1779 = vshrl.u32 %v1778, 7
    %v1780 = vadd.s32 %v1779, 48
    %vm1781 = vcmp.lt.s32.totalorder %v1780, 49
    %v1782 = vsel %vm1781, %v1776, %v9
    %v1783 = vlaneseq
    %v1784 = vand.u32 %v1783, 127
    %v1785 = vadd.s32 %v1784, 128
    %vm1786 = vcmp.lt.s32.totalorder %v1785, 1728
    %v1787 = vsel %vm1786, %v1782, %v9
    %s1788 = scalar_lea.vmem [#allocation7], 340
    %v1789 = vpack.c.bf16 0.0, %v1787
    %s1791 = ssub.s32 16, 1
    %1792 = vst [vmem:[%s1788] sm:%s1791] %v1789
    %s1793 = scalar_lea.vmem %s1, 344
    %s1795 = sor.u32 255, 127
    %s1796 = sand.u32 %s1795, 85
    %s1797 = sshrl.u32 %s1796, 1
    %s1798 = sor.u32 %s1796, %s1797
    %s1799 = sand.u32 51, %s1798
    %s1800 = sshrl.u32 %s1799, 2
    %s1801 = sor.u32 %s1799, %s1800
    %s1802 = sand.u32 15, %s1801
    %v1803 = vld [vmem:[%s1793] sm:%s1802]
    %v1804 = vunpack.c.l.bf16 %v1803
    %v1805 = vunpack.c.h.bf16 %v1803
    %v1806 = vlaneseq
    %v1807 = vshrl.u32 %v1806, 7
    %v1808 = vadd.s32 %v1807, 48
    %vm1809 = vcmp.lt.s32.totalorder %v1808, 49
    %v1810 = vsel %vm1809, %v1804, %v9
    %v1811 = vlaneseq
    %v1812 = vand.u32 %v1811, 127
    %v1813 = vadd.s32 %v1812, 256
    %vm1814 = vcmp.lt.s32.totalorder %v1813, 1728
    %v1815 = vsel %vm1814, %v1810, %v9
    %s1816 = scalar_lea.vmem [#allocation7], 344
    %v1817 = vpack.c.bf16 0.0, %v1815
    %s1819 = ssub.s32 16, 1
    %1820 = vst [vmem:[%s1816] sm:%s1819] %v1817
    %s1821 = scalar_lea.vmem %s1, 348
    %s1823 = sor.u32 255, 127
    %s1824 = sand.u32 %s1823, 85
    %s1825 = sshrl.u32 %s1824, 1
    %s1826 = sor.u32 %s1824, %s1825
    %s1827 = sand.u32 51, %s1826
    %s1828 = sshrl.u32 %s1827, 2
    %s1829 = sor.u32 %s1827, %s1828
    %s1830 = sand.u32 15, %s1829
    %v1831 = vld [vmem:[%s1821] sm:%s1830]
    %v1832 = vunpack.c.l.bf16 %v1831
    %v1833 = vunpack.c.h.bf16 %v1831
    %v1834 = vlaneseq
    %v1835 = vshrl.u32 %v1834, 7
    %v1836 = vadd.s32 %v1835, 48
    %vm1837 = vcmp.lt.s32.totalorder %v1836, 49
    %v1838 = vsel %vm1837, %v1832, %v9
    %v1839 = vlaneseq
    %v1840 = vand.u32 %v1839, 127
    %v1841 = vadd.s32 %v1840, 384
    %vm1842 = vcmp.lt.s32.totalorder %v1841, 1728
    %v1843 = vsel %vm1842, %v1838, %v9
    %s1844 = scalar_lea.vmem [#allocation7], 348
    %v1845 = vpack.c.bf16 0.0, %v1843
    %s1847 = ssub.s32 16, 1
    %1848 = vst [vmem:[%s1844] sm:%s1847] %v1845
    %s1849 = scalar_lea.vmem %s1, 352
    %s1851 = sor.u32 255, 127
    %s1852 = sand.u32 %s1851, 85
    %s1853 = sshrl.u32 %s1852, 1
    %s1854 = sor.u32 %s1852, %s1853
    %s1855 = sand.u32 51, %s1854
    %s1856 = sshrl.u32 %s1855, 2
    %s1857 = sor.u32 %s1855, %s1856
    %s1858 = sand.u32 15, %s1857
    %v1859 = vld [vmem:[%s1849] sm:%s1858]
    %v1860 = vunpack.c.l.bf16 %v1859
    %v1861 = vunpack.c.h.bf16 %v1859
    %v1862 = vlaneseq
    %v1863 = vshrl.u32 %v1862, 7
    %v1864 = vadd.s32 %v1863, 48
    %vm1865 = vcmp.lt.s32.totalorder %v1864, 49
    %v1866 = vsel %vm1865, %v1860, %v9
    %v1867 = vlaneseq
    %v1868 = vand.u32 %v1867, 127
    %v1869 = vadd.s32 %v1868, 512
    %vm1870 = vcmp.lt.s32.totalorder %v1869, 1728
    %v1871 = vsel %vm1870, %v1866, %v9
    %s1872 = scalar_lea.vmem [#allocation7], 352
    %v1873 = vpack.c.bf16 0.0, %v1871
    %s1875 = ssub.s32 16, 1
    %1876 = vst [vmem:[%s1872] sm:%s1875] %v1873
    %s1877 = scalar_lea.vmem %s1, 356
    %s1879 = sor.u32 255, 127
    %s1880 = sand.u32 %s1879, 85
    %s1881 = sshrl.u32 %s1880, 1
    %s1882 = sor.u32 %s1880, %s1881
    %s1883 = sand.u32 51, %s1882
    %s1884 = sshrl.u32 %s1883, 2
    %s1885 = sor.u32 %s1883, %s1884
    %s1886 = sand.u32 15, %s1885
    %v1887 = vld [vmem:[%s1877] sm:%s1886]
    %v1888 = vunpack.c.l.bf16 %v1887
    %v1889 = vunpack.c.h.bf16 %v1887
    %v1890 = vlaneseq
    %v1891 = vshrl.u32 %v1890, 7
    %v1892 = vadd.s32 %v1891, 48
    %vm1893 = vcmp.lt.s32.totalorder %v1892, 49
    %v1894 = vsel %vm1893, %v1888, %v9
    %v1895 = vlaneseq
    %v1896 = vand.u32 %v1895, 127
    %v1897 = vadd.s32 %v1896, 640
    %vm1898 = vcmp.lt.s32.totalorder %v1897, 1728
    %v1899 = vsel %vm1898, %v1894, %v9
    %s1900 = scalar_lea.vmem [#allocation7], 356
    %v1901 = vpack.c.bf16 0.0, %v1899
    %s1903 = ssub.s32 16, 1
    %1904 = vst [vmem:[%s1900] sm:%s1903] %v1901
    %s1905 = scalar_lea.vmem %s1, 360
    %s1907 = sor.u32 255, 127
    %s1908 = sand.u32 %s1907, 85
    %s1909 = sshrl.u32 %s1908, 1
    %s1910 = sor.u32 %s1908, %s1909
    %s1911 = sand.u32 51, %s1910
    %s1912 = sshrl.u32 %s1911, 2
    %s1913 = sor.u32 %s1911, %s1912
    %s1914 = sand.u32 15, %s1913
    %v1915 = vld [vmem:[%s1905] sm:%s1914]
    %v1916 = vunpack.c.l.bf16 %v1915
    %v1917 = vunpack.c.h.bf16 %v1915
    %v1918 = vlaneseq
    %v1919 = vshrl.u32 %v1918, 7
    %v1920 = vadd.s32 %v1919, 48
    %vm1921 = vcmp.lt.s32.totalorder %v1920, 49
    %v1922 = vsel %vm1921, %v1916, %v9
    %v1923 = vlaneseq
    %v1924 = vand.u32 %v1923, 127
    %v1925 = vadd.s32 %v1924, 768
    %vm1926 = vcmp.lt.s32.totalorder %v1925, 1728
    %v1927 = vsel %vm1926, %v1922, %v9
    %s1928 = scalar_lea.vmem [#allocation7], 360
    %v1929 = vpack.c.bf16 0.0, %v1927
    %s1931 = ssub.s32 16, 1
    %1932 = vst [vmem:[%s1928] sm:%s1931] %v1929
    %s1933 = scalar_lea.vmem %s1, 364
    %s1935 = sor.u32 255, 127
    %s1936 = sand.u32 %s1935, 85
    %s1937 = sshrl.u32 %s1936, 1
    %s1938 = sor.u32 %s1936, %s1937
    %s1939 = sand.u32 51, %s1938
    %s1940 = sshrl.u32 %s1939, 2
    %s1941 = sor.u32 %s1939, %s1940
    %s1942 = sand.u32 15, %s1941
    %v1943 = vld [vmem:[%s1933] sm:%s1942]
    %v1944 = vunpack.c.l.bf16 %v1943
    %v1945 = vunpack.c.h.bf16 %v1943
    %v1946 = vlaneseq
    %v1947 = vshrl.u32 %v1946, 7
    %v1948 = vadd.s32 %v1947, 48
    %vm1949 = vcmp.lt.s32.totalorder %v1948, 49
    %v1950 = vsel %vm1949, %v1944, %v9
    %v1951 = vlaneseq
    %v1952 = vand.u32 %v1951, 127
    %v1953 = vadd.s32 %v1952, 896
    %vm1954 = vcmp.lt.s32.totalorder %v1953, 1728
    %v1955 = vsel %vm1954, %v1950, %v9
    %s1956 = scalar_lea.vmem [#allocation7], 364
    %v1957 = vpack.c.bf16 0.0, %v1955
    %s1959 = ssub.s32 16, 1
    %1960 = vst [vmem:[%s1956] sm:%s1959] %v1957
    %s1961 = scalar_lea.vmem %s1, 368
    %s1963 = sor.u32 255, 127
    %s1964 = sand.u32 %s1963, 85
    %s1965 = sshrl.u32 %s1964, 1
    %s1966 = sor.u32 %s1964, %s1965
    %s1967 = sand.u32 51, %s1966
    %s1968 = sshrl.u32 %s1967, 2
    %s1969 = sor.u32 %s1967, %s1968
    %s1970 = sand.u32 15, %s1969
    %v1971 = vld [vmem:[%s1961] sm:%s1970]
    %v1972 = vunpack.c.l.bf16 %v1971
    %v1973 = vunpack.c.h.bf16 %v1971
    %v1974 = vlaneseq
    %v1975 = vshrl.u32 %v1974, 7
    %v1976 = vadd.s32 %v1975, 48
    %vm1977 = vcmp.lt.s32.totalorder %v1976, 49
    %v1978 = vsel %vm1977, %v1972, %v9
    %v1979 = vlaneseq
    %v1980 = vand.u32 %v1979, 127
    %v1981 = vadd.s32 %v1980, 1024
    %vm1982 = vcmp.lt.s32.totalorder %v1981, 1728
    %v1983 = vsel %vm1982, %v1978, %v9
    %s1984 = scalar_lea.vmem [#allocation7], 368
    %v1985 = vpack.c.bf16 0.0, %v1983
    %s1987 = ssub.s32 16, 1
    %1988 = vst [vmem:[%s1984] sm:%s1987] %v1985
    %s1989 = scalar_lea.vmem %s1, 372
    %s1991 = sor.u32 255, 127
    %s1992 = sand.u32 %s1991, 85
    %s1993 = sshrl.u32 %s1992, 1
    %s1994 = sor.u32 %s1992, %s1993
    %s1995 = sand.u32 51, %s1994
    %s1996 = sshrl.u32 %s1995, 2
    %s1997 = sor.u32 %s1995, %s1996
    %s1998 = sand.u32 15, %s1997
    %v1999 = vld [vmem:[%s1989] sm:%s1998]
    %v2000 = vunpack.c.l.bf16 %v1999
    %v2001 = vunpack.c.h.bf16 %v1999
    %v2002 = vlaneseq
    %v2003 = vshrl.u32 %v2002, 7
    %v2004 = vadd.s32 %v2003, 48
    %vm2005 = vcmp.lt.s32.totalorder %v2004, 49
    %v2006 = vsel %vm2005, %v2000, %v9
    %v2007 = vlaneseq
    %v2008 = vand.u32 %v2007, 127
    %v2009 = vadd.s32 %v2008, 1152
    %vm2010 = vcmp.lt.s32.totalorder %v2009, 1728
    %v2011 = vsel %vm2010, %v2006, %v9
    %s2012 = scalar_lea.vmem [#allocation7], 372
    %v2013 = vpack.c.bf16 0.0, %v2011
    %s2015 = ssub.s32 16, 1
    %2016 = vst [vmem:[%s2012] sm:%s2015] %v2013
    %s2017 = scalar_lea.vmem %s1, 376
    %s2019 = sor.u32 255, 127
    %s2020 = sand.u32 %s2019, 85
    %s2021 = sshrl.u32 %s2020, 1
    %s2022 = sor.u32 %s2020, %s2021
    %s2023 = sand.u32 51, %s2022
    %s2024 = sshrl.u32 %s2023, 2
    %s2025 = sor.u32 %s2023, %s2024
    %s2026 = sand.u32 15, %s2025
    %v2027 = vld [vmem:[%s2017] sm:%s2026]
    %v2028 = vunpack.c.l.bf16 %v2027
    %v2029 = vunpack.c.h.bf16 %v2027
    %v2030 = vlaneseq
    %v2031 = vshrl.u32 %v2030, 7
    %v2032 = vadd.s32 %v2031, 48
    %vm2033 = vcmp.lt.s32.totalorder %v2032, 49
    %v2034 = vsel %vm2033, %v2028, %v9
    %v2035 = vlaneseq
    %v2036 = vand.u32 %v2035, 127
    %v2037 = vadd.s32 %v2036, 1280
    %vm2038 = vcmp.lt.s32.totalorder %v2037, 1728
    %v2039 = vsel %vm2038, %v2034, %v9
    %s2040 = scalar_lea.vmem [#allocation7], 376
    %v2041 = vpack.c.bf16 0.0, %v2039
    %s2043 = ssub.s32 16, 1
    %2044 = vst [vmem:[%s2040] sm:%s2043] %v2041
    %s2045 = scalar_lea.vmem %s1, 380
    %s2047 = sor.u32 255, 127
    %s2048 = sand.u32 %s2047, 85
    %s2049 = sshrl.u32 %s2048, 1
    %s2050 = sor.u32 %s2048, %s2049
    %s2051 = sand.u32 51, %s2050
    %s2052 = sshrl.u32 %s2051, 2
    %s2053 = sor.u32 %s2051, %s2052
    %s2054 = sand.u32 15, %s2053
    %v2055 = vld [vmem:[%s2045] sm:%s2054]
    %v2056 = vunpack.c.l.bf16 %v2055
    %v2057 = vunpack.c.h.bf16 %v2055
    %v2058 = vlaneseq
    %v2059 = vshrl.u32 %v2058, 7
    %v2060 = vadd.s32 %v2059, 48
    %vm2061 = vcmp.lt.s32.totalorder %v2060, 49
    %v2062 = vsel %vm2061, %v2056, %v9
    %v2063 = vlaneseq
    %v2064 = vand.u32 %v2063, 127
    %v2065 = vadd.s32 %v2064, 1408
    %vm2066 = vcmp.lt.s32.totalorder %v2065, 1728
    %v2067 = vsel %vm2066, %v2062, %v9
    %s2068 = scalar_lea.vmem [#allocation7], 380
    %v2069 = vpack.c.bf16 0.0, %v2067
    %s2071 = ssub.s32 16, 1
    %2072 = vst [vmem:[%s2068] sm:%s2071] %v2069
    %s2073 = scalar_lea.vmem %s1, 384
    %s2075 = sor.u32 255, 127
    %s2076 = sand.u32 %s2075, 85
    %s2077 = sshrl.u32 %s2076, 1
    %s2078 = sor.u32 %s2076, %s2077
    %s2079 = sand.u32 51, %s2078
    %s2080 = sshrl.u32 %s2079, 2
    %s2081 = sor.u32 %s2079, %s2080
    %s2082 = sand.u32 15, %s2081
    %v2083 = vld [vmem:[%s2073] sm:%s2082]
    %v2084 = vunpack.c.l.bf16 %v2083
    %v2085 = vunpack.c.h.bf16 %v2083
    %v2086 = vlaneseq
    %v2087 = vshrl.u32 %v2086, 7
    %v2088 = vadd.s32 %v2087, 48
    %vm2089 = vcmp.lt.s32.totalorder %v2088, 49
    %v2090 = vsel %vm2089, %v2084, %v9
    %v2091 = vlaneseq
    %v2092 = vand.u32 %v2091, 127
    %v2093 = vadd.s32 %v2092, 1536
    %vm2094 = vcmp.lt.s32.totalorder %v2093, 1728
    %v2095 = vsel %vm2094, %v2090, %v9
    %s2096 = scalar_lea.vmem [#allocation7], 384
    %v2097 = vpack.c.bf16 0.0, %v2095
    %s2099 = ssub.s32 16, 1
    %2100 = vst [vmem:[%s2096] sm:%s2099] %v2097
    %s2101 = scalar_lea.vmem %s1, 388
    %s2103 = sor.u32 255, 127
    %s2104 = sand.u32 %s2103, 85
    %s2105 = sshrl.u32 %s2104, 1
    %s2106 = sor.u32 %s2104, %s2105
    %s2107 = sand.u32 51, %s2106
    %s2108 = sshrl.u32 %s2107, 2
    %s2109 = sor.u32 %s2107, %s2108
    %s2110 = sand.u32 15, %s2109
    %v2111 = vld [vmem:[%s2101] sm:%s2110]
    %v2112 = vunpack.c.l.bf16 %v2111
    %v2113 = vunpack.c.h.bf16 %v2111
    %v2114 = vlaneseq
    %v2115 = vshrl.u32 %v2114, 7
    %v2116 = vadd.s32 %v2115, 48
    %vm2117 = vcmp.lt.s32.totalorder %v2116, 49
    %v2118 = vsel %vm2117, %v2112, %v9
    %v2119 = vlaneseq
    %v2120 = vand.u32 %v2119, 127
    %v2121 = vadd.s32 %v2120, 1664
    %vm2122 = vcmp.lt.s32.totalorder %v2121, 1728
    %v2123 = vsel %vm2122, %v2118, %v9
    %s2124 = scalar_lea.vmem [#allocation7], 388
    %v2125 = vpack.c.bf16 0.0, %v2123
    %s2127 = ssub.s32 16, 1
    %2128 = vst [vmem:[%s2124] sm:%s2127] %v2125
    %s2129 = scalar_lea.vmem [#allocation7], 392
    %v2130 = vpack.c.bf16 0.0, %v9
    %s2132 = ssub.s32 16, 1
    %2133 = vst [vmem:[%s2129] sm:%s2132] %v2130
    %s2134 = scalar_lea.vmem [#allocation7], 396
    %v2135 = vpack.c.bf16 0.0, %v9
    %s2137 = ssub.s32 16, 1
    %2138 = vst [vmem:[%s2134] sm:%s2137] %v2135
    %s2139 = scalar_lea.vmem [#allocation7], 400
    %v2140 = vpack.c.bf16 0.0, %v9
    %s2142 = ssub.s32 16, 1
    %2143 = vst [vmem:[%s2139] sm:%s2142] %v2140
    %s2144 = scalar_lea.vmem [#allocation7], 404
    %v2145 = vpack.c.bf16 0.0, %v9
    %s2147 = ssub.s32 16, 1
    %2148 = vst [vmem:[%s2144] sm:%s2147] %v2145
    %s2149 = scalar_lea.vmem [#allocation7], 408
    %v2150 = vpack.c.bf16 0.0, %v9
    %s2152 = ssub.s32 16, 1
    %2153 = vst [vmem:[%s2149] sm:%s2152] %v2150
    %s2154 = scalar_lea.vmem [#allocation7], 412
    %v2155 = vpack.c.bf16 0.0, %v9
    %s2157 = ssub.s32 16, 1
    %2158 = vst [vmem:[%s2154] sm:%s2157] %v2155
    %s2159 = scalar_lea.vmem [#allocation7], 416
    %v2160 = vpack.c.bf16 0.0, %v9
    %s2162 = ssub.s32 16, 1
    %2163 = vst [vmem:[%s2159] sm:%s2162] %v2160
    %s2164 = scalar_lea.vmem [#allocation7], 420
    %v2165 = vpack.c.bf16 0.0, %v9
    %s2167 = ssub.s32 16, 1
    %2168 = vst [vmem:[%s2164] sm:%s2167] %v2165
    %s2169 = scalar_lea.vmem [#allocation7], 424
    %v2170 = vpack.c.bf16 0.0, %v9
    %s2172 = ssub.s32 16, 1
    %2173 = vst [vmem:[%s2169] sm:%s2172] %v2170
    %s2174 = scalar_lea.vmem [#allocation7], 428
    %v2175 = vpack.c.bf16 0.0, %v9
    %s2177 = ssub.s32 16, 1
    %2178 = vst [vmem:[%s2174] sm:%s2177] %v2175
    %s2179 = scalar_lea.vmem [#allocation7], 432
    %v2180 = vpack.c.bf16 0.0, %v9
    %s2182 = ssub.s32 16, 1
    %2183 = vst [vmem:[%s2179] sm:%s2182] %v2180
    %s2184 = scalar_lea.vmem [#allocation7], 436
    %v2185 = vpack.c.bf16 0.0, %v9
    %s2187 = ssub.s32 16, 1
    %2188 = vst [vmem:[%s2184] sm:%s2187] %v2185
    %s2189 = scalar_lea.vmem [#allocation7], 440
    %v2190 = vpack.c.bf16 0.0, %v9
    %s2192 = ssub.s32 16, 1
    %2193 = vst [vmem:[%s2189] sm:%s2192] %v2190
    %s2194 = scalar_lea.vmem [#allocation7], 444
    %v2195 = vpack.c.bf16 0.0, %v9
    %s2197 = ssub.s32 16, 1
    %2198 = vst [vmem:[%s2194] sm:%s2197] %v2195
    %v2200 = vld [vmem:[#allocation7] sm:$0xff]
    %v2201 = vld [vmem:[#allocation7 + $0x8] sm:$0xff]
    %v2202 = vld [vmem:[#allocation7 + $0x10] sm:$0xff]
    %v2203 = vld [vmem:[#allocation7 + $0x18] sm:$0xff]
    %v2204 = vld [vmem:[#allocation7 + $0x20] sm:$0xff]
    %v2205 = vld [vmem:[#allocation7 + $0x28] sm:$0xff]
    %v2206 = vld [vmem:[#allocation7 + $0x30] sm:$0xff]
    %v2207 = vld [vmem:[#allocation7 + $0x38] sm:$0xff]
    %v2208 = vld [vmem:[#allocation7 + $0x40] sm:$0xff]
    %v2209 = vld [vmem:[#allocation7 + $0x48] sm:$0xff]
    %v2210 = vld [vmem:[#allocation7 + $0x50] sm:$0xff]
    %v2211 = vld [vmem:[#allocation7 + $0x58] sm:$0xff]
    %v2212 = vld [vmem:[#allocation7 + $0x60] sm:$0xff]
    %v2213 = vld [vmem:[#allocation7 + $0x68] sm:$0xff]
    %v2214 = vld [vmem:[#allocation7 + $0x70] sm:$0xff]
    %v2215 = vld [vmem:[#allocation7 + $0x78] sm:$0xff]
    %v2216 = vld [vmem:[#allocation7 + $0x80] sm:$0xff]
    %v2217 = vld [vmem:[#allocation7 + $0x88] sm:$0xff]
    %v2218 = vld [vmem:[#allocation7 + $0x90] sm:$0xff]
    %v2219 = vld [vmem:[#allocation7 + $0x98] sm:$0xff]
    %v2220 = vld [vmem:[#allocation7 + $0xa0] sm:$0xff]
    %v2221 = vld [vmem:[#allocation7 + $0xa8] sm:$0xff]
    %v2222 = vld [vmem:[#allocation7 + $0xb0] sm:$0xff]
    %v2223 = vld [vmem:[#allocation7 + $0xb8] sm:$0xff]
    %v2224 = vld [vmem:[#allocation7 + $0xc0] sm:$0xff]
    %v2225 = vld [vmem:[#allocation7 + $0xc8] sm:$0xff]
    %v2226 = vld [vmem:[#allocation7 + $0xd0] sm:$0xff]
    %v2227 = vld [vmem:[#allocation7 + $0xd8] sm:$0xff]
    %v2228 = vld [vmem:[#allocation7 + $0xe0] sm:$0xff]
    %v2229 = vld [vmem:[#allocation7 + $0xe8] sm:$0xff]
    %v2230 = vld [vmem:[#allocation7 + $0xf0] sm:$0xff]
    %v2231 = vld [vmem:[#allocation7 + $0xf8] sm:$0xff]
    %v2232 = vld [vmem:[#allocation7 + $0x100] sm:$0xff]
    %v2233 = vld [vmem:[#allocation7 + $0x108] sm:$0xff]
    %v2234 = vld [vmem:[#allocation7 + $0x110] sm:$0xff]
    %v2235 = vld [vmem:[#allocation7 + $0x118] sm:$0xff]
    %v2236 = vld [vmem:[#allocation7 + $0x120] sm:$0xff]
    %v2237 = vld [vmem:[#allocation7 + $0x128] sm:$0xff]
    %v2238 = vld [vmem:[#allocation7 + $0x130] sm:$0xff]
    %v2239 = vld [vmem:[#allocation7 + $0x138] sm:$0xff]
    %v2240 = vld [vmem:[#allocation7 + $0x140] sm:$0xff]
    %v2241 = vld [vmem:[#allocation7 + $0x148] sm:$0xff]
    %v2242 = vld [vmem:[#allocation7 + $0x150] sm:$0xff]
    %v2243 = vld [vmem:[#allocation7 + $0x158] sm:$0xff]
    %v2244 = vld [vmem:[#allocation7 + $0x160] sm:$0xff]
    %v2245 = vld [vmem:[#allocation7 + $0x168] sm:$0xff]
    %v2246 = vld [vmem:[#allocation7 + $0x170] sm:$0xff]
    %v2247 = vld [vmem:[#allocation7 + $0x178] sm:$0xff]
    %v2248 = vld [vmem:[#allocation7 + $0x180] sm:$0xff]
    %v2249 = vld [vmem:[#allocation7 + $0x188] sm:$0xff]
    %v2250 = vld [vmem:[#allocation7 + $0x190] sm:$0xff]
    %v2251 = vld [vmem:[#allocation7 + $0x198] sm:$0xff]
    %v2252 = vld [vmem:[#allocation7 + $0x1a0] sm:$0xff]
    %v2253 = vld [vmem:[#allocation7 + $0x1a8] sm:$0xff]
    %v2254 = vld [vmem:[#allocation7 + $0x1b0] sm:$0xff]
    %v2255 = vld [vmem:[#allocation7 + $0x1b8] sm:$0xff]
    %v2256 = vld [vmem:[%s0] sm:$0xf]
    %v2257 = vld [vmem:[%s0 + $0x4] sm:$0xf]
    %v2258 = vld [vmem:[%s0 + $0x8] sm:$0xf]
    %v2259 = vld [vmem:[%s0 + $0xc] sm:$0xf]
    %v2260 = vld [vmem:[%s0 + $0x10] sm:$0xf]
    %v2261 = vld [vmem:[%s0 + $0x14] sm:$0xf]
    %v2262 = vld [vmem:[%s0 + $0x18] sm:$0xf]
    %v2263 = vld [vmem:[%s0 + $0x1c] sm:$0xf]
    %v2264 = vld [vmem:[%s0 + $0x20] sm:$0xf]
    %v2265 = vld [vmem:[%s0 + $0x24] sm:$0xf]
    %v2266 = vld [vmem:[%s0 + $0x28] sm:$0xf]
    %v2267 = vld [vmem:[%s0 + $0x2c] sm:$0xf]
    %v2268 = vld [vmem:[%s0 + $0x30] sm:$0xf]
    %v2269 = vld [vmem:[%s0 + $0x34] sm:$0xf]
    %v2270 = vld [vmem:[%s0 + $0x38] sm:$0xf]
    %v2271 = vld [vmem:[%s0 + $0x3c] sm:$0xf]
    %v2272 = vld [vmem:[%s0 + $0x40] sm:$0xf]
    %v2273 = vld [vmem:[%s0 + $0x44] sm:$0xf]
    %v2274 = vld [vmem:[%s0 + $0x48] sm:$0xf]
    %v2275 = vld [vmem:[%s0 + $0x4c] sm:$0xf]
    %v2276 = vld [vmem:[%s0 + $0x50] sm:$0xf]
    %v2277 = vld [vmem:[%s0 + $0x54] sm:$0xf]
    %v2278 = vld [vmem:[%s0 + $0x58] sm:$0xf]
    %v2279 = vld [vmem:[%s0 + $0x5c] sm:$0xf]
    %v2280 = vld [vmem:[%s0 + $0x60] sm:$0xf]
    %v2281 = vld [vmem:[%s0 + $0x64] sm:$0xf]
    %v2282 = vld [vmem:[%s0 + $0x68] sm:$0xf]
    %v2283 = vld [vmem:[%s0 + $0x6c] sm:$0xf]
    %v2284 = vld [vmem:[%s0 + $0x70] sm:$0xf]
    %v2285 = vld [vmem:[%s0 + $0x74] sm:$0xf]
    %v2286 = vld [vmem:[%s0 + $0x78] sm:$0xf]
    %v2287 = vld [vmem:[%s0 + $0x7c] sm:$0xf]
    %v2288 = vld [vmem:[%s0 + $0x80] sm:$0xf]
    %v2289 = vld [vmem:[%s0 + $0x84] sm:$0xf]
    %v2290 = vld [vmem:[%s0 + $0x88] sm:$0xf]
    %v2291 = vld [vmem:[%s0 + $0x8c] sm:$0xf]
    %v2292 = vld [vmem:[%s0 + $0x90] sm:$0xf]
    %v2293 = vld [vmem:[%s0 + $0x94] sm:$0xf]
    %v2294 = vld [vmem:[%s0 + $0x98] sm:$0xf]
    %v2295 = vld [vmem:[%s0 + $0x9c] sm:$0xf]
    %v2296 = vld [vmem:[%s0 + $0xa0] sm:$0xf]
    %v2297 = vld [vmem:[%s0 + $0xa4] sm:$0xf]
    %v2298 = vld [vmem:[%s0 + $0xa8] sm:$0xf]
    %v2299 = vld [vmem:[%s0 + $0xac] sm:$0xf]
    %v2300 = vld [vmem:[%s0 + $0xb0] sm:$0xf]
    %v2301 = vld [vmem:[%s0 + $0xb4] sm:$0xf]
    %v2302 = vld [vmem:[%s0 + $0xb8] sm:$0xf]
    %v2303 = vld [vmem:[%s0 + $0xbc] sm:$0xf]
    %v2304 = vld [vmem:[%s0 + $0xc0] sm:$0xf]
    %v2305 = vld [vmem:[%s0 + $0xc4] sm:$0xf]
    %v2306 = vld [vmem:[%s0 + $0xc8] sm:$0xf]
    %v2307 = vld [vmem:[%s0 + $0xcc] sm:$0xf]
    %v2308 = vld [vmem:[%s0 + $0xd0] sm:$0xf]
    %v2309 = vld [vmem:[%s0 + $0xd4] sm:$0xf]
    %v2310 = vld [vmem:[%s0 + $0xd8] sm:$0xf]
    %v2311 = vld [vmem:[%s0 + $0xdc] sm:$0xf]
    %v2312 = vld [vmem:[%s0 + $0xe0] sm:$0xf]
    %v2313 = vld [vmem:[%s0 + $0xe4] sm:$0xf]
    %v2314 = vld [vmem:[%s0 + $0xe8] sm:$0xf]
    %v2315 = vld [vmem:[%s0 + $0xec] sm:$0xf]
    %v2316 = vld [vmem:[%s0 + $0xf0] sm:$0xf]
    %v2317 = vld [vmem:[%s0 + $0xf4] sm:$0xf]
    %v2318 = vld [vmem:[%s0 + $0xf8] sm:$0xf]
    %v2319 = vld [vmem:[%s0 + $0xfc] sm:$0xf]
    %v2320 = vld [vmem:[%s0 + $0x100] sm:$0xf]
    %v2321 = vld [vmem:[%s0 + $0x104] sm:$0xf]
    %v2322 = vld [vmem:[%s0 + $0x108] sm:$0xf]
    %v2323 = vld [vmem:[%s0 + $0x10c] sm:$0xf]
    %v2324 = vld [vmem:[%s0 + $0x110] sm:$0xf]
    %v2325 = vld [vmem:[%s0 + $0x114] sm:$0xf]
    %v2326 = vld [vmem:[%s0 + $0x118] sm:$0xf]
    %v2327 = vld [vmem:[%s0 + $0x11c] sm:$0xf]
    %v2328 = vld [vmem:[%s0 + $0x120] sm:$0xf]
    %v2329 = vld [vmem:[%s0 + $0x124] sm:$0xf]
    %v2330 = vld [vmem:[%s0 + $0x128] sm:$0xf]
    %v2331 = vld [vmem:[%s0 + $0x12c] sm:$0xf]
    %v2332 = vld [vmem:[%s0 + $0x130] sm:$0xf]
    %v2333 = vld [vmem:[%s0 + $0x134] sm:$0xf]
    %v2334 = vld [vmem:[%s0 + $0x138] sm:$0xf]
    %v2335 = vld [vmem:[%s0 + $0x13c] sm:$0xf]
    %v2336 = vld [vmem:[%s0 + $0x140] sm:$0xf]
    %v2337 = vld [vmem:[%s0 + $0x144] sm:$0xf]
    %v2338 = vld [vmem:[%s0 + $0x148] sm:$0xf]
    %v2339 = vld [vmem:[%s0 + $0x14c] sm:$0xf]
    %v2340 = vld [vmem:[%s0 + $0x150] sm:$0xf]
    %v2341 = vld [vmem:[%s0 + $0x154] sm:$0xf]
    %v2342 = vld [vmem:[%s0 + $0x158] sm:$0xf]
    %v2343 = vld [vmem:[%s0 + $0x15c] sm:$0xf]
    %v2344 = vld [vmem:[%s0 + $0x160] sm:$0xf]
    %v2345 = vld [vmem:[%s0 + $0x164] sm:$0xf]
    %v2346 = vld [vmem:[%s0 + $0x168] sm:$0xf]
    %v2347 = vld [vmem:[%s0 + $0x16c] sm:$0xf]
    %v2348 = vld [vmem:[%s0 + $0x170] sm:$0xf]
    %v2349 = vld [vmem:[%s0 + $0x174] sm:$0xf]
    %v2350 = vld [vmem:[%s0 + $0x178] sm:$0xf]
    %v2351 = vld [vmem:[%s0 + $0x17c] sm:$0xf]
    %v2352 = vld [vmem:[%s0 + $0x180] sm:$0xf]
    %v2353 = vld [vmem:[%s0 + $0x184] sm:$0xf]
    %v2354 = vld [vmem:[%s0 + $0x188] sm:$0xf]
    %v2355 = vld [vmem:[%s0 + $0x18c] sm:$0xf]
    %v2356 = vld [vmem:[%s0 + $0x190] sm:$0xf]
    %v2357 = vld [vmem:[%s0 + $0x194] sm:$0xf]
    %v2358 = vld [vmem:[%s0 + $0x198] sm:$0xf]
    %v2359 = vld [vmem:[%s0 + $0x19c] sm:$0xf]
    %v2360 = vld [vmem:[%s0 + $0x1a0] sm:$0xf]
    %v2361 = vld [vmem:[%s0 + $0x1a4] sm:$0xf]
    %v2362 = vld [vmem:[%s0 + $0x1a8] sm:$0xf]
    %v2363 = vld [vmem:[%s0 + $0x1ac] sm:$0xf]
    %v2364 = vld [vmem:[%s0 + $0x1b0] sm:$0xf]
    %v2365 = vld [vmem:[%s0 + $0x1b4] sm:$0xf]
    %v2366 = vld [vmem:[%s0 + $0x1b8] sm:$0xf]
    %v2367 = vld [vmem:[%s0 + $0x1bc] sm:$0xf]
    %v2368 = vld [vmem:[%s0 + $0x1c0] sm:$0xf]
    %v2369 = vld [vmem:[%s0 + $0x1c4] sm:$0xf]
    %v2370 = vld [vmem:[%s0 + $0x1c8] sm:$0xf]
    %v2371 = vld [vmem:[%s0 + $0x1cc] sm:$0xf]
    %v2372 = vld [vmem:[%s0 + $0x1d0] sm:$0xf]
    %v2373 = vld [vmem:[%s0 + $0x1d4] sm:$0xf]
    %v2374 = vld [vmem:[%s0 + $0x1d8] sm:$0xf]
    %v2375 = vld [vmem:[%s0 + $0x1dc] sm:$0xf]
    %v2376 = vld [vmem:[%s0 + $0x1e0] sm:$0xf]
    %v2377 = vld [vmem:[%s0 + $0x1e4] sm:$0xf]
    %v2378 = vld [vmem:[%s0 + $0x1e8] sm:$0xf]
    %v2379 = vld [vmem:[%s0 + $0x1ec] sm:$0xf]
    %v2380 = vld [vmem:[%s0 + $0x1f0] sm:$0xf]
    %v2381 = vld [vmem:[%s0 + $0x1f4] sm:$0xf]
    %v2382 = vld [vmem:[%s0 + $0x1f8] sm:$0xf]
    %v2383 = vld [vmem:[%s0 + $0x1fc] sm:$0xf]
    %v2384 = vld [vmem:[%s0 + $0x200] sm:$0xf]
    %v2385 = vld [vmem:[%s0 + $0x204] sm:$0xf]
    %v2386 = vld [vmem:[%s0 + $0x208] sm:$0xf]
    %v2387 = vld [vmem:[%s0 + $0x20c] sm:$0xf]
    %v2388 = vld [vmem:[%s0 + $0x210] sm:$0xf]
    %v2389 = vld [vmem:[%s0 + $0x214] sm:$0xf]
    %v2390 = vld [vmem:[%s0 + $0x218] sm:$0xf]
    %v2391 = vld [vmem:[%s0 + $0x21c] sm:$0xf]
    %v2392 = vld [vmem:[%s0 + $0x220] sm:$0xf]
    %v2393 = vld [vmem:[%s0 + $0x224] sm:$0xf]
    %v2394 = vld [vmem:[%s0 + $0x228] sm:$0xf]
    %v2395 = vld [vmem:[%s0 + $0x22c] sm:$0xf]
    %v2396 = vld [vmem:[%s0 + $0x230] sm:$0xf]
    %v2397 = vld [vmem:[%s0 + $0x234] sm:$0xf]
    %v2398 = vld [vmem:[%s0 + $0x238] sm:$0xf]
    %v2399 = vld [vmem:[%s0 + $0x23c] sm:$0xf]
    %v2400 = vld [vmem:[%s0 + $0x240] sm:$0xf]
    %v2401 = vld [vmem:[%s0 + $0x244] sm:$0xf]
    %v2402 = vld [vmem:[%s0 + $0x248] sm:$0xf]
    %v2403 = vld [vmem:[%s0 + $0x24c] sm:$0xf]
    %v2404 = vld [vmem:[%s0 + $0x250] sm:$0xf]
    %v2405 = vld [vmem:[%s0 + $0x254] sm:$0xf]
    %v2406 = vld [vmem:[%s0 + $0x258] sm:$0xf]
    %v2407 = vld [vmem:[%s0 + $0x25c] sm:$0xf]
    %v2408 = vld [vmem:[%s0 + $0x260] sm:$0xf]
    %v2409 = vld [vmem:[%s0 + $0x264] sm:$0xf]
    %v2410 = vld [vmem:[%s0 + $0x268] sm:$0xf]
    %v2411 = vld [vmem:[%s0 + $0x26c] sm:$0xf]
    %v2412 = vld [vmem:[%s0 + $0x270] sm:$0xf]
    %v2413 = vld [vmem:[%s0 + $0x274] sm:$0xf]
    %v2414 = vld [vmem:[%s0 + $0x278] sm:$0xf]
    %v2415 = vld [vmem:[%s0 + $0x27c] sm:$0xf]
    %v2416 = vld [vmem:[%s0 + $0x280] sm:$0xf]
    %v2417 = vld [vmem:[%s0 + $0x284] sm:$0xf]
    %v2418 = vld [vmem:[%s0 + $0x288] sm:$0xf]
    %v2419 = vld [vmem:[%s0 + $0x28c] sm:$0xf]
    %v2420 = vld [vmem:[%s0 + $0x290] sm:$0xf]
    %v2421 = vld [vmem:[%s0 + $0x294] sm:$0xf]
    %v2422 = vld [vmem:[%s0 + $0x298] sm:$0xf]
    %v2423 = vld [vmem:[%s0 + $0x29c] sm:$0xf]
    %v2424 = vld [vmem:[%s0 + $0x2a0] sm:$0xf]
    %v2425 = vld [vmem:[%s0 + $0x2a4] sm:$0xf]
    %v2426 = vld [vmem:[%s0 + $0x2a8] sm:$0xf]
    %v2427 = vld [vmem:[%s0 + $0x2ac] sm:$0xf]
    %v2428 = vld [vmem:[%s0 + $0x2b0] sm:$0xf]
    %v2429 = vld [vmem:[%s0 + $0x2b4] sm:$0xf]
    %v2430 = vld [vmem:[%s0 + $0x2b8] sm:$0xf]
    %v2431 = vld [vmem:[%s0 + $0x2bc] sm:$0xf]
    %v2432 = vld [vmem:[%s0 + $0x2c0] sm:$0xf]
    %v2433 = vld [vmem:[%s0 + $0x2c4] sm:$0xf]
    %v2434 = vld [vmem:[%s0 + $0x2c8] sm:$0xf]
    %v2435 = vld [vmem:[%s0 + $0x2cc] sm:$0xf]
    %v2436 = vld [vmem:[%s0 + $0x2d0] sm:$0xf]
    %v2437 = vld [vmem:[%s0 + $0x2d4] sm:$0xf]
    %v2438 = vld [vmem:[%s0 + $0x2d8] sm:$0xf]
    %v2439 = vld [vmem:[%s0 + $0x2dc] sm:$0xf]
    %v2440 = vld [vmem:[%s0 + $0x2e0] sm:$0xf]
    %v2441 = vld [vmem:[%s0 + $0x2e4] sm:$0xf]
    %v2442 = vld [vmem:[%s0 + $0x2e8] sm:$0xf]
    %v2443 = vld [vmem:[%s0 + $0x2ec] sm:$0xf]
    %v2444 = vld [vmem:[%s0 + $0x2f0] sm:$0xf]
    %v2445 = vld [vmem:[%s0 + $0x2f4] sm:$0xf]
    %v2446 = vld [vmem:[%s0 + $0x2f8] sm:$0xf]
    %v2447 = vld [vmem:[%s0 + $0x2fc] sm:$0xf]
    %v2448 = vld [vmem:[%s0 + $0x300] sm:$0xf]
    %v2449 = vld [vmem:[%s0 + $0x304] sm:$0xf]
    %v2450 = vld [vmem:[%s0 + $0x308] sm:$0xf]
    %v2451 = vld [vmem:[%s0 + $0x30c] sm:$0xf]
    %v2452 = vld [vmem:[%s0 + $0x310] sm:$0xf]
    %v2453 = vld [vmem:[%s0 + $0x314] sm:$0xf]
    %v2454 = vld [vmem:[%s0 + $0x318] sm:$0xf]
    %v2455 = vld [vmem:[%s0 + $0x31c] sm:$0xf]
    %v2456 = vld [vmem:[%s0 + $0x320] sm:$0xf]
    %v2457 = vld [vmem:[%s0 + $0x324] sm:$0xf]
    %v2458 = vld [vmem:[%s0 + $0x328] sm:$0xf]
    %v2459 = vld [vmem:[%s0 + $0x32c] sm:$0xf]
    %v2460 = vld [vmem:[%s0 + $0x330] sm:$0xf]
    %v2461 = vld [vmem:[%s0 + $0x334] sm:$0xf]
    %v2462 = vld [vmem:[%s0 + $0x338] sm:$0xf]
    %v2463 = vld [vmem:[%s0 + $0x33c] sm:$0xf]
    %v2464 = vld [vmem:[%s0 + $0x340] sm:$0xf]
    %v2465 = vld [vmem:[%s0 + $0x344] sm:$0xf]
    %v2466 = vld [vmem:[%s0 + $0x348] sm:$0xf]
    %v2467 = vld [vmem:[%s0 + $0x34c] sm:$0xf]
    %v2468 = vld [vmem:[%s0 + $0x350] sm:$0xf]
    %v2469 = vld [vmem:[%s0 + $0x354] sm:$0xf]
    %v2470 = vld [vmem:[%s0 + $0x358] sm:$0xf]
    %v2471 = vld [vmem:[%s0 + $0x35c] sm:$0xf]
    %v2528 = vunpack.c.l.b16 %v2200
    %v2529 = vunpack.c.h.b16 %v2200
    %v2530 = vunpack.c.l.b16 %v2201
    %v2531 = vunpack.c.h.b16 %v2201
    %v2532 = vunpack.c.l.b16 %v2202
    %v2533 = vunpack.c.h.b16 %v2202
    %v2534 = vunpack.c.l.b16 %v2203
    %v2535 = vunpack.c.h.b16 %v2203
    %v2536 = vunpack.c.l.b16 %v2204
    %v2537 = vunpack.c.h.b16 %v2204
    %v2538 = vunpack.c.l.b16 %v2205
    %v2539 = vunpack.c.h.b16 %v2205
    %v2540 = vunpack.c.l.b16 %v2206
    %v2541 = vunpack.c.h.b16 %v2206
    %v2542 = vunpack.c.l.b16 %v2207
    %v2543 = vunpack.c.h.b16 %v2207
    %v2544 = vunpack.c.l.b16 %v2208
    %v2545 = vunpack.c.h.b16 %v2208
    %v2546 = vunpack.c.l.b16 %v2209
    %v2547 = vunpack.c.h.b16 %v2209
    %v2548 = vunpack.c.l.b16 %v2210
    %v2549 = vunpack.c.h.b16 %v2210
    %v2550 = vunpack.c.l.b16 %v2211
    %v2551 = vunpack.c.h.b16 %v2211
    %v2552 = vunpack.c.l.b16 %v2212
    %v2553 = vunpack.c.h.b16 %v2212
    %v2554 = vunpack.c.l.b16 %v2213
    %v2555 = vunpack.c.h.b16 %v2213
    %v2556 = vunpack.c.l.b16 %v2214
    %v2557 = vunpack.c.h.b16 %v2214
    %v2558 = vunpack.c.l.b16 %v2215
    %v2559 = vunpack.c.h.b16 %v2215
    %v2560 = vunpack.c.l.b16 %v2216
    %v2561 = vunpack.c.h.b16 %v2216
    %v2562 = vunpack.c.l.b16 %v2217
    %v2563 = vunpack.c.h.b16 %v2217
    %v2564 = vunpack.c.l.b16 %v2218
    %v2565 = vunpack.c.h.b16 %v2218
    %v2566 = vunpack.c.l.b16 %v2219
    %v2567 = vunpack.c.h.b16 %v2219
    %v2568 = vunpack.c.l.b16 %v2220
    %v2569 = vunpack.c.h.b16 %v2220
    %v2570 = vunpack.c.l.b16 %v2221
    %v2571 = vunpack.c.h.b16 %v2221
    %v2572 = vunpack.c.l.b16 %v2222
    %v2573 = vunpack.c.h.b16 %v2222
    %v2574 = vunpack.c.l.b16 %v2223
    %v2575 = vunpack.c.h.b16 %v2223
    %v2576 = vunpack.c.l.b16 %v2224
    %v2577 = vunpack.c.h.b16 %v2224
    %v2578 = vunpack.c.l.b16 %v2225
    %v2579 = vunpack.c.h.b16 %v2225
    %v2580 = vunpack.c.l.b16 %v2226
    %v2581 = vunpack.c.h.b16 %v2226
    %v2582 = vunpack.c.l.b16 %v2227
    %v2583 = vunpack.c.h.b16 %v2227
    %v2584 = vunpack.c.l.b16 %v2228
    %v2585 = vunpack.c.h.b16 %v2228
    %v2586 = vunpack.c.l.b16 %v2229
    %v2587 = vunpack.c.h.b16 %v2229
    %v2588 = vunpack.c.l.b16 %v2230
    %v2589 = vunpack.c.h.b16 %v2230
    %v2590 = vunpack.c.l.b16 %v2231
    %v2591 = vunpack.c.h.b16 %v2231
    %v2592 = vunpack.c.l.b16 %v2232
    %v2593 = vunpack.c.h.b16 %v2232
    %v2594 = vunpack.c.l.b16 %v2233
    %v2595 = vunpack.c.h.b16 %v2233
    %v2596 = vunpack.c.l.b16 %v2234
    %v2597 = vunpack.c.h.b16 %v2234
    %v2598 = vunpack.c.l.b16 %v2235
    %v2599 = vunpack.c.h.b16 %v2235
    %v2600 = vunpack.c.l.b16 %v2236
    %v2601 = vunpack.c.h.b16 %v2236
    %v2602 = vunpack.c.l.b16 %v2237
    %v2603 = vunpack.c.h.b16 %v2237
    %v2604 = vunpack.c.l.b16 %v2238
    %v2605 = vunpack.c.h.b16 %v2238
    %v2606 = vunpack.c.l.b16 %v2239
    %v2607 = vunpack.c.h.b16 %v2239
    %v2608 = vunpack.c.l.b16 %v2240
    %v2609 = vunpack.c.h.b16 %v2240
    %v2610 = vunpack.c.l.b16 %v2241
    %v2611 = vunpack.c.h.b16 %v2241
    %v2612 = vunpack.c.l.b16 %v2242
    %v2613 = vunpack.c.h.b16 %v2242
    %v2614 = vunpack.c.l.b16 %v2243
    %v2615 = vunpack.c.h.b16 %v2243
    %v2616 = vunpack.c.l.b16 %v2244
    %v2617 = vunpack.c.h.b16 %v2244
    %v2618 = vunpack.c.l.b16 %v2245
    %v2619 = vunpack.c.h.b16 %v2245
    %v2620 = vunpack.c.l.b16 %v2246
    %v2621 = vunpack.c.h.b16 %v2246
    %v2622 = vunpack.c.l.b16 %v2247
    %v2623 = vunpack.c.h.b16 %v2247
    %v2624 = vunpack.c.l.b16 %v2248
    %v2625 = vunpack.c.h.b16 %v2248
    %v2626 = vunpack.c.l.b16 %v2249
    %v2627 = vunpack.c.h.b16 %v2249
    %v2628 = vunpack.c.l.b16 %v2250
    %v2629 = vunpack.c.h.b16 %v2250
    %v2630 = vunpack.c.l.b16 %v2251
    %v2631 = vunpack.c.h.b16 %v2251
    %v2632 = vunpack.c.l.b16 %v2252
    %v2633 = vunpack.c.h.b16 %v2252
    %v2634 = vunpack.c.l.b16 %v2253
    %v2635 = vunpack.c.h.b16 %v2253
    %v2636 = vunpack.c.l.b16 %v2254
    %v2637 = vunpack.c.h.b16 %v2254
    %v2638 = vunpack.c.l.b16 %v2255
    %v2639 = vunpack.c.h.b16 %v2255
    %v2640 = vpack.c.b16 %v2542, %v2528
    %v2641 = vpack.c.b16 %v2543, %v2529
    %v2642 = vpack.c.b16 %v2544, %v2530
    %v2643 = vpack.c.b16 %v2545, %v2531
    %v2644 = vpack.c.b16 %v2546, %v2532
    %v2645 = vpack.c.b16 %v2547, %v2533
    %v2646 = vpack.c.b16 %v2548, %v2534
    %v2647 = vpack.c.b16 %v2549, %v2535
    %v2648 = vpack.c.b16 %v2550, %v2536
    %v2649 = vpack.c.b16 %v2551, %v2537
    %v2650 = vpack.c.b16 %v2552, %v2538
    %v2651 = vpack.c.b16 %v2553, %v2539
    %v2652 = vpack.c.b16 %v2554, %v2540
    %v2653 = vpack.c.b16 %v2555, %v2541
    %v2654 = vpack.c.b16 %v2570, %v2556
    %v2655 = vpack.c.b16 %v2571, %v2557
    %v2656 = vpack.c.b16 %v2572, %v2558
    %v2657 = vpack.c.b16 %v2573, %v2559
    %v2658 = vpack.c.b16 %v2574, %v2560
    %v2659 = vpack.c.b16 %v2575, %v2561
    %v2660 = vpack.c.b16 %v2576, %v2562
    %v2661 = vpack.c.b16 %v2577, %v2563
    %v2662 = vpack.c.b16 %v2578, %v2564
    %v2663 = vpack.c.b16 %v2579, %v2565
    %v2664 = vpack.c.b16 %v2580, %v2566
    %v2665 = vpack.c.b16 %v2581, %v2567
    %v2666 = vpack.c.b16 %v2582, %v2568
    %v2667 = vpack.c.b16 %v2583, %v2569
    %v2668 = vpack.c.b16 %v2598, %v2584
    %v2669 = vpack.c.b16 %v2599, %v2585
    %v2670 = vpack.c.b16 %v2600, %v2586
    %v2671 = vpack.c.b16 %v2601, %v2587
    %v2672 = vpack.c.b16 %v2602, %v2588
    %v2673 = vpack.c.b16 %v2603, %v2589
    %v2674 = vpack.c.b16 %v2604, %v2590
    %v2675 = vpack.c.b16 %v2605, %v2591
    %v2676 = vpack.c.b16 %v2606, %v2592
    %v2677 = vpack.c.b16 %v2607, %v2593
    %v2678 = vpack.c.b16 %v2608, %v2594
    %v2679 = vpack.c.b16 %v2609, %v2595
    %v2680 = vpack.c.b16 %v2610, %v2596
    %v2681 = vpack.c.b16 %v2611, %v2597
    %v2682 = vpack.c.b16 %v2626, %v2612
    %v2683 = vpack.c.b16 %v2627, %v2613
    %v2684 = vpack.c.b16 %v2628, %v2614
    %v2685 = vpack.c.b16 %v2629, %v2615
    %v2686 = vpack.c.b16 %v2630, %v2616
    %v2687 = vpack.c.b16 %v2631, %v2617
    %v2688 = vpack.c.b16 %v2632, %v2618
    %v2689 = vpack.c.b16 %v2633, %v2619
    %v2690 = vpack.c.b16 %v2634, %v2620
    %v2691 = vpack.c.b16 %v2635, %v2621
    %v2692 = vpack.c.b16 %v2636, %v2622
    %v2693 = vpack.c.b16 %v2637, %v2623
    %v2694 = vpack.c.b16 %v2638, %v2624
    %v2695 = vpack.c.b16 %v2639, %v2625
    %v2964 = vunpack.c.l.b16 %v2256
    %v2965 = vunpack.c.l.b16 %v2257
    %v2966 = vunpack.c.l.b16 %v2258
    %v2967 = vunpack.c.l.b16 %v2259
    %v2968 = vunpack.c.l.b16 %v2260
    %v2969 = vunpack.c.l.b16 %v2261
    %v2970 = vunpack.c.l.b16 %v2262
    %v2971 = vunpack.c.l.b16 %v2263
    %v2972 = vunpack.c.l.b16 %v2264
    %v2973 = vunpack.c.l.b16 %v2265
    %v2974 = vunpack.c.l.b16 %v2266
    %v2975 = vunpack.c.l.b16 %v2267
    %v2976 = vunpack.c.l.b16 %v2268
    %v2977 = vunpack.c.l.b16 %v2269
    %v2978 = vunpack.c.l.b16 %v2270
    %v2979 = vunpack.c.l.b16 %v2271
    %v2980 = vunpack.c.l.b16 %v2272
    %v2981 = vunpack.c.l.b16 %v2273
    %v2982 = vunpack.c.l.b16 %v2274
    %v2983 = vunpack.c.l.b16 %v2275
    %v2984 = vunpack.c.l.b16 %v2276
    %v2985 = vunpack.c.l.b16 %v2277
    %v2986 = vunpack.c.l.b16 %v2278
    %v2987 = vunpack.c.l.b16 %v2279
    %v2988 = vunpack.c.l.b16 %v2280
    %v2989 = vunpack.c.l.b16 %v2281
    %v2990 = vunpack.c.l.b16 %v2282
    %v2991 = vunpack.c.l.b16 %v2283
    %v2992 = vunpack.c.l.b16 %v2284
    %v2993 = vunpack.c.l.b16 %v2285
    %v2994 = vunpack.c.l.b16 %v2286
    %v2995 = vunpack.c.l.b16 %v2287
    %v2996 = vunpack.c.l.b16 %v2288
    %v2997 = vunpack.c.l.b16 %v2289
    %v2998 = vunpack.c.l.b16 %v2290
    %v2999 = vunpack.c.l.b16 %v2291
    %v3000 = vunpack.c.l.b16 %v2292
    %v3001 = vunpack.c.l.b16 %v2293
    %v3002 = vunpack.c.l.b16 %v2294
    %v3003 = vunpack.c.l.b16 %v2295
    %v3004 = vunpack.c.l.b16 %v2296
    %v3005 = vunpack.c.l.b16 %v2297
    %v3006 = vunpack.c.l.b16 %v2298
    %v3007 = vunpack.c.l.b16 %v2299
    %v3008 = vunpack.c.l.b16 %v2300
    %v3009 = vunpack.c.l.b16 %v2301
    %v3010 = vunpack.c.l.b16 %v2302
    %v3011 = vunpack.c.l.b16 %v2303
    %v3012 = vunpack.c.l.b16 %v2304
    %v3013 = vunpack.c.l.b16 %v2305
    %v3014 = vunpack.c.l.b16 %v2306
    %v3015 = vunpack.c.l.b16 %v2307
    %v3016 = vunpack.c.l.b16 %v2308
    %v3017 = vunpack.c.l.b16 %v2309
    %v3018 = vunpack.c.l.b16 %v2310
    %v3019 = vunpack.c.l.b16 %v2311
    %v3020 = vunpack.c.l.b16 %v2312
    %v3021 = vunpack.c.l.b16 %v2313
    %v3022 = vunpack.c.l.b16 %v2314
    %v3023 = vunpack.c.l.b16 %v2315
    %v3024 = vunpack.c.l.b16 %v2316
    %v3025 = vunpack.c.l.b16 %v2317
    %v3026 = vunpack.c.l.b16 %v2318
    %v3027 = vunpack.c.l.b16 %v2319
    %v3028 = vunpack.c.l.b16 %v2320
    %v3029 = vunpack.c.l.b16 %v2321
    %v3030 = vunpack.c.l.b16 %v2322
    %v3031 = vunpack.c.l.b16 %v2323
    %v3032 = vunpack.c.l.b16 %v2324
    %v3033 = vunpack.c.l.b16 %v2325
    %v3034 = vunpack.c.l.b16 %v2326
    %v3035 = vunpack.c.l.b16 %v2327
    %v3036 = vunpack.c.l.b16 %v2328
    %v3037 = vunpack.c.l.b16 %v2329
    %v3038 = vunpack.c.l.b16 %v2330
    %v3039 = vunpack.c.l.b16 %v2331
    %v3040 = vunpack.c.l.b16 %v2332
    %v3041 = vunpack.c.l.b16 %v2333
    %v3042 = vunpack.c.l.b16 %v2334
    %v3043 = vunpack.c.l.b16 %v2335
    %v3044 = vunpack.c.l.b16 %v2336
    %v3045 = vunpack.c.l.b16 %v2337
    %v3046 = vunpack.c.l.b16 %v2338
    %v3047 = vunpack.c.l.b16 %v2339
    %v3048 = vunpack.c.l.b16 %v2340
    %v3049 = vunpack.c.l.b16 %v2341
    %v3050 = vunpack.c.l.b16 %v2342
    %v3051 = vunpack.c.l.b16 %v2343
    %v3052 = vunpack.c.l.b16 %v2344
    %v3053 = vunpack.c.l.b16 %v2345
    %v3054 = vunpack.c.l.b16 %v2346
    %v3055 = vunpack.c.l.b16 %v2347
    %v3056 = vunpack.c.l.b16 %v2348
    %v3057 = vunpack.c.l.b16 %v2349
    %v3058 = vunpack.c.l.b16 %v2350
    %v3059 = vunpack.c.l.b16 %v2351
    %v3060 = vunpack.c.l.b16 %v2352
    %v3061 = vunpack.c.l.b16 %v2353
    %v3062 = vunpack.c.l.b16 %v2354
    %v3063 = vunpack.c.l.b16 %v2355
    %v3064 = vunpack.c.l.b16 %v2356
    %v3065 = vunpack.c.l.b16 %v2357
    %v3066 = vunpack.c.l.b16 %v2358
    %v3067 = vunpack.c.l.b16 %v2359
    %v3068 = vunpack.c.l.b16 %v2360
    %v3069 = vunpack.c.l.b16 %v2361
    %v3070 = vunpack.c.l.b16 %v2362
    %v3071 = vunpack.c.l.b16 %v2363
    %v3072 = vunpack.c.l.b16 %v2364
    %v3073 = vunpack.c.l.b16 %v2365
    %v3074 = vunpack.c.l.b16 %v2366
    %v3075 = vunpack.c.l.b16 %v2367
    %v3076 = vunpack.c.l.b16 %v2368
    %v3077 = vunpack.c.l.b16 %v2369
    %v3078 = vunpack.c.l.b16 %v2370
    %v3079 = vunpack.c.l.b16 %v2371
    %v3080 = vunpack.c.l.b16 %v2372
    %v3081 = vunpack.c.l.b16 %v2373
    %v3082 = vunpack.c.l.b16 %v2374
    %v3083 = vunpack.c.l.b16 %v2375
    %v3084 = vunpack.c.l.b16 %v2376
    %v3085 = vunpack.c.l.b16 %v2377
    %v3086 = vunpack.c.l.b16 %v2378
    %v3087 = vunpack.c.l.b16 %v2379
    %v3088 = vunpack.c.l.b16 %v2380
    %v3089 = vunpack.c.l.b16 %v2381
    %v3090 = vunpack.c.l.b16 %v2382
    %v3091 = vunpack.c.l.b16 %v2383
    %v3092 = vunpack.c.l.b16 %v2384
    %v3093 = vunpack.c.l.b16 %v2385
    %v3094 = vunpack.c.l.b16 %v2386
    %v3095 = vunpack.c.l.b16 %v2387
    %v3096 = vunpack.c.l.b16 %v2388
    %v3097 = vunpack.c.l.b16 %v2389
    %v3098 = vunpack.c.l.b16 %v2390
    %v3099 = vunpack.c.l.b16 %v2391
    %v3100 = vunpack.c.l.b16 %v2392
    %v3101 = vunpack.c.l.b16 %v2393
    %v3102 = vunpack.c.l.b16 %v2394
    %v3103 = vunpack.c.l.b16 %v2395
    %v3104 = vunpack.c.l.b16 %v2396
    %v3105 = vunpack.c.l.b16 %v2397
    %v3106 = vunpack.c.l.b16 %v2398
    %v3107 = vunpack.c.l.b16 %v2399
    %v3108 = vunpack.c.l.b16 %v2400
    %v3109 = vunpack.c.l.b16 %v2401
    %v3110 = vunpack.c.l.b16 %v2402
    %v3111 = vunpack.c.l.b16 %v2403
    %v3112 = vunpack.c.l.b16 %v2404
    %v3113 = vunpack.c.l.b16 %v2405
    %v3114 = vunpack.c.l.b16 %v2406
    %v3115 = vunpack.c.l.b16 %v2407
    %v3116 = vunpack.c.l.b16 %v2408
    %v3117 = vunpack.c.l.b16 %v2409
    %v3118 = vunpack.c.l.b16 %v2410
    %v3119 = vunpack.c.l.b16 %v2411
    %v3120 = vunpack.c.l.b16 %v2412
    %v3121 = vunpack.c.l.b16 %v2413
    %v3122 = vunpack.c.l.b16 %v2414
    %v3123 = vunpack.c.l.b16 %v2415
    %v3124 = vunpack.c.l.b16 %v2416
    %v3125 = vunpack.c.l.b16 %v2417
    %v3126 = vunpack.c.l.b16 %v2418
    %v3127 = vunpack.c.l.b16 %v2419
    %v3128 = vunpack.c.l.b16 %v2420
    %v3129 = vunpack.c.l.b16 %v2421
    %v3130 = vunpack.c.l.b16 %v2422
    %v3131 = vunpack.c.l.b16 %v2423
    %v3132 = vunpack.c.l.b16 %v2424
    %v3133 = vunpack.c.l.b16 %v2425
    %v3134 = vunpack.c.l.b16 %v2426
    %v3135 = vunpack.c.l.b16 %v2427
    %v3136 = vunpack.c.l.b16 %v2428
    %v3137 = vunpack.c.l.b16 %v2429
    %v3138 = vunpack.c.l.b16 %v2430
    %v3139 = vunpack.c.l.b16 %v2431
    %v3140 = vunpack.c.l.b16 %v2432
    %v3141 = vunpack.c.l.b16 %v2433
    %v3142 = vunpack.c.l.b16 %v2434
    %v3143 = vunpack.c.l.b16 %v2435
    %v3144 = vunpack.c.l.b16 %v2436
    %v3145 = vunpack.c.l.b16 %v2437
    %v3146 = vunpack.c.l.b16 %v2438
    %v3147 = vunpack.c.l.b16 %v2439
    %v3148 = vunpack.c.l.b16 %v2440
    %v3149 = vunpack.c.l.b16 %v2441
    %v3150 = vunpack.c.l.b16 %v2442
    %v3151 = vunpack.c.l.b16 %v2443
    %v3152 = vunpack.c.l.b16 %v2444
    %v3153 = vunpack.c.l.b16 %v2445
    %v3154 = vunpack.c.l.b16 %v2446
    %v3155 = vunpack.c.l.b16 %v2447
    %v3156 = vunpack.c.l.b16 %v2448
    %v3157 = vunpack.c.l.b16 %v2449
    %v3158 = vunpack.c.l.b16 %v2450
    %v3159 = vunpack.c.l.b16 %v2451
    %v3160 = vunpack.c.l.b16 %v2452
    %v3161 = vunpack.c.l.b16 %v2453
    %v3162 = vunpack.c.l.b16 %v2454
    %v3163 = vunpack.c.l.b16 %v2455
    %v3164 = vunpack.c.l.b16 %v2456
    %v3165 = vunpack.c.l.b16 %v2457
    %v3166 = vunpack.c.l.b16 %v2458
    %v3167 = vunpack.c.l.b16 %v2459
    %v3168 = vunpack.c.l.b16 %v2460
    %v3169 = vunpack.c.l.b16 %v2461
    %v3170 = vunpack.c.l.b16 %v2462
    %v3171 = vunpack.c.l.b16 %v2463
    %v3172 = vunpack.c.l.b16 %v2464
    %v3173 = vunpack.c.l.b16 %v2465
    %v3174 = vunpack.c.l.b16 %v2466
    %v3175 = vunpack.c.l.b16 %v2467
    %v3176 = vunpack.c.l.b16 %v2468
    %v3177 = vunpack.c.l.b16 %v2469
    %v3178 = vunpack.c.l.b16 %v2470
    %v3179 = vunpack.c.l.b16 %v2471
    %v3180 = vpack.c.b16 %v2965, %v2964
    %v3181 = vpack.c.b16 %v2967, %v2966
    %v3182 = vpack.c.b16 %v2969, %v2968
    %v3183 = vpack.c.b16 %v2971, %v2970
    %v3184 = vpack.c.b16 %v2973, %v2972
    %v3185 = vpack.c.b16 %v2975, %v2974
    %v3186 = vpack.c.b16 %v2977, %v2976
    %v3187 = vpack.c.b16 %v2979, %v2978
    %v3188 = vpack.c.b16 %v2981, %v2980
    %v3189 = vpack.c.b16 %v2983, %v2982
    %v3190 = vpack.c.b16 %v2985, %v2984
    %v3191 = vpack.c.b16 %v2987, %v2986
    %v3192 = vpack.c.b16 %v2989, %v2988
    %v3193 = vpack.c.b16 %v2991, %v2990
    %v3194 = vpack.c.b16 %v2993, %v2992
    %v3195 = vpack.c.b16 %v2995, %v2994
    %v3196 = vpack.c.b16 %v2997, %v2996
    %v3197 = vpack.c.b16 %v2999, %v2998
    %v3198 = vpack.c.b16 %v3001, %v3000
    %v3199 = vpack.c.b16 %v3003, %v3002
    %v3200 = vpack.c.b16 %v3005, %v3004
    %v3201 = vpack.c.b16 %v3007, %v3006
    %v3202 = vpack.c.b16 %v3009, %v3008
    %v3203 = vpack.c.b16 %v3011, %v3010
    %v3204 = vpack.c.b16 %v3013, %v3012
    %v3205 = vpack.c.b16 %v3015, %v3014
    %v3206 = vpack.c.b16 %v3017, %v3016
    %v3207 = vpack.c.b16 %v3019, %v3018
    %v3208 = vpack.c.b16 %v3021, %v3020
    %v3209 = vpack.c.b16 %v3023, %v3022
    %v3210 = vpack.c.b16 %v3025, %v3024
    %v3211 = vpack.c.b16 %v3027, %v3026
    %v3212 = vpack.c.b16 %v3029, %v3028
    %v3213 = vpack.c.b16 %v3031, %v3030
    %v3214 = vpack.c.b16 %v3033, %v3032
    %v3215 = vpack.c.b16 %v3035, %v3034
    %v3216 = vpack.c.b16 %v3037, %v3036
    %v3217 = vpack.c.b16 %v3039, %v3038
    %v3218 = vpack.c.b16 %v3041, %v3040
    %v3219 = vpack.c.b16 %v3043, %v3042
    %v3220 = vpack.c.b16 %v3045, %v3044
    %v3221 = vpack.c.b16 %v3047, %v3046
    %v3222 = vpack.c.b16 %v3049, %v3048
    %v3223 = vpack.c.b16 %v3051, %v3050
    %v3224 = vpack.c.b16 %v3053, %v3052
    %v3225 = vpack.c.b16 %v3055, %v3054
    %v3226 = vpack.c.b16 %v3057, %v3056
    %v3227 = vpack.c.b16 %v3059, %v3058
    %v3228 = vpack.c.b16 %v3061, %v3060
    %v3229 = vpack.c.b16 %v3063, %v3062
    %v3230 = vpack.c.b16 %v3065, %v3064
    %v3231 = vpack.c.b16 %v3067, %v3066
    %v3232 = vpack.c.b16 %v3069, %v3068
    %v3233 = vpack.c.b16 %v3071, %v3070
    %v3234 = vpack.c.b16 %v3073, %v3072
    %v3235 = vpack.c.b16 %v3075, %v3074
    %v3236 = vpack.c.b16 %v3077, %v3076
    %v3237 = vpack.c.b16 %v3079, %v3078
    %v3238 = vpack.c.b16 %v3081, %v3080
    %v3239 = vpack.c.b16 %v3083, %v3082
    %v3240 = vpack.c.b16 %v3085, %v3084
    %v3241 = vpack.c.b16 %v3087, %v3086
    %v3242 = vpack.c.b16 %v3089, %v3088
    %v3243 = vpack.c.b16 %v3091, %v3090
    %v3244 = vpack.c.b16 %v3093, %v3092
    %v3245 = vpack.c.b16 %v3095, %v3094
    %v3246 = vpack.c.b16 %v3097, %v3096
    %v3247 = vpack.c.b16 %v3099, %v3098
    %v3248 = vpack.c.b16 %v3101, %v3100
    %v3249 = vpack.c.b16 %v3103, %v3102
    %v3250 = vpack.c.b16 %v3105, %v3104
    %v3251 = vpack.c.b16 %v3107, %v3106
    %v3252 = vpack.c.b16 %v3109, %v3108
    %v3253 = vpack.c.b16 %v3111, %v3110
    %v3254 = vpack.c.b16 %v3113, %v3112
    %v3255 = vpack.c.b16 %v3115, %v3114
    %v3256 = vpack.c.b16 %v3117, %v3116
    %v3257 = vpack.c.b16 %v3119, %v3118
    %v3258 = vpack.c.b16 %v3121, %v3120
    %v3259 = vpack.c.b16 %v3123, %v3122
    %v3260 = vpack.c.b16 %v3125, %v3124
    %v3261 = vpack.c.b16 %v3127, %v3126
    %v3262 = vpack.c.b16 %v3129, %v3128
    %v3263 = vpack.c.b16 %v3131, %v3130
    %v3264 = vpack.c.b16 %v3133, %v3132
    %v3265 = vpack.c.b16 %v3135, %v3134
    %v3266 = vpack.c.b16 %v3137, %v3136
    %v3267 = vpack.c.b16 %v3139, %v3138
    %v3268 = vpack.c.b16 %v3141, %v3140
    %v3269 = vpack.c.b16 %v3143, %v3142
    %v3270 = vpack.c.b16 %v3145, %v3144
    %v3271 = vpack.c.b16 %v3147, %v3146
    %v3272 = vpack.c.b16 %v3149, %v3148
    %v3273 = vpack.c.b16 %v3151, %v3150
    %v3274 = vpack.c.b16 %v3153, %v3152
    %v3275 = vpack.c.b16 %v3155, %v3154
    %v3276 = vpack.c.b16 %v3157, %v3156
    %v3277 = vpack.c.b16 %v3159, %v3158
    %v3278 = vpack.c.b16 %v3161, %v3160
    %v3279 = vpack.c.b16 %v3163, %v3162
    %v3280 = vpack.c.b16 %v3165, %v3164
    %v3281 = vpack.c.b16 %v3167, %v3166
    %v3282 = vpack.c.b16 %v3169, %v3168
    %v3283 = vpack.c.b16 %v3171, %v3170
    %v3284 = vpack.c.b16 %v3173, %v3172
    %v3285 = vpack.c.b16 %v3175, %v3174
    %v3286 = vpack.c.b16 %v3177, %v3176
    %v3287 = vpack.c.b16 %v3179, %v3178
    %vm3396 = vcmask 523264
    %v3398 = vsel %vm3396, %v2653, 0
    %v3401 = vsel %vm3396, %v2667, 0
    %v3404 = vsel %vm3396, %v2681, 0
    %v3407 = vsel %vm3396, %v2695, 0
    %3409 = vmatpush.bf16.msra.mxu0 %v3187
    %3410 = vmatpush.bf16.msra.mxu0 %v3186
    %3411 = vmatpush.bf16.msra.mxu0 %v3185
    %3412 = vmatpush.bf16.msra.mxu0 %v3184
    %3413 = vmatpush.bf16.msra.mxu0 %v3183
    %3414 = vmatpush.bf16.msra.mxu0 %v3182
    %3415 = vmatpush.bf16.msra.mxu0 %v3181
    %3416 = vmatpush.bf16.msra.mxu0 %v3180
    %3417 = vmatmul.bf16.gmra.mxu0 %v2640
    %v3418 = vpop.f32.mrf.mxu0
    %v3419 = vadd.f32 0.0, %v3418
    %v3420 = vpop.f32.mrf.mxu0
    %v3421 = vadd.f32 0.0, %v3420
    %3422 = vmatmul.bf16.gmra.mxu0 %v2654
    %v3423 = vpop.f32.mrf.mxu0
    %v3424 = vadd.f32 0.0, %v3423
    %v3425 = vpop.f32.mrf.mxu0
    %v3426 = vadd.f32 0.0, %v3425
    %3427 = vmatmul.bf16.gmra.mxu0 %v2668
    %v3428 = vpop.f32.mrf.mxu0
    %v3429 = vadd.f32 0.0, %v3428
    %v3430 = vpop.f32.mrf.mxu0
    %v3431 = vadd.f32 0.0, %v3430
    %3432 = vmatmul.bf16.gmra.mxu0 %v2682
    %v3433 = vpop.f32.mrf.mxu0
    %v3434 = vadd.f32 0.0, %v3433
    %v3435 = vpop.f32.mrf.mxu0
    %v3436 = vadd.f32 0.0, %v3435
    %3437 = vdwg.mxu0
    %3438 = vmatpush.bf16.msra.mxu0 %v3195
    %3439 = vmatpush.bf16.msra.mxu0 %v3194
    %3440 = vmatpush.bf16.msra.mxu0 %v3193
    %3441 = vmatpush.bf16.msra.mxu0 %v3192
    %3442 = vmatpush.bf16.msra.mxu0 %v3191
    %3443 = vmatpush.bf16.msra.mxu0 %v3190
    %3444 = vmatpush.bf16.msra.mxu0 %v3189
    %3445 = vmatpush.bf16.msra.mxu0 %v3188
    %3446 = vmatmul.bf16.gmra.mxu0 %v2641
    %v3447 = vpop.f32.mrf.mxu0
    %v3448 = vadd.f32 %v3419, %v3447
    %v3449 = vpop.f32.mrf.mxu0
    %v3450 = vadd.f32 %v3421, %v3449
    %3451 = vmatmul.bf16.gmra.mxu0 %v2655
    %v3452 = vpop.f32.mrf.mxu0
    %v3453 = vadd.f32 %v3424, %v3452
    %v3454 = vpop.f32.mrf.mxu0
    %v3455 = vadd.f32 %v3426, %v3454
    %3456 = vmatmul.bf16.gmra.mxu0 %v2669
    %v3457 = vpop.f32.mrf.mxu0
    %v3458 = vadd.f32 %v3429, %v3457
    %v3459 = vpop.f32.mrf.mxu0
    %v3460 = vadd.f32 %v3431, %v3459
    %3461 = vmatmul.bf16.gmra.mxu0 %v2683
    %v3462 = vpop.f32.mrf.mxu0
    %v3463 = vadd.f32 %v3434, %v3462
    %v3464 = vpop.f32.mrf.mxu0
    %v3465 = vadd.f32 %v3436, %v3464
    %3466 = vdwg.mxu0
    %3467 = vmatpush.bf16.msra.mxu0 %v3203
    %3468 = vmatpush.bf16.msra.mxu0 %v3202
    %3469 = vmatpush.bf16.msra.mxu0 %v3201
    %3470 = vmatpush.bf16.msra.mxu0 %v3200
    %3471 = vmatpush.bf16.msra.mxu0 %v3199
    %3472 = vmatpush.bf16.msra.mxu0 %v3198
    %3473 = vmatpush.bf16.msra.mxu0 %v3197
    %3474 = vmatpush.bf16.msra.mxu0 %v3196
    %3475 = vmatmul.bf16.gmra.mxu0 %v2642
    %v3476 = vpop.f32.mrf.mxu0
    %v3477 = vadd.f32 %v3448, %v3476
    %v3478 = vpop.f32.mrf.mxu0
    %v3479 = vadd.f32 %v3450, %v3478
    %3480 = vmatmul.bf16.gmra.mxu0 %v2656
    %v3481 = vpop.f32.mrf.mxu0
    %v3482 = vadd.f32 %v3453, %v3481
    %v3483 = vpop.f32.mrf.mxu0
    %v3484 = vadd.f32 %v3455, %v3483
    %3485 = vmatmul.bf16.gmra.mxu0 %v2670
    %v3486 = vpop.f32.mrf.mxu0
    %v3487 = vadd.f32 %v3458, %v3486
    %v3488 = vpop.f32.mrf.mxu0
    %v3489 = vadd.f32 %v3460, %v3488
    %3490 = vmatmul.bf16.gmra.mxu0 %v2684
    %v3491 = vpop.f32.mrf.mxu0
    %v3492 = vadd.f32 %v3463, %v3491
    %v3493 = vpop.f32.mrf.mxu0
    %v3494 = vadd.f32 %v3465, %v3493
    %3495 = vdwg.mxu0
    %3496 = vmatpush.bf16.msra.mxu0 %v3211
    %3497 = vmatpush.bf16.msra.mxu0 %v3210
    %3498 = vmatpush.bf16.msra.mxu0 %v3209
    %3499 = vmatpush.bf16.msra.mxu0 %v3208
    %3500 = vmatpush.bf16.msra.mxu0 %v3207
    %3501 = vmatpush.bf16.msra.mxu0 %v3206
    %3502 = vmatpush.bf16.msra.mxu0 %v3205
    %3503 = vmatpush.bf16.msra.mxu0 %v3204
    %3504 = vmatmul.bf16.gmra.mxu0 %v2643
    %v3505 = vpop.f32.mrf.mxu0
    %v3506 = vadd.f32 %v3477, %v3505
    %v3507 = vpop.f32.mrf.mxu0
    %v3508 = vadd.f32 %v3479, %v3507
    %3509 = vmatmul.bf16.gmra.mxu0 %v2657
    %v3510 = vpop.f32.mrf.mxu0
    %v3511 = vadd.f32 %v3482, %v3510
    %v3512 = vpop.f32.mrf.mxu0
    %v3513 = vadd.f32 %v3484, %v3512
    %3514 = vmatmul.bf16.gmra.mxu0 %v2671
    %v3515 = vpop.f32.mrf.mxu0
    %v3516 = vadd.f32 %v3487, %v3515
    %v3517 = vpop.f32.mrf.mxu0
    %v3518 = vadd.f32 %v3489, %v3517
    %3519 = vmatmul.bf16.gmra.mxu0 %v2685
    %v3520 = vpop.f32.mrf.mxu0
    %v3521 = vadd.f32 %v3492, %v3520
    %v3522 = vpop.f32.mrf.mxu0
    %v3523 = vadd.f32 %v3494, %v3522
    %3524 = vdwg.mxu0
    %3525 = vmatpush.bf16.msra.mxu0 %v3219
    %3526 = vmatpush.bf16.msra.mxu0 %v3218
    %3527 = vmatpush.bf16.msra.mxu0 %v3217
    %3528 = vmatpush.bf16.msra.mxu0 %v3216
    %3529 = vmatpush.bf16.msra.mxu0 %v3215
    %3530 = vmatpush.bf16.msra.mxu0 %v3214
    %3531 = vmatpush.bf16.msra.mxu0 %v3213
    %3532 = vmatpush.bf16.msra.mxu0 %v3212
    %3533 = vmatmul.bf16.gmra.mxu0 %v2644
    %v3534 = vpop.f32.mrf.mxu0
    %v3535 = vadd.f32 %v3506, %v3534
    %v3536 = vpop.f32.mrf.mxu0
    %v3537 = vadd.f32 %v3508, %v3536
    %3538 = vmatmul.bf16.gmra.mxu0 %v2658
    %v3539 = vpop.f32.mrf.mxu0
    %v3540 = vadd.f32 %v3511, %v3539
    %v3541 = vpop.f32.mrf.mxu0
    %v3542 = vadd.f32 %v3513, %v3541
    %3543 = vmatmul.bf16.gmra.mxu0 %v2672
    %v3544 = vpop.f32.mrf.mxu0
    %v3545 = vadd.f32 %v3516, %v3544
    %v3546 = vpop.f32.mrf.mxu0
    %v3547 = vadd.f32 %v3518, %v3546
    %3548 = vmatmul.bf16.gmra.mxu0 %v2686
    %v3549 = vpop.f32.mrf.mxu0
    %v3550 = vadd.f32 %v3521, %v3549
    %v3551 = vpop.f32.mrf.mxu0
    %v3552 = vadd.f32 %v3523, %v3551
    %3553 = vdwg.mxu0
    %3554 = vmatpush.bf16.msra.mxu0 %v3227
    %3555 = vmatpush.bf16.msra.mxu0 %v3226
    %3556 = vmatpush.bf16.msra.mxu0 %v3225
    %3557 = vmatpush.bf16.msra.mxu0 %v3224
    %3558 = vmatpush.bf16.msra.mxu0 %v3223
    %3559 = vmatpush.bf16.msra.mxu0 %v3222
    %3560 = vmatpush.bf16.msra.mxu0 %v3221
    %3561 = vmatpush.bf16.msra.mxu0 %v3220
    %3562 = vmatmul.bf16.gmra.mxu0 %v2645
    %v3563 = vpop.f32.mrf.mxu0
    %v3564 = vadd.f32 %v3535, %v3563
    %v3565 = vpop.f32.mrf.mxu0
    %v3566 = vadd.f32 %v3537, %v3565
    %3567 = vmatmul.bf16.gmra.mxu0 %v2659
    %v3568 = vpop.f32.mrf.mxu0
    %v3569 = vadd.f32 %v3540, %v3568
    %v3570 = vpop.f32.mrf.mxu0
    %v3571 = vadd.f32 %v3542, %v3570
    %3572 = vmatmul.bf16.gmra.mxu0 %v2673
    %v3573 = vpop.f32.mrf.mxu0
    %v3574 = vadd.f32 %v3545, %v3573
    %v3575 = vpop.f32.mrf.mxu0
    %v3576 = vadd.f32 %v3547, %v3575
    %3577 = vmatmul.bf16.gmra.mxu0 %v2687
    %v3578 = vpop.f32.mrf.mxu0
    %v3579 = vadd.f32 %v3550, %v3578
    %v3580 = vpop.f32.mrf.mxu0
    %v3581 = vadd.f32 %v3552, %v3580
    %3582 = vdwg.mxu0
    %3583 = vmatpush.bf16.msra.mxu0 %v3235
    %3584 = vmatpush.bf16.msra.mxu0 %v3234
    %3585 = vmatpush.bf16.msra.mxu0 %v3233
    %3586 = vmatpush.bf16.msra.mxu0 %v3232
    %3587 = vmatpush.bf16.msra.mxu0 %v3231
    %3588 = vmatpush.bf16.msra.mxu0 %v3230
    %3589 = vmatpush.bf16.msra.mxu0 %v3229
    %3590 = vmatpush.bf16.msra.mxu0 %v3228
    %3591 = vmatmul.bf16.gmra.mxu0 %v2646
    %v3592 = vpop.f32.mrf.mxu0
    %v3593 = vadd.f32 %v3564, %v3592
    %v3594 = vpop.f32.mrf.mxu0
    %v3595 = vadd.f32 %v3566, %v3594
    %3596 = vmatmul.bf16.gmra.mxu0 %v2660
    %v3597 = vpop.f32.mrf.mxu0
    %v3598 = vadd.f32 %v3569, %v3597
    %v3599 = vpop.f32.mrf.mxu0
    %v3600 = vadd.f32 %v3571, %v3599
    %3601 = vmatmul.bf16.gmra.mxu0 %v2674
    %v3602 = vpop.f32.mrf.mxu0
    %v3603 = vadd.f32 %v3574, %v3602
    %v3604 = vpop.f32.mrf.mxu0
    %v3605 = vadd.f32 %v3576, %v3604
    %3606 = vmatmul.bf16.gmra.mxu0 %v2688
    %v3607 = vpop.f32.mrf.mxu0
    %v3608 = vadd.f32 %v3579, %v3607
    %v3609 = vpop.f32.mrf.mxu0
    %v3610 = vadd.f32 %v3581, %v3609
    %3611 = vdwg.mxu0
    %3612 = vmatpush.bf16.msra.mxu0 %v3243
    %3613 = vmatpush.bf16.msra.mxu0 %v3242
    %3614 = vmatpush.bf16.msra.mxu0 %v3241
    %3615 = vmatpush.bf16.msra.mxu0 %v3240
    %3616 = vmatpush.bf16.msra.mxu0 %v3239
    %3617 = vmatpush.bf16.msra.mxu0 %v3238
    %3618 = vmatpush.bf16.msra.mxu0 %v3237
    %3619 = vmatpush.bf16.msra.mxu0 %v3236
    %3620 = vmatmul.bf16.gmra.mxu0 %v2647
    %v3621 = vpop.f32.mrf.mxu0
    %v3622 = vadd.f32 %v3593, %v3621
    %v3623 = vpop.f32.mrf.mxu0
    %v3624 = vadd.f32 %v3595, %v3623
    %3625 = vmatmul.bf16.gmra.mxu0 %v2661
    %v3626 = vpop.f32.mrf.mxu0
    %v3627 = vadd.f32 %v3598, %v3626
    %v3628 = vpop.f32.mrf.mxu0
    %v3629 = vadd.f32 %v3600, %v3628
    %3630 = vmatmul.bf16.gmra.mxu0 %v2675
    %v3631 = vpop.f32.mrf.mxu0
    %v3632 = vadd.f32 %v3603, %v3631
    %v3633 = vpop.f32.mrf.mxu0
    %v3634 = vadd.f32 %v3605, %v3633
    %3635 = vmatmul.bf16.gmra.mxu0 %v2689
    %v3636 = vpop.f32.mrf.mxu0
    %v3637 = vadd.f32 %v3608, %v3636
    %v3638 = vpop.f32.mrf.mxu0
    %v3639 = vadd.f32 %v3610, %v3638
    %3640 = vdwg.mxu0
    %3641 = vmatpush.bf16.msra.mxu0 %v3251
    %3642 = vmatpush.bf16.msra.mxu0 %v3250
    %3643 = vmatpush.bf16.msra.mxu0 %v3249
    %3644 = vmatpush.bf16.msra.mxu0 %v3248
    %3645 = vmatpush.bf16.msra.mxu0 %v3247
    %3646 = vmatpush.bf16.msra.mxu0 %v3246
    %3647 = vmatpush.bf16.msra.mxu0 %v3245
    %3648 = vmatpush.bf16.msra.mxu0 %v3244
    %3649 = vmatmul.bf16.gmra.mxu0 %v2648
    %v3650 = vpop.f32.mrf.mxu0
    %v3651 = vadd.f32 %v3622, %v3650
    %v3652 = vpop.f32.mrf.mxu0
    %v3653 = vadd.f32 %v3624, %v3652
    %3654 = vmatmul.bf16.gmra.mxu0 %v2662
    %v3655 = vpop.f32.mrf.mxu0
    %v3656 = vadd.f32 %v3627, %v3655
    %v3657 = vpop.f32.mrf.mxu0
    %v3658 = vadd.f32 %v3629, %v3657
    %3659 = vmatmul.bf16.gmra.mxu0 %v2676
    %v3660 = vpop.f32.mrf.mxu0
    %v3661 = vadd.f32 %v3632, %v3660
    %v3662 = vpop.f32.mrf.mxu0
    %v3663 = vadd.f32 %v3634, %v3662
    %3664 = vmatmul.bf16.gmra.mxu0 %v2690
    %v3665 = vpop.f32.mrf.mxu0
    %v3666 = vadd.f32 %v3637, %v3665
    %v3667 = vpop.f32.mrf.mxu0
    %v3668 = vadd.f32 %v3639, %v3667
    %3669 = vdwg.mxu0
    %3670 = vmatpush.bf16.msra.mxu0 %v3259
    %3671 = vmatpush.bf16.msra.mxu0 %v3258
    %3672 = vmatpush.bf16.msra.mxu0 %v3257
    %3673 = vmatpush.bf16.msra.mxu0 %v3256
    %3674 = vmatpush.bf16.msra.mxu0 %v3255
    %3675 = vmatpush.bf16.msra.mxu0 %v3254
    %3676 = vmatpush.bf16.msra.mxu0 %v3253
    %3677 = vmatpush.bf16.msra.mxu0 %v3252
    %3678 = vmatmul.bf16.gmra.mxu0 %v2649
    %v3679 = vpop.f32.mrf.mxu0
    %v3680 = vadd.f32 %v3651, %v3679
    %v3681 = vpop.f32.mrf.mxu0
    %v3682 = vadd.f32 %v3653, %v3681
    %3683 = vmatmul.bf16.gmra.mxu0 %v2663
    %v3684 = vpop.f32.mrf.mxu0
    %v3685 = vadd.f32 %v3656, %v3684
    %v3686 = vpop.f32.mrf.mxu0
    %v3687 = vadd.f32 %v3658, %v3686
    %3688 = vmatmul.bf16.gmra.mxu0 %v2677
    %v3689 = vpop.f32.mrf.mxu0
    %v3690 = vadd.f32 %v3661, %v3689
    %v3691 = vpop.f32.mrf.mxu0
    %v3692 = vadd.f32 %v3663, %v3691
    %3693 = vmatmul.bf16.gmra.mxu0 %v2691
    %v3694 = vpop.f32.mrf.mxu0
    %v3695 = vadd.f32 %v3666, %v3694
    %v3696 = vpop.f32.mrf.mxu0
    %v3697 = vadd.f32 %v3668, %v3696
    %3698 = vdwg.mxu0
    %3699 = vmatpush.bf16.msra.mxu0 %v3267
    %3700 = vmatpush.bf16.msra.mxu0 %v3266
    %3701 = vmatpush.bf16.msra.mxu0 %v3265
    %3702 = vmatpush.bf16.msra.mxu0 %v3264
    %3703 = vmatpush.bf16.msra.mxu0 %v3263
    %3704 = vmatpush.bf16.msra.mxu0 %v3262
    %3705 = vmatpush.bf16.msra.mxu0 %v3261
    %3706 = vmatpush.bf16.msra.mxu0 %v3260
    %3707 = vmatmul.bf16.gmra.mxu0 %v2650
    %v3708 = vpop.f32.mrf.mxu0
    %v3709 = vadd.f32 %v3680, %v3708
    %v3710 = vpop.f32.mrf.mxu0
    %v3711 = vadd.f32 %v3682, %v3710
    %3712 = vmatmul.bf16.gmra.mxu0 %v2664
    %v3713 = vpop.f32.mrf.mxu0
    %v3714 = vadd.f32 %v3685, %v3713
    %v3715 = vpop.f32.mrf.mxu0
    %v3716 = vadd.f32 %v3687, %v3715
    %3717 = vmatmul.bf16.gmra.mxu0 %v2678
    %v3718 = vpop.f32.mrf.mxu0
    %v3719 = vadd.f32 %v3690, %v3718
    %v3720 = vpop.f32.mrf.mxu0
    %v3721 = vadd.f32 %v3692, %v3720
    %3722 = vmatmul.bf16.gmra.mxu0 %v2692
    %v3723 = vpop.f32.mrf.mxu0
    %v3724 = vadd.f32 %v3695, %v3723
    %v3725 = vpop.f32.mrf.mxu0
    %v3726 = vadd.f32 %v3697, %v3725
    %3727 = vdwg.mxu0
    %3728 = vmatpush.bf16.msra.mxu0 %v3275
    %3729 = vmatpush.bf16.msra.mxu0 %v3274
    %3730 = vmatpush.bf16.msra.mxu0 %v3273
    %3731 = vmatpush.bf16.msra.mxu0 %v3272
    %3732 = vmatpush.bf16.msra.mxu0 %v3271
    %3733 = vmatpush.bf16.msra.mxu0 %v3270
    %3734 = vmatpush.bf16.msra.mxu0 %v3269
    %3735 = vmatpush.bf16.msra.mxu0 %v3268
    %3736 = vmatmul.bf16.gmra.mxu0 %v2651
    %v3737 = vpop.f32.mrf.mxu0
    %v3738 = vadd.f32 %v3709, %v3737
    %v3739 = vpop.f32.mrf.mxu0
    %v3740 = vadd.f32 %v3711, %v3739
    %3741 = vmatmul.bf16.gmra.mxu0 %v2665
    %v3742 = vpop.f32.mrf.mxu0
    %v3743 = vadd.f32 %v3714, %v3742
    %v3744 = vpop.f32.mrf.mxu0
    %v3745 = vadd.f32 %v3716, %v3744
    %3746 = vmatmul.bf16.gmra.mxu0 %v2679
    %v3747 = vpop.f32.mrf.mxu0
    %v3748 = vadd.f32 %v3719, %v3747
    %v3749 = vpop.f32.mrf.mxu0
    %v3750 = vadd.f32 %v3721, %v3749
    %3751 = vmatmul.bf16.gmra.mxu0 %v2693
    %v3752 = vpop.f32.mrf.mxu0
    %v3753 = vadd.f32 %v3724, %v3752
    %v3754 = vpop.f32.mrf.mxu0
    %v3755 = vadd.f32 %v3726, %v3754
    %3756 = vdwg.mxu0
    %3757 = vmatpush.bf16.msra.mxu0 %v3283
    %3758 = vmatpush.bf16.msra.mxu0 %v3282
    %3759 = vmatpush.bf16.msra.mxu0 %v3281
    %3760 = vmatpush.bf16.msra.mxu0 %v3280
    %3761 = vmatpush.bf16.msra.mxu0 %v3279
    %3762 = vmatpush.bf16.msra.mxu0 %v3278
    %3763 = vmatpush.bf16.msra.mxu0 %v3277
    %3764 = vmatpush.bf16.msra.mxu0 %v3276
    %3765 = vmatmul.bf16.gmra.mxu0 %v2652
    %v3766 = vpop.f32.mrf.mxu0
    %v3767 = vadd.f32 %v3738, %v3766
    %v3768 = vpop.f32.mrf.mxu0
    %v3769 = vadd.f32 %v3740, %v3768
    %3770 = vmatmul.bf16.gmra.mxu0 %v2666
    %v3771 = vpop.f32.mrf.mxu0
    %v3772 = vadd.f32 %v3743, %v3771
    %v3773 = vpop.f32.mrf.mxu0
    %v3774 = vadd.f32 %v3745, %v3773
    %3775 = vmatmul.bf16.gmra.mxu0 %v2680
    %v3776 = vpop.f32.mrf.mxu0
    %v3777 = vadd.f32 %v3748, %v3776
    %v3778 = vpop.f32.mrf.mxu0
    %v3779 = vadd.f32 %v3750, %v3778
    %3780 = vmatmul.bf16.gmra.mxu0 %v2694
    %v3781 = vpop.f32.mrf.mxu0
    %v3782 = vadd.f32 %v3753, %v3781
    %v3783 = vpop.f32.mrf.mxu0
    %v3784 = vadd.f32 %v3755, %v3783
    %3785 = vdwg.mxu0
    %3786 = vmatpush.bf16.msra.mxu0 0
    %3787 = vmatpush.bf16.msra.mxu0 0
    %3788 = vmatpush.bf16.msra.mxu0 0
    %3789 = vmatpush.bf16.msra.mxu0 0
    %3790 = vmatpush.bf16.msra.mxu0 %v3287
    %3791 = vmatpush.bf16.msra.mxu0 %v3286
    %3792 = vmatpush.bf16.msra.mxu0 %v3285
    %3793 = vmatpush.bf16.msra.mxu0 %v3284
    %3794 = vmatmul.bf16.gmra.mxu0 %v3398
    %v3795 = vpop.f32.mrf.mxu0
    %v3796 = vadd.f32 %v3767, %v3795
    %v3797 = vpop.f32.mrf.mxu0
    %v3798 = vadd.f32 %v3769, %v3797
    %3799 = vmatmul.bf16.gmra.mxu0 %v3401
    %v3800 = vpop.f32.mrf.mxu0
    %v3801 = vadd.f32 %v3772, %v3800
    %v3802 = vpop.f32.mrf.mxu0
    %v3803 = vadd.f32 %v3774, %v3802
    %3804 = vmatmul.bf16.gmra.mxu0 %v3404
    %v3805 = vpop.f32.mrf.mxu0
    %v3806 = vadd.f32 %v3777, %v3805
    %v3807 = vpop.f32.mrf.mxu0
    %v3808 = vadd.f32 %v3779, %v3807
    %3809 = vmatmul.bf16.gmra.mxu0 %v3407
    %v3810 = vpop.f32.mrf.mxu0
    %v3811 = vadd.f32 %v3782, %v3810
    %v3812 = vpop.f32.mrf.mxu0
    %v3813 = vadd.f32 %v3784, %v3812
    %3814 = vdwg.mxu0
    %vm3815 = vcmask 392192
    %3816 = vst.msk [vmem:[%s3] sm:$0xff] %vm3815, %v3796
    %3817 = vst.msk [vmem:[%s3 + $0x8] sm:$0xff] %vm3815, %v3798
    %3818 = vst.msk [vmem:[%s3 + $0x10] sm:$0xff] %vm3815, %v3801
    %3819 = vst.msk [vmem:[%s3 + $0x18] sm:$0xff] %vm3815, %v3803
    %3820 = vst.msk [vmem:[%s3 + $0x20] sm:$0xff] %vm3815, %v3806
    %3821 = vst.msk [vmem:[%s3 + $0x28] sm:$0xff] %vm3815, %v3808
    %3822 = vst.msk [vmem:[%s3 + $0x30] sm:$0xff] %vm3815, %v3811
    %3823 = vst.msk [vmem:[%s3 + $0x38] sm:$0xff] %vm3815, %v3813
    // Predicated region
    $region10: #{forward.2} parent=1 // pred_check
      _
    $region11: #{forward.2} parent=1 // pred_check_branch
      %3825 = sbr.rel (0) target = $region13
    $region12: #{forward.2} parent=1 // pred_region
      _
    $region13: #{forward.2} parent=1 // pred_fallthru
      _
    // Predicated region
    $region14: #{forward.2} parent=1 // pred_check
      _
    $region15: #{forward.2} parent=1 // pred_check_branch
      %3827 = sbr.rel (0) target = $region17
    $region16: #{forward.2} parent=1 // pred_region
      _
    $region17: #{forward.2} parent=1 // pred_fallthru
      _

</llo_original>
